<compile_context>
chip_gen: v6e
topology: v6e:2x2x1
jax: 0.10.0
libtpu: 0.0.40
codegen_flags: <defaults>
</compile_context>

<pallas_src>
import math
import functools

import jax
import jax.numpy as jnp
from jax import lax
from jax.experimental import pallas as pl
from jax.experimental.pallas import tpu as pltpu


def _mha_kernel(x_ref, wqkv_ref, bqkv_ref, wo_ref, bo_ref, o_ref, attn_ref=None, *,
                n_heads: int, is_causal: bool, skip_connection: bool):
    """One grid step == `batch_block` batch elements.

    x_ref     : (Bb, T, E)
    wqkv_ref  : (3, H, E, Dh)   pre-transposed per-head Wq/Wk/Wv (scale folded into Wq)
    bqkv_ref  : (3, H, 1, Dh)   per-head biases (scale folded into bq)
    wo_ref    : (H, Dh, E)      per-head slice of out_proj.weight, pre-transposed
    bo_ref    : (1, E)
    o_ref     : (Bb, T, E)
    attn_ref  : (Bb, T, T) or absent (head-averaged attention weights)
    """
    Bb, T, E = x_ref.shape
    H = n_heads
    Dh = E // H
    rows = Bb * T

    # Flatten batch*time into the matmul M dimension (leading-dim reshape: free).
    xf = x_ref[...].reshape(rows, E).astype(jnp.float32)

    if is_causal:
        r = lax.broadcasted_iota(jnp.int32, (1, T, T), 1)
        c = lax.broadcasted_iota(jnp.int32, (1, T, T), 2)
        neg_mask = jnp.where(c > r, -jnp.inf, 0.0).astype(jnp.float32)   # (1, T, T)

    out_acc = jnp.zeros((rows, E), jnp.float32)
    attn_acc = jnp.zeros((Bb, T, T), jnp.float32) if attn_ref is not None else None

    # Static loop over heads. All head indexing is along leading axes of the
    # pre-split weights — no lane-dim slicing or in-kernel transposes.
    for h in range(H):
        wq = wqkv_ref[0, h]   # (E, Dh)
        wk = wqkv_ref[1, h]
        wv = wqkv_ref[2, h]
        bq = bqkv_ref[0, h]   # (1, Dh)
        bk = bqkv_ref[1, h]
        bv = bqkv_ref[2, h]

        qh = (jnp.dot(xf, wq, preferred_element_type=jnp.float32) + bq).reshape(Bb, T, Dh)
        kh = (jnp.dot(xf, wk, preferred_element_type=jnp.float32) + bk).reshape(Bb, T, Dh)
        vh = (jnp.dot(xf, wv, preferred_element_type=jnp.float32) + bv).reshape(Bb, T, Dh)

        # scale is already folded into wq/bq
        s = jnp.einsum('bqd,bkd->bqk', qh, kh, preferred_element_type=jnp.float32)  # (Bb,T,T)
        if is_causal:
            s = s + neg_mask

        m = jnp.max(s, axis=-1, keepdims=True)
        p = jnp.exp(s - m)
        p = p * pl.reciprocal(jnp.sum(p, axis=-1, keepdims=True), approx=False)

        if attn_ref is not None:
            attn_acc = attn_acc + p

        oh = jnp.einsum('bqk,bkd->bqd', p, vh, preferred_element_type=jnp.float32)   # (Bb,T,Dh)
        # Distributed output projection:
        #   concat_h(o_h) @ Wout^T == sum_h o_h @ Wout[:, h*Dh:(h+1)*Dh]^T
        out_acc = out_acc + jnp.dot(oh.reshape(rows, Dh), wo_ref[h],
                                    preferred_element_type=jnp.float32)

    out_acc = out_acc + bo_ref[...]
    if skip_connection:
        out_acc = out_acc + xf

    o_ref[...] = out_acc.reshape(Bb, T, E).astype(o_ref.dtype)
    if attn_ref is not None:
        # averaged over heads, matching PyTorch average_attn_weights=True
        attn_ref[...] = (attn_acc * (1.0 / H)).astype(attn_ref.dtype)


def _pick_batch_block(B: int, T: int, target_rows: int = 512) -> int:
    """Pick how many batch elements to fold per grid step.

    Aims for ~target_rows rows per step (fills MXU rows, amortizes per-step
    overhead) while keeping >=2 grid steps when B > 1 so the parallel grid
    axis can be sharded across v7x's two TensorCores.
    Must divide B (no remainder handling needed for this module's use-case).
    """
    bblk = max(1, min(B, target_rows // max(T, 1)))
    if B > 1:
        bblk = min(bblk, max(1, B // 2))
    while B % bblk:
        bblk -= 1
    return bblk


def dynamical_self_attention(x, in_proj_w, in_proj_b, out_proj_w, out_proj_b, *,
                             n_heads: int, is_causal: bool = False,
                             skip_connection: bool = False,
                             return_attention_weights: bool = False,
                             batch_block: int | None = None):
    """Pallas implementation of DynamicalSelfAttention.forward.  x: (B, T, E)."""
    B, T, E = x.shape
    H = n_heads
    assert E % H == 0
    Dh = E // H
    scale = 1.0 / math.sqrt(Dh)

    # ---- one-time weight layout work, kept OUT of the kernel ----------------
    wq, wk, wv = in_proj_w[:E], in_proj_w[E:2 * E], in_proj_w[2 * E:]
    bq, bk, bv = in_proj_b[:E], in_proj_b[E:2 * E], in_proj_b[2 * E:]

    # per-head, pre-transposed; 1/sqrt(Dh) folded into the Q projection
    w_qkv = jnp.stack([
        (wq.reshape(H, Dh, E) * scale).transpose(0, 2, 1),   # (H, E, Dh)
        wk.reshape(H, Dh, E).transpose(0, 2, 1),
        wv.reshape(H, Dh, E).transpose(0, 2, 1),
    ]).astype(jnp.float32)                                    # (3, H, E, Dh)
    b_qkv = jnp.stack([
        (bq * scale).reshape(H, 1, Dh),
        bk.reshape(H, 1, Dh),
        bv.reshape(H, 1, Dh),
    ]).astype(jnp.float32)                                    # (3, H, 1, Dh)
    # per-head slice of Wout, pre-transposed: wo[h] = Wout[:, h*Dh:(h+1)*Dh].T
    wo = out_proj_w.reshape(E, H, Dh).transpose(1, 2, 0).astype(jnp.float32)   # (H, Dh, E)
    bo = out_proj_b.reshape(1, E).astype(jnp.float32)

    # ---- batch folding -------------------------------------------------------
    if batch_block is None:
        batch_block = _pick_batch_block(B, T)
    assert B % batch_block == 0
    grid = (B // batch_block,)

    kernel = functools.partial(_mha_kernel, n_heads=H, is_causal=is_causal,
                               skip_connection=skip_connection)

    in_specs = [
        pl.BlockSpec((batch_block, T, E), lambda b: (b, 0, 0)),     # x
        pl.BlockSpec((3, H, E, Dh), lambda b: (0, 0, 0, 0)),        # w_qkv (grid-invariant)
        pl.BlockSpec((3, H, 1, Dh), lambda b: (0, 0, 0, 0)),        # b_qkv
        pl.BlockSpec((H, Dh, E), lambda b: (0, 0, 0)),              # wo
        pl.BlockSpec((1, E), lambda b: (0, 0)),                     # bo
    ]
    out_spec_o = pl.BlockSpec((batch_block, T, E), lambda b: (b, 0, 0))

    if return_attention_weights:
        out_shape = (jax.ShapeDtypeStruct((B, T, E), x.dtype),
                     jax.ShapeDtypeStruct((B, T, T), x.dtype))
        out_specs = [out_spec_o,
                     pl.BlockSpec((batch_block, T, T), lambda b: (b, 0, 0))]
    else:
        # Specialized variant: attention weights never computed or stored.
        out_shape = jax.ShapeDtypeStruct((B, T, E), x.dtype)
        out_specs = out_spec_o

    result = pl.pallas_call(
        kernel,
        out_shape=out_shape,
        grid_spec=pltpu.PrefetchScalarGridSpec(
            num_scalar_prefetch=0,
            grid=grid,
            in_specs=in_specs,
            out_specs=out_specs),
        compiler_params=pltpu.CompilerParams(
            dimension_semantics=("parallel",)),
    )(x, w_qkv, b_qkv, wo, bo)

    if return_attention_weights:
        return result[0], result[1]
    return result


def _reference(x, in_proj_w, in_proj_b, out_proj_w, out_proj_b,
               *, n_heads, is_causal, skip_connection):
    """Pure-JAX reference mirroring PyTorch nn.MultiheadAttention (batch_first)."""
    with jax.default_matmul_precision("highest"):
        B, T, E = x.shape
        Dh = E // n_heads
        wq, wk, wv = in_proj_w[:E], in_proj_w[E:2 * E], in_proj_w[2 * E:]
        bq, bk, bv = in_proj_b[:E], in_proj_b[E:2 * E], in_proj_b[2 * E:]
        q = x @ wq.T + bq
        k = x @ wk.T + bk
        v = x @ wv.T + bv
        q = q.reshape(B, T, n_heads, Dh).transpose(0, 2, 1, 3)
        k = k.reshape(B, T, n_heads, Dh).transpose(0, 2, 1, 3)
        v = v.reshape(B, T, n_heads, Dh).transpose(0, 2, 1, 3)
        s = jnp.einsum("bhqd,bhkd->bhqk", q, k) / math.sqrt(Dh)
        if is_causal:
            mask = jnp.triu(jnp.full((T, T), -jnp.inf, dtype=x.dtype), k=1)
            s = s + mask
        p = jax.nn.softmax(s, axis=-1)
        o = jnp.einsum("bhqk,bhkd->bhqd", p, v)
        o = o.transpose(0, 2, 1, 3).reshape(B, T, E)
        out = o @ out_proj_w.T + out_proj_b
        if skip_connection:
            out = out + x
        return out, p.mean(axis=1)


if __name__ == "__main__":
    # Module config (mirrors DynamicalSelfAttention.__init__)
    n_time_steps = 8          # T
    n_state_variables = 32    # E (embed dim)
    n_heads = 4
    is_causal = True
    skip_connection = True
    batch = 8                 # folded into blocks of batch_block per grid step

    key = jax.random.PRNGKey(0)
    k_x, k_w1, k_w2 = jax.random.split(key, 3)

    E = n_state_variables
    x = jax.random.normal(k_x, (batch, n_time_steps, E), dtype=jnp.float32)

    # Deterministic parameter init (xavier-ish uniform weights, zero biases,
    # same shapes as nn.MultiheadAttention).
    lim_in = math.sqrt(6.0 / (E + E))
    in_proj_w = jax.random.uniform(k_w1, (3 * E, E), minval=-lim_in, maxval=lim_in,
                                   dtype=jnp.float32)
    in_proj_b = jnp.zeros((3 * E,), jnp.float32)
    out_proj_w = jax.random.uniform(k_w2, (E, E), minval=-lim_in, maxval=lim_in,
                                    dtype=jnp.float32)
    out_proj_b = jnp.zeros((E,), jnp.float32)

    # Variant 1: with attention weights (return_attention_weights=True)
    out, attn = dynamical_self_attention(
        x, in_proj_w, in_proj_b, out_proj_w, out_proj_b,
        n_heads=n_heads, is_causal=is_causal,
        skip_connection=skip_connection,
        return_attention_weights=True)
    jax.block_until_ready((out, attn))

    # Variant 2: specialized no-attention-output path
    out_only = dynamical_self_attention(
        x, in_proj_w, in_proj_b, out_proj_w, out_proj_b,
        n_heads=n_heads, is_causal=is_causal,
        skip_connection=skip_connection,
        return_attention_weights=False)
    jax.block_until_ready(out_only)

    ref_out, ref_attn = _reference(
        x, in_proj_w, in_proj_b, out_proj_w, out_proj_b,
        n_heads=n_heads, is_causal=is_causal, skip_connection=skip_connection)

    assert jnp.allclose(out, ref_out, atol=2e-5, rtol=2e-5), "output mismatch"
    assert jnp.allclose(attn, ref_attn, atol=2e-5, rtol=2e-5), "attn-weight mismatch"
    assert jnp.allclose(out_only, ref_out, atol=2e-5, rtol=2e-5), "no-attn-variant mismatch"
    print("KERNEL_OK")
</pallas_src>

<mosaic_0001>
module attributes {stable_mosaic.version = 11 : i64} {
  func.func @_mha_kernel(%arg0: i32, %arg1: memref<4x8x32xf32, #tpu.memory_space<vmem>>, %arg2: memref<3x4x32x8xf32, #tpu.memory_space<vmem>>, %arg3: memref<3x4x1x8xf32, #tpu.memory_space<vmem>>, %arg4: memref<4x8x32xf32, #tpu.memory_space<vmem>>, %arg5: memref<1x32xf32, #tpu.memory_space<vmem>>, %arg6: memref<4x8x32xf32, #tpu.memory_space<vmem>>, %arg7: memref<4x8x8xf32, #tpu.memory_space<vmem>>) attributes {dimension_semantics = [#tpu.dimension_semantics<parallel>], iteration_bounds = array<i64: 2>, scalar_prefetch = 0 : i64, scratch_operands = 0 : i64, tpu.core_type = #tpu.core_type<tc>, window_params = [{transform_indices = @transform_0, window_bounds = array<i64: 4, 8, 32>}, {pipeline_mode = #tpu.pipeline_mode<synchronous>, transform_indices = @transform_1, window_bounds = array<i64: 3, 4, 32, 8>}, {pipeline_mode = #tpu.pipeline_mode<synchronous>, transform_indices = @transform_2, window_bounds = array<i64: 3, 4, 1, 8>}, {pipeline_mode = #tpu.pipeline_mode<synchronous>, transform_indices = @transform_3, window_bounds = array<i64: 4, 8, 32>}, {pipeline_mode = #tpu.pipeline_mode<synchronous>, transform_indices = @transform_4, window_bounds = array<i64: 1, 32>}, {transform_indices = @transform_5, window_bounds = array<i64: 4, 8, 32>}, {transform_indices = @transform_6, window_bounds = array<i64: 4, 8, 8>}]} {
    %c0 = arith.constant 0 : index
    %c0_0 = arith.constant 0 : index
    %c0_1 = arith.constant 0 : index
    %0 = vector.load %arg1[%c0, %c0_0, %c0_1] : memref<4x8x32xf32, #tpu.memory_space<vmem>>, vector<4x8x32xf32>
    %1 = vector.shape_cast %0 : vector<4x8x32xf32> to vector<32x32xf32>
    %2 = tpu.iota {dimensions = array<i32: 1>} : vector<1x8x8xi32>
    %3 = tpu.iota {dimensions = array<i32: 2>} : vector<1x8x8xi32>
    %4 = arith.cmpi sgt, %3, %2 : vector<1x8x8xi32>
    %cst = arith.constant 0xFF800000 : f32
    %cst_2 = arith.constant 0.000000e+00 : f32
    %5 = vector.broadcast %cst : f32 to vector<1x8x8xf32>
    %6 = vector.broadcast %cst_2 : f32 to vector<1x8x8xf32>
    %7 = arith.select %4, %5, %6 : vector<1x8x8xi1>, vector<1x8x8xf32>
    %cst_3 = arith.constant 0.000000e+00 : f32
    %8 = vector.broadcast %cst_3 : f32 to vector<32x32xf32>
    %cst_4 = arith.constant 0.000000e+00 : f32
    %9 = vector.broadcast %cst_4 : f32 to vector<4x8x8xf32>
    %c0_5 = arith.constant 0 : index
    %c0_6 = arith.constant 0 : index
    %c0_7 = arith.constant 0 : index
    %c0_8 = arith.constant 0 : index
    %10 = vector.load %arg2[%c0_5, %c0_6, %c0_7, %c0_8] : memref<3x4x32x8xf32, #tpu.memory_space<vmem>>, vector<1x1x32x8xf32>
    %11 = vector.shape_cast %10 : vector<1x1x32x8xf32> to vector<32x8xf32>
    %c1 = arith.constant 1 : index
    %c0_9 = arith.constant 0 : index
    %c0_10 = arith.constant 0 : index
    %c0_11 = arith.constant 0 : index
    %12 = vector.load %arg2[%c1, %c0_9, %c0_10, %c0_11] : memref<3x4x32x8xf32, #tpu.memory_space<vmem>>, vector<1x1x32x8xf32>
    %13 = vector.shape_cast %12 : vector<1x1x32x8xf32> to vector<32x8xf32>
    %c2 = arith.constant 2 : index
    %c0_12 = arith.constant 0 : index
    %c0_13 = arith.constant 0 : index
    %c0_14 = arith.constant 0 : index
    %14 = vector.load %arg2[%c2, %c0_12, %c0_13, %c0_14] : memref<3x4x32x8xf32, #tpu.memory_space<vmem>>, vector<1x1x32x8xf32>
    %15 = vector.shape_cast %14 : vector<1x1x32x8xf32> to vector<32x8xf32>
    %c0_15 = arith.constant 0 : index
    %c0_16 = arith.constant 0 : index
    %c0_17 = arith.constant 0 : index
    %c0_18 = arith.constant 0 : index
    %16 = vector.load %arg3[%c0_15, %c0_16, %c0_17, %c0_18] : memref<3x4x1x8xf32, #tpu.memory_space<vmem>>, vector<1x1x1x8xf32>
    %17 = vector.shape_cast %16 : vector<1x1x1x8xf32> to vector<1x8xf32>
    %c1_19 = arith.constant 1 : index
    %c0_20 = arith.constant 0 : index
    %c0_21 = arith.constant 0 : index
    %c0_22 = arith.constant 0 : index
    %18 = vector.load %arg3[%c1_19, %c0_20, %c0_21, %c0_22] : memref<3x4x1x8xf32, #tpu.memory_space<vmem>>, vector<1x1x1x8xf32>
    %19 = vector.shape_cast %18 : vector<1x1x1x8xf32> to vector<1x8xf32>
    %c2_23 = arith.constant 2 : index
    %c0_24 = arith.constant 0 : index
    %c0_25 = arith.constant 0 : index
    %c0_26 = arith.constant 0 : index
    %20 = vector.load %arg3[%c2_23, %c0_24, %c0_25, %c0_26] : memref<3x4x1x8xf32, #tpu.memory_space<vmem>>, vector<1x1x1x8xf32>
    %21 = vector.shape_cast %20 : vector<1x1x1x8xf32> to vector<1x8xf32>
    %cst_27 = arith.constant dense<0.000000e+00> : vector<32x8xf32>
    %22 = tpu.matmul %1, %11, %cst_27 {dimension_numbers = #tpu.dot_dimension_numbers<[1], [0], [0], [1], [0, 0, 1, 1], [], []>} : vector<32x32xf32>, vector<32x8xf32>, vector<32x8xf32> -> vector<32x8xf32>
    %23 = vector.broadcast %17 : vector<1x8xf32> to vector<32x8xf32>
    %24 = arith.addf %22, %23 : vector<32x8xf32>
    %25 = vector.shape_cast %24 : vector<32x8xf32> to vector<4x8x8xf32>
    %cst_28 = arith.constant dense<0.000000e+00> : vector<32x8xf32>
    %26 = tpu.matmul %1, %13, %cst_28 {dimension_numbers = #tpu.dot_dimension_numbers<[1], [0], [0], [1], [0, 0, 1, 1], [], []>} : vector<32x32xf32>, vector<32x8xf32>, vector<32x8xf32> -> vector<32x8xf32>
    %27 = vector.broadcast %19 : vector<1x8xf32> to vector<32x8xf32>
    %28 = arith.addf %26, %27 : vector<32x8xf32>
    %29 = vector.shape_cast %28 : vector<32x8xf32> to vector<4x8x8xf32>
    %cst_29 = arith.constant dense<0.000000e+00> : vector<32x8xf32>
    %30 = tpu.matmul %1, %15, %cst_29 {dimension_numbers = #tpu.dot_dimension_numbers<[1], [0], [0], [1], [0, 0, 1, 1], [], []>} : vector<32x32xf32>, vector<32x8xf32>, vector<32x8xf32> -> vector<32x8xf32>
    %31 = vector.broadcast %21 : vector<1x8xf32> to vector<32x8xf32>
    %32 = arith.addf %30, %31 : vector<32x8xf32>
    %33 = vector.shape_cast %32 : vector<32x8xf32> to vector<4x8x8xf32>
    "tpu.trace_start"() <{level = 10 : i32, message = "bqd,bkd->bqk"}> : () -> ()
    %cst_30 = arith.constant dense<0.000000e+00> : vector<4x8x8xf32>
    %34 = tpu.matmul %25, %29, %cst_30 {dimension_numbers = #tpu.dot_dimension_numbers<[2], [2], [1], [1], [0, 0, 0, 1, 1, 1], [0], [0]>} : vector<4x8x8xf32>, vector<4x8x8xf32>, vector<4x8x8xf32> -> vector<4x8x8xf32>
    "tpu.trace_stop"() : () -> ()
    %35 = vector.broadcast %7 : vector<1x8x8xf32> to vector<4x8x8xf32>
    %36 = arith.addf %34, %35 : vector<4x8x8xf32>
    %cst_31 = arith.constant dense<0xFF800000> : vector<4x8xf32>
    %37 = vector.multi_reduction <maximumf>, %36, %cst_31 [2] : vector<4x8x8xf32> to vector<4x8xf32>
    %38 = vector.shape_cast %37 : vector<4x8xf32> to vector<4x8x1xf32>
    %39 = vector.broadcast %38 : vector<4x8x1xf32> to vector<4x8x8xf32>
    %40 = arith.subf %36, %39 : vector<4x8x8xf32>
    %41 = math.exp %40 : vector<4x8x8xf32>
    %cst_32 = arith.constant dense<0.000000e+00> : vector<4x8xf32>
    %42 = vector.multi_reduction <add>, %41, %cst_32 [2] : vector<4x8x8xf32> to vector<4x8xf32>
    %43 = vector.shape_cast %42 : vector<4x8xf32> to vector<4x8x1xf32>
    %44 = tpu.reciprocal %43 : vector<4x8x1xf32> -> vector<4x8x1xf32>
    %45 = vector.broadcast %44 : vector<4x8x1xf32> to vector<4x8x8xf32>
    %46 = arith.mulf %41, %45 : vector<4x8x8xf32>
    %47 = arith.addf %9, %46 : vector<4x8x8xf32>
    "tpu.trace_start"() <{level = 10 : i32, message = "bqk,bkd->bqd"}> : () -> ()
    %cst_33 = arith.constant dense<0.000000e+00> : vector<4x8x8xf32>
    %48 = tpu.matmul %46, %33, %cst_33 {dimension_numbers = #tpu.dot_dimension_numbers<[2], [1], [1], [2], [0, 0, 0, 1, 1, 2], [0], [0]>} : vector<4x8x8xf32>, vector<4x8x8xf32>, vector<4x8x8xf32> -> vector<4x8x8xf32>
    "tpu.trace_stop"() : () -> ()
    %49 = vector.shape_cast %48 : vector<4x8x8xf32> to vector<32x8xf32>
    %c0_34 = arith.constant 0 : index
    %c0_35 = arith.constant 0 : index
    %c0_36 = arith.constant 0 : index
    %50 = vector.load %arg4[%c0_34, %c0_35, %c0_36] : memref<4x8x32xf32, #tpu.memory_space<vmem>>, vector<1x8x32xf32>
    %51 = vector.shape_cast %50 : vector<1x8x32xf32> to vector<8x32xf32>
    %cst_37 = arith.constant dense<0.000000e+00> : vector<32x32xf32>
    %52 = tpu.matmul %49, %51, %cst_37 {dimension_numbers = #tpu.dot_dimension_numbers<[1], [0], [0], [1], [0, 0, 1, 1], [], []>} : vector<32x8xf32>, vector<8x32xf32>, vector<32x32xf32> -> vector<32x32xf32>
    %53 = arith.addf %8, %52 : vector<32x32xf32>
    %c0_38 = arith.constant 0 : index
    %c1_39 = arith.constant 1 : index
    %c0_40 = arith.constant 0 : index
    %c0_41 = arith.constant 0 : index
    %54 = vector.load %arg2[%c0_38, %c1_39, %c0_40, %c0_41] : memref<3x4x32x8xf32, #tpu.memory_space<vmem>>, vector<1x1x32x8xf32>
    %55 = vector.shape_cast %54 : vector<1x1x32x8xf32> to vector<32x8xf32>
    %c1_42 = arith.constant 1 : index
    %c1_43 = arith.constant 1 : index
    %c0_44 = arith.constant 0 : index
    %c0_45 = arith.constant 0 : index
    %56 = vector.load %arg2[%c1_42, %c1_43, %c0_44, %c0_45] : memref<3x4x32x8xf32, #tpu.memory_space<vmem>>, vector<1x1x32x8xf32>
    %57 = vector.shape_cast %56 : vector<1x1x32x8xf32> to vector<32x8xf32>
    %c2_46 = arith.constant 2 : index
    %c1_47 = arith.constant 1 : index
    %c0_48 = arith.constant 0 : index
    %c0_49 = arith.constant 0 : index
    %58 = vector.load %arg2[%c2_46, %c1_47, %c0_48, %c0_49] : memref<3x4x32x8xf32, #tpu.memory_space<vmem>>, vector<1x1x32x8xf32>
    %59 = vector.shape_cast %58 : vector<1x1x32x8xf32> to vector<32x8xf32>
    %c0_50 = arith.constant 0 : index
    %c1_51 = arith.constant 1 : index
    %c0_52 = arith.constant 0 : index
    %c0_53 = arith.constant 0 : index
    %60 = vector.load %arg3[%c0_50, %c1_51, %c0_52, %c0_53] : memref<3x4x1x8xf32, #tpu.memory_space<vmem>>, vector<1x1x1x8xf32>
    %61 = vector.shape_cast %60 : vector<1x1x1x8xf32> to vector<1x8xf32>
    %c1_54 = arith.constant 1 : index
    %c1_55 = arith.constant 1 : index
    %c0_56 = arith.constant 0 : index
    %c0_57 = arith.constant 0 : index
    %62 = vector.load %arg3[%c1_54, %c1_55, %c0_56, %c0_57] : memref<3x4x1x8xf32, #tpu.memory_space<vmem>>, vector<1x1x1x8xf32>
    %63 = vector.shape_cast %62 : vector<1x1x1x8xf32> to vector<1x8xf32>
    %c2_58 = arith.constant 2 : index
    %c1_59 = arith.constant 1 : index
    %c0_60 = arith.constant 0 : index
    %c0_61 = arith.constant 0 : index
    %64 = vector.load %arg3[%c2_58, %c1_59, %c0_60, %c0_61] : memref<3x4x1x8xf32, #tpu.memory_space<vmem>>, vector<1x1x1x8xf32>
    %65 = vector.shape_cast %64 : vector<1x1x1x8xf32> to vector<1x8xf32>
    %cst_62 = arith.constant dense<0.000000e+00> : vector<32x8xf32>
    %66 = tpu.matmul %1, %55, %cst_62 {dimension_numbers = #tpu.dot_dimension_numbers<[1], [0], [0], [1], [0, 0, 1, 1], [], []>} : vector<32x32xf32>, vector<32x8xf32>, vector<32x8xf32> -> vector<32x8xf32>
    %67 = vector.broadcast %61 : vector<1x8xf32> to vector<32x8xf32>
    %68 = arith.addf %66, %67 : vector<32x8xf32>
    %69 = vector.shape_cast %68 : vector<32x8xf32> to vector<4x8x8xf32>
    %cst_63 = arith.constant dense<0.000000e+00> : vector<32x8xf32>
    %70 = tpu.matmul %1, %57, %cst_63 {dimension_numbers = #tpu.dot_dimension_numbers<[1], [0], [0], [1], [0, 0, 1, 1], [], []>} : vector<32x32xf32>, vector<32x8xf32>, vector<32x8xf32> -> vector<32x8xf32>
    %71 = vector.broadcast %63 : vector<1x8xf32> to vector<32x8xf32>
    %72 = arith.addf %70, %71 : vector<32x8xf32>
    %73 = vector.shape_cast %72 : vector<32x8xf32> to vector<4x8x8xf32>
    %cst_64 = arith.constant dense<0.000000e+00> : vector<32x8xf32>
    %74 = tpu.matmul %1, %59, %cst_64 {dimension_numbers = #tpu.dot_dimension_numbers<[1], [0], [0], [1], [0, 0, 1, 1], [], []>} : vector<32x32xf32>, vector<32x8xf32>, vector<32x8xf32> -> vector<32x8xf32>
    %75 = vector.broadcast %65 : vector<1x8xf32> to vector<32x8xf32>
    %76 = arith.addf %74, %75 : vector<32x8xf32>
    %77 = vector.shape_cast %76 : vector<32x8xf32> to vector<4x8x8xf32>
    "tpu.trace_start"() <{level = 10 : i32, message = "bqd,bkd->bqk"}> : () -> ()
    %cst_65 = arith.constant dense<0.000000e+00> : vector<4x8x8xf32>
    %78 = tpu.matmul %69, %73, %cst_65 {dimension_numbers = #tpu.dot_dimension_numbers<[2], [2], [1], [1], [0, 0, 0, 1, 1, 1], [0], [0]>} : vector<4x8x8xf32>, vector<4x8x8xf32>, vector<4x8x8xf32> -> vector<4x8x8xf32>
    "tpu.trace_stop"() : () -> ()
    %79 = vector.broadcast %7 : vector<1x8x8xf32> to vector<4x8x8xf32>
    %80 = arith.addf %78, %79 : vector<4x8x8xf32>
    %cst_66 = arith.constant dense<0xFF800000> : vector<4x8xf32>
    %81 = vector.multi_reduction <maximumf>, %80, %cst_66 [2] : vector<4x8x8xf32> to vector<4x8xf32>
    %82 = vector.shape_cast %81 : vector<4x8xf32> to vector<4x8x1xf32>
    %83 = vector.broadcast %82 : vector<4x8x1xf32> to vector<4x8x8xf32>
    %84 = arith.subf %80, %83 : vector<4x8x8xf32>
    %85 = math.exp %84 : vector<4x8x8xf32>
    %cst_67 = arith.constant dense<0.000000e+00> : vector<4x8xf32>
    %86 = vector.multi_reduction <add>, %85, %cst_67 [2] : vector<4x8x8xf32> to vector<4x8xf32>
    %87 = vector.shape_cast %86 : vector<4x8xf32> to vector<4x8x1xf32>
    %88 = tpu.reciprocal %87 : vector<4x8x1xf32> -> vector<4x8x1xf32>
    %89 = vector.broadcast %88 : vector<4x8x1xf32> to vector<4x8x8xf32>
    %90 = arith.mulf %85, %89 : vector<4x8x8xf32>
    %91 = arith.addf %47, %90 : vector<4x8x8xf32>
    "tpu.trace_start"() <{level = 10 : i32, message = "bqk,bkd->bqd"}> : () -> ()
    %cst_68 = arith.constant dense<0.000000e+00> : vector<4x8x8xf32>
    %92 = tpu.matmul %90, %77, %cst_68 {dimension_numbers = #tpu.dot_dimension_numbers<[2], [1], [1], [2], [0, 0, 0, 1, 1, 2], [0], [0]>} : vector<4x8x8xf32>, vector<4x8x8xf32>, vector<4x8x8xf32> -> vector<4x8x8xf32>
    "tpu.trace_stop"() : () -> ()
    %93 = vector.shape_cast %92 : vector<4x8x8xf32> to vector<32x8xf32>
    %c1_69 = arith.constant 1 : index
    %c0_70 = arith.constant 0 : index
    %c0_71 = arith.constant 0 : index
    %94 = vector.load %arg4[%c1_69, %c0_70, %c0_71] : memref<4x8x32xf32, #tpu.memory_space<vmem>>, vector<1x8x32xf32>
    %95 = vector.shape_cast %94 : vector<1x8x32xf32> to vector<8x32xf32>
    %cst_72 = arith.constant dense<0.000000e+00> : vector<32x32xf32>
    %96 = tpu.matmul %93, %95, %cst_72 {dimension_numbers = #tpu.dot_dimension_numbers<[1], [0], [0], [1], [0, 0, 1, 1], [], []>} : vector<32x8xf32>, vector<8x32xf32>, vector<32x32xf32> -> vector<32x32xf32>
    %97 = arith.addf %53, %96 : vector<32x32xf32>
    %c0_73 = arith.constant 0 : index
    %c2_74 = arith.constant 2 : index
    %c0_75 = arith.constant 0 : index
    %c0_76 = arith.constant 0 : index
    %98 = vector.load %arg2[%c0_73, %c2_74, %c0_75, %c0_76] : memref<3x4x32x8xf32, #tpu.memory_space<vmem>>, vector<1x1x32x8xf32>
    %99 = vector.shape_cast %98 : vector<1x1x32x8xf32> to vector<32x8xf32>
    %c1_77 = arith.constant 1 : index
    %c2_78 = arith.constant 2 : index
    %c0_79 = arith.constant 0 : index
    %c0_80 = arith.constant 0 : index
    %100 = vector.load %arg2[%c1_77, %c2_78, %c0_79, %c0_80] : memref<3x4x32x8xf32, #tpu.memory_space<vmem>>, vector<1x1x32x8xf32>
    %101 = vector.shape_cast %100 : vector<1x1x32x8xf32> to vector<32x8xf32>
    %c2_81 = arith.constant 2 : index
    %c2_82 = arith.constant 2 : index
    %c0_83 = arith.constant 0 : index
    %c0_84 = arith.constant 0 : index
    %102 = vector.load %arg2[%c2_81, %c2_82, %c0_83, %c0_84] : memref<3x4x32x8xf32, #tpu.memory_space<vmem>>, vector<1x1x32x8xf32>
    %103 = vector.shape_cast %102 : vector<1x1x32x8xf32> to vector<32x8xf32>
    %c0_85 = arith.constant 0 : index
    %c2_86 = arith.constant 2 : index
    %c0_87 = arith.constant 0 : index
    %c0_88 = arith.constant 0 : index
    %104 = vector.load %arg3[%c0_85, %c2_86, %c0_87, %c0_88] : memref<3x4x1x8xf32, #tpu.memory_space<vmem>>, vector<1x1x1x8xf32>
    %105 = vector.shape_cast %104 : vector<1x1x1x8xf32> to vector<1x8xf32>
    %c1_89 = arith.constant 1 : index
    %c2_90 = arith.constant 2 : index
    %c0_91 = arith.constant 0 : index
    %c0_92 = arith.constant 0 : index
    %106 = vector.load %arg3[%c1_89, %c2_90, %c0_91, %c0_92] : memref<3x4x1x8xf32, #tpu.memory_space<vmem>>, vector<1x1x1x8xf32>
    %107 = vector.shape_cast %106 : vector<1x1x1x8xf32> to vector<1x8xf32>
    %c2_93 = arith.constant 2 : index
    %c2_94 = arith.constant 2 : index
    %c0_95 = arith.constant 0 : index
    %c0_96 = arith.constant 0 : index
    %108 = vector.load %arg3[%c2_93, %c2_94, %c0_95, %c0_96] : memref<3x4x1x8xf32, #tpu.memory_space<vmem>>, vector<1x1x1x8xf32>
    %109 = vector.shape_cast %108 : vector<1x1x1x8xf32> to vector<1x8xf32>
    %cst_97 = arith.constant dense<0.000000e+00> : vector<32x8xf32>
    %110 = tpu.matmul %1, %99, %cst_97 {dimension_numbers = #tpu.dot_dimension_numbers<[1], [0], [0], [1], [0, 0, 1, 1], [], []>} : vector<32x32xf32>, vector<32x8xf32>, vector<32x8xf32> -> vector<32x8xf32>
    %111 = vector.broadcast %105 : vector<1x8xf32> to vector<32x8xf32>
    %112 = arith.addf %110, %111 : vector<32x8xf32>
    %113 = vector.shape_cast %112 : vector<32x8xf32> to vector<4x8x8xf32>
    %cst_98 = arith.constant dense<0.000000e+00> : vector<32x8xf32>
    %114 = tpu.matmul %1, %101, %cst_98 {dimension_numbers = #tpu.dot_dimension_numbers<[1], [0], [0], [1], [0, 0, 1, 1], [], []>} : vector<32x32xf32>, vector<32x8xf32>, vector<32x8xf32> -> vector<32x8xf32>
    %115 = vector.broadcast %107 : vector<1x8xf32> to vector<32x8xf32>
    %116 = arith.addf %114, %115 : vector<32x8xf32>
    %117 = vector.shape_cast %116 : vector<32x8xf32> to vector<4x8x8xf32>
    %cst_99 = arith.constant dense<0.000000e+00> : vector<32x8xf32>
    %118 = tpu.matmul %1, %103, %cst_99 {dimension_numbers = #tpu.dot_dimension_numbers<[1], [0], [0], [1], [0, 0, 1, 1], [], []>} : vector<32x32xf32>, vector<32x8xf32>, vector<32x8xf32> -> vector<32x8xf32>
    %119 = vector.broadcast %109 : vector<1x8xf32> to vector<32x8xf32>
    %120 = arith.addf %118, %119 : vector<32x8xf32>
    %121 = vector.shape_cast %120 : vector<32x8xf32> to vector<4x8x8xf32>
    "tpu.trace_start"() <{level = 10 : i32, message = "bqd,bkd->bqk"}> : () -> ()
    %cst_100 = arith.constant dense<0.000000e+00> : vector<4x8x8xf32>
    %122 = tpu.matmul %113, %117, %cst_100 {dimension_numbers = #tpu.dot_dimension_numbers<[2], [2], [1], [1], [0, 0, 0, 1, 1, 1], [0], [0]>} : vector<4x8x8xf32>, vector<4x8x8xf32>, vector<4x8x8xf32> -> vector<4x8x8xf32>
    "tpu.trace_stop"() : () -> ()
    %123 = vector.broadcast %7 : vector<1x8x8xf32> to vector<4x8x8xf32>
    %124 = arith.addf %122, %123 : vector<4x8x8xf32>
    %cst_101 = arith.constant dense<0xFF800000> : vector<4x8xf32>
    %125 = vector.multi_reduction <maximumf>, %124, %cst_101 [2] : vector<4x8x8xf32> to vector<4x8xf32>
    %126 = vector.shape_cast %125 : vector<4x8xf32> to vector<4x8x1xf32>
    %127 = vector.broadcast %126 : vector<4x8x1xf32> to vector<4x8x8xf32>
    %128 = arith.subf %124, %127 : vector<4x8x8xf32>
    %129 = math.exp %128 : vector<4x8x8xf32>
    %cst_102 = arith.constant dense<0.000000e+00> : vector<4x8xf32>
    %130 = vector.multi_reduction <add>, %129, %cst_102 [2] : vector<4x8x8xf32> to vector<4x8xf32>
    %131 = vector.shape_cast %130 : vector<4x8xf32> to vector<4x8x1xf32>
    %132 = tpu.reciprocal %131 : vector<4x8x1xf32> -> vector<4x8x1xf32>
    %133 = vector.broadcast %132 : vector<4x8x1xf32> to vector<4x8x8xf32>
    %134 = arith.mulf %129, %133 : vector<4x8x8xf32>
    %135 = arith.addf %91, %134 : vector<4x8x8xf32>
    "tpu.trace_start"() <{level = 10 : i32, message = "bqk,bkd->bqd"}> : () -> ()
    %cst_103 = arith.constant dense<0.000000e+00> : vector<4x8x8xf32>
    %136 = tpu.matmul %134, %121, %cst_103 {dimension_numbers = #tpu.dot_dimension_numbers<[2], [1], [1], [2], [0, 0, 0, 1, 1, 2], [0], [0]>} : vector<4x8x8xf32>, vector<4x8x8xf32>, vector<4x8x8xf32> -> vector<4x8x8xf32>
    "tpu.trace_stop"() : () -> ()
    %137 = vector.shape_cast %136 : vector<4x8x8xf32> to vector<32x8xf32>
    %c2_104 = arith.constant 2 : index
    %c0_105 = arith.constant 0 : index
    %c0_106 = arith.constant 0 : index
    %138 = vector.load %arg4[%c2_104, %c0_105, %c0_106] : memref<4x8x32xf32, #tpu.memory_space<vmem>>, vector<1x8x32xf32>
    %139 = vector.shape_cast %138 : vector<1x8x32xf32> to vector<8x32xf32>
    %cst_107 = arith.constant dense<0.000000e+00> : vector<32x32xf32>
    %140 = tpu.matmul %137, %139, %cst_107 {dimension_numbers = #tpu.dot_dimension_numbers<[1], [0], [0], [1], [0, 0, 1, 1], [], []>} : vector<32x8xf32>, vector<8x32xf32>, vector<32x32xf32> -> vector<32x32xf32>
    %141 = arith.addf %97, %140 : vector<32x32xf32>
    %c0_108 = arith.constant 0 : index
    %c3 = arith.constant 3 : index
    %c0_109 = arith.constant 0 : index
    %c0_110 = arith.constant 0 : index
    %142 = vector.load %arg2[%c0_108, %c3, %c0_109, %c0_110] : memref<3x4x32x8xf32, #tpu.memory_space<vmem>>, vector<1x1x32x8xf32>
    %143 = vector.shape_cast %142 : vector<1x1x32x8xf32> to vector<32x8xf32>
    %c1_111 = arith.constant 1 : index
    %c3_112 = arith.constant 3 : index
    %c0_113 = arith.constant 0 : index
    %c0_114 = arith.constant 0 : index
    %144 = vector.load %arg2[%c1_111, %c3_112, %c0_113, %c0_114] : memref<3x4x32x8xf32, #tpu.memory_space<vmem>>, vector<1x1x32x8xf32>
    %145 = vector.shape_cast %144 : vector<1x1x32x8xf32> to vector<32x8xf32>
    %c2_115 = arith.constant 2 : index
    %c3_116 = arith.constant 3 : index
    %c0_117 = arith.constant 0 : index
    %c0_118 = arith.constant 0 : index
    %146 = vector.load %arg2[%c2_115, %c3_116, %c0_117, %c0_118] : memref<3x4x32x8xf32, #tpu.memory_space<vmem>>, vector<1x1x32x8xf32>
    %147 = vector.shape_cast %146 : vector<1x1x32x8xf32> to vector<32x8xf32>
    %c0_119 = arith.constant 0 : index
    %c3_120 = arith.constant 3 : index
    %c0_121 = arith.constant 0 : index
    %c0_122 = arith.constant 0 : index
    %148 = vector.load %arg3[%c0_119, %c3_120, %c0_121, %c0_122] : memref<3x4x1x8xf32, #tpu.memory_space<vmem>>, vector<1x1x1x8xf32>
    %149 = vector.shape_cast %148 : vector<1x1x1x8xf32> to vector<1x8xf32>
    %c1_123 = arith.constant 1 : index
    %c3_124 = arith.constant 3 : index
    %c0_125 = arith.constant 0 : index
    %c0_126 = arith.constant 0 : index
    %150 = vector.load %arg3[%c1_123, %c3_124, %c0_125, %c0_126] : memref<3x4x1x8xf32, #tpu.memory_space<vmem>>, vector<1x1x1x8xf32>
    %151 = vector.shape_cast %150 : vector<1x1x1x8xf32> to vector<1x8xf32>
    %c2_127 = arith.constant 2 : index
    %c3_128 = arith.constant 3 : index
    %c0_129 = arith.constant 0 : index
    %c0_130 = arith.constant 0 : index
    %152 = vector.load %arg3[%c2_127, %c3_128, %c0_129, %c0_130] : memref<3x4x1x8xf32, #tpu.memory_space<vmem>>, vector<1x1x1x8xf32>
    %153 = vector.shape_cast %152 : vector<1x1x1x8xf32> to vector<1x8xf32>
    %cst_131 = arith.constant dense<0.000000e+00> : vector<32x8xf32>
    %154 = tpu.matmul %1, %143, %cst_131 {dimension_numbers = #tpu.dot_dimension_numbers<[1], [0], [0], [1], [0, 0, 1, 1], [], []>} : vector<32x32xf32>, vector<32x8xf32>, vector<32x8xf32> -> vector<32x8xf32>
    %155 = vector.broadcast %149 : vector<1x8xf32> to vector<32x8xf32>
    %156 = arith.addf %154, %155 : vector<32x8xf32>
    %157 = vector.shape_cast %156 : vector<32x8xf32> to vector<4x8x8xf32>
    %cst_132 = arith.constant dense<0.000000e+00> : vector<32x8xf32>
    %158 = tpu.matmul %1, %145, %cst_132 {dimension_numbers = #tpu.dot_dimension_numbers<[1], [0], [0], [1], [0, 0, 1, 1], [], []>} : vector<32x32xf32>, vector<32x8xf32>, vector<32x8xf32> -> vector<32x8xf32>
    %159 = vector.broadcast %151 : vector<1x8xf32> to vector<32x8xf32>
    %160 = arith.addf %158, %159 : vector<32x8xf32>
    %161 = vector.shape_cast %160 : vector<32x8xf32> to vector<4x8x8xf32>
    %cst_133 = arith.constant dense<0.000000e+00> : vector<32x8xf32>
    %162 = tpu.matmul %1, %147, %cst_133 {dimension_numbers = #tpu.dot_dimension_numbers<[1], [0], [0], [1], [0, 0, 1, 1], [], []>} : vector<32x32xf32>, vector<32x8xf32>, vector<32x8xf32> -> vector<32x8xf32>
    %163 = vector.broadcast %153 : vector<1x8xf32> to vector<32x8xf32>
    %164 = arith.addf %162, %163 : vector<32x8xf32>
    %165 = vector.shape_cast %164 : vector<32x8xf32> to vector<4x8x8xf32>
    "tpu.trace_start"() <{level = 10 : i32, message = "bqd,bkd->bqk"}> : () -> ()
    %cst_134 = arith.constant dense<0.000000e+00> : vector<4x8x8xf32>
    %166 = tpu.matmul %157, %161, %cst_134 {dimension_numbers = #tpu.dot_dimension_numbers<[2], [2], [1], [1], [0, 0, 0, 1, 1, 1], [0], [0]>} : vector<4x8x8xf32>, vector<4x8x8xf32>, vector<4x8x8xf32> -> vector<4x8x8xf32>
    "tpu.trace_stop"() : () -> ()
    %167 = vector.broadcast %7 : vector<1x8x8xf32> to vector<4x8x8xf32>
    %168 = arith.addf %166, %167 : vector<4x8x8xf32>
    %cst_135 = arith.constant dense<0xFF800000> : vector<4x8xf32>
    %169 = vector.multi_reduction <maximumf>, %168, %cst_135 [2] : vector<4x8x8xf32> to vector<4x8xf32>
    %170 = vector.shape_cast %169 : vector<4x8xf32> to vector<4x8x1xf32>
    %171 = vector.broadcast %170 : vector<4x8x1xf32> to vector<4x8x8xf32>
    %172 = arith.subf %168, %171 : vector<4x8x8xf32>
    %173 = math.exp %172 : vector<4x8x8xf32>
    %cst_136 = arith.constant dense<0.000000e+00> : vector<4x8xf32>
    %174 = vector.multi_reduction <add>, %173, %cst_136 [2] : vector<4x8x8xf32> to vector<4x8xf32>
    %175 = vector.shape_cast %174 : vector<4x8xf32> to vector<4x8x1xf32>
    %176 = tpu.reciprocal %175 : vector<4x8x1xf32> -> vector<4x8x1xf32>
    %177 = vector.broadcast %176 : vector<4x8x1xf32> to vector<4x8x8xf32>
    %178 = arith.mulf %173, %177 : vector<4x8x8xf32>
    %179 = arith.addf %135, %178 : vector<4x8x8xf32>
    "tpu.trace_start"() <{level = 10 : i32, message = "bqk,bkd->bqd"}> : () -> ()
    %cst_137 = arith.constant dense<0.000000e+00> : vector<4x8x8xf32>
    %180 = tpu.matmul %178, %165, %cst_137 {dimension_numbers = #tpu.dot_dimension_numbers<[2], [1], [1], [2], [0, 0, 0, 1, 1, 2], [0], [0]>} : vector<4x8x8xf32>, vector<4x8x8xf32>, vector<4x8x8xf32> -> vector<4x8x8xf32>
    "tpu.trace_stop"() : () -> ()
    %181 = vector.shape_cast %180 : vector<4x8x8xf32> to vector<32x8xf32>
    %c3_138 = arith.constant 3 : index
    %c0_139 = arith.constant 0 : index
    %c0_140 = arith.constant 0 : index
    %182 = vector.load %arg4[%c3_138, %c0_139, %c0_140] : memref<4x8x32xf32, #tpu.memory_space<vmem>>, vector<1x8x32xf32>
    %183 = vector.shape_cast %182 : vector<1x8x32xf32> to vector<8x32xf32>
    %cst_141 = arith.constant dense<0.000000e+00> : vector<32x32xf32>
    %184 = tpu.matmul %181, %183, %cst_141 {dimension_numbers = #tpu.dot_dimension_numbers<[1], [0], [0], [1], [0, 0, 1, 1], [], []>} : vector<32x8xf32>, vector<8x32xf32>, vector<32x32xf32> -> vector<32x32xf32>
    %185 = arith.addf %141, %184 : vector<32x32xf32>
    %c0_142 = arith.constant 0 : index
    %c0_143 = arith.constant 0 : index
    %186 = vector.load %arg5[%c0_142, %c0_143] : memref<1x32xf32, #tpu.memory_space<vmem>>, vector<1x32xf32>
    %187 = vector.broadcast %186 : vector<1x32xf32> to vector<32x32xf32>
    %188 = arith.addf %185, %187 : vector<32x32xf32>
    %189 = arith.addf %188, %1 : vector<32x32xf32>
    %190 = vector.shape_cast %189 : vector<32x32xf32> to vector<4x8x32xf32>
    %c0_144 = arith.constant 0 : index
    %c0_145 = arith.constant 0 : index
    %c0_146 = arith.constant 0 : index
    %191 = vector.load %arg6[%c0_144, %c0_145, %c0_146] : memref<4x8x32xf32, #tpu.memory_space<vmem>>, vector<4x8x32xf32>
    tpu.vector_store %arg6[%c0_144, %c0_145, %c0_146], %190 {strides = array<i32>} : memref<4x8x32xf32, #tpu.memory_space<vmem>>, vector<4x8x32xf32>,
    %cst_147 = arith.constant 2.500000e-01 : f32
    %192 = vector.broadcast %cst_147 : f32 to vector<4x8x8xf32>
    %193 = arith.mulf %179, %192 : vector<4x8x8xf32>
    %c0_148 = arith.constant 0 : index
    %c0_149 = arith.constant 0 : index
    %c0_150 = arith.constant 0 : index
    %194 = vector.load %arg7[%c0_148, %c0_149, %c0_150] : memref<4x8x8xf32, #tpu.memory_space<vmem>>, vector<4x8x8xf32>
    tpu.vector_store %arg7[%c0_148, %c0_149, %c0_150], %193 {strides = array<i32>} : memref<4x8x8xf32, #tpu.memory_space<vmem>>, vector<4x8x8xf32>,
    return
  }
  func.func @transform_0(%arg0: i32) -> (i32, i32, i32) {
    %c0_i32 = arith.constant 0 : i32
    %c0_i32_0 = arith.constant 0 : i32
    %c0_i32_1 = arith.constant 0 : i32
    return %arg0, %c0_i32, %c0_i32_0 : i32, i32, i32
  }
  func.func @transform_1(%arg0: i32) -> (i32, i32, i32, i32) {
    %c0_i32 = arith.constant 0 : i32
    %c0_i32_0 = arith.constant 0 : i32
    %c0_i32_1 = arith.constant 0 : i32
    %c0_i32_2 = arith.constant 0 : i32
    %c0_i32_3 = arith.constant 0 : i32
    return %c0_i32, %c0_i32_0, %c0_i32_1, %c0_i32_2 : i32, i32, i32, i32
  }
  func.func @transform_2(%arg0: i32) -> (i32, i32, i32, i32) {
    %c0_i32 = arith.constant 0 : i32
    %c0_i32_0 = arith.constant 0 : i32
    %c0_i32_1 = arith.constant 0 : i32
    %c0_i32_2 = arith.constant 0 : i32
    %c0_i32_3 = arith.constant 0 : i32
    return %c0_i32, %c0_i32_0, %c0_i32_1, %c0_i32_2 : i32, i32, i32, i32
  }
  func.func @transform_3(%arg0: i32) -> (i32, i32, i32) {
    %c0_i32 = arith.constant 0 : i32
    %c0_i32_0 = arith.constant 0 : i32
    %c0_i32_1 = arith.constant 0 : i32
    %c0_i32_2 = arith.constant 0 : i32
    return %c0_i32, %c0_i32_0, %c0_i32_1 : i32, i32, i32
  }
  func.func @transform_4(%arg0: i32) -> (i32, i32) {
    %c0_i32 = arith.constant 0 : i32
    %c0_i32_0 = arith.constant 0 : i32
    %c0_i32_1 = arith.constant 0 : i32
    return %c0_i32, %c0_i32_0 : i32, i32
  }
  func.func @transform_5(%arg0: i32) -> (i32, i32, i32) {
    %c0_i32 = arith.constant 0 : i32
    %c0_i32_0 = arith.constant 0 : i32
    %c0_i32_1 = arith.constant 0 : i32
    return %arg0, %c0_i32, %c0_i32_0 : i32, i32, i32
  }
  func.func @transform_6(%arg0: i32) -> (i32, i32, i32) {
    %c0_i32 = arith.constant 0 : i32
    %c0_i32_0 = arith.constant 0 : i32
    %c0_i32_1 = arith.constant 0 : i32
    return %arg0, %c0_i32, %c0_i32_0 : i32, i32, i32
  }
}

</mosaic_0001>

<llo_original>
// kernel: tpu_custom_call.1
$region0: #{tpu_custom_call.1}
  #allocation0 [shape = 'u32[]', space=smem, size = 0x4, offset = 0x4, fixed_abs, tag = 'smem constant byte address 0x4 - core index']
  #allocation1 [shape = 'u32[144,128]{1,0:T(1,128)}', space=vmem, size = 0x12000, scoped, tag = 'internal scratch']
  %s0 = inlined_call_operand.vmem [shape: f32[8,8,32], index: 0, kind: input, shape index: {}]
  %s1 = inlined_call_operand.vmem [shape: f32[3,4,32,8], index: 1, kind: input, shape index: {}]
  %s2 = inlined_call_operand.vmem [shape: f32[3,4,1,8], index: 2, kind: input, shape index: {}]
  %s3 = inlined_call_operand.vmem [shape: f32[4,8,32], index: 3, kind: input, shape index: {}]
  %s4 = inlined_call_operand.vmem [shape: f32[1,32], index: 4, kind: input, shape index: {}]
  %s5 = inlined_call_operand.hbm [shape: f32[8,8,32], index: 5, kind: output, shape index: {0}]
  %s6 = inlined_call_operand.hbm [shape: f32[8,8,8], index: 6, kind: output, shape index: {1}]
  %7 = xla_tuple %s5, %s6
  %s8 = sld [smem:[#allocation0]]
  $region61: #{tpu_custom_call.1} parent=0
    _
  %s10 = ssub.s32 1, %s8
  %s11 = scalar_select 0, %s10, %s8
  $region1: #{tpu_custom_call.1} parent=0
    #allocation2 [shape = 'u8[32768]{0}', space=vmem, size = 0x8000, scoped, tag = 'output window, operand 0']
    #allocation3 [shape = 's32[2]{0}', space=sflag, size = 0x8, scoped, tag = 'scoped memory for tpu_custom_call.1']
    #allocation4 [shape = 'u8[32768]{0}', space=vmem, size = 0x8000, scoped, tag = 'output window, operand 1']
    #allocation5 [shape = 's32[2]{0}', space=sflag, size = 0x8, scoped, tag = 'scoped memory for tpu_custom_call.1']
    %12 = vsyncpa [#allocation3], 0
    %s13 = scalar_lea.sflag [#allocation3], 1
    %14 = vsyncpa %s13, 0
    %15 = vsyncpa [#allocation5], 0
    %s16 = scalar_lea.sflag [#allocation5], 1
    %17 = vsyncpa %s16, 0
    loop: start=0, step=1, limit=4
    $region2: #{tpu_custom_call.1} parent=1 // loop_pre_header
      _
    $region3: #{tpu_custom_call.1} parent=1 // loop_header
      %s19 = sphi 0, %s23
      %p20 = scmp.ge.s32.totalorder %s19, 4
      %s29 = sphi 0, %s31
      %s32 = sphi 0, %s29
      %s33 = sphi 0, %s32
      %s49 = sphi 0, %s33
      %s53 = sphi 0, %s53
      %s55 = sphi 0, %s53
      %s56 = sphi 0, %s55
      %s70 = sphi 0, %s56
      %s74 = sphi 0, %s74
      %s76 = sphi 0, %s74
      %s77 = sphi 0, %s76
      %s91 = sphi 0, %s77
      %s95 = sphi 0, %s95
      %s97 = sphi 0, %s95
      %s98 = sphi 0, %s97
      %s112 = sphi 0, %s98
      %s116 = sphi 0, %s116
      %s118 = sphi 0, %s116
      %s119 = sphi 0, %s118
      %s133 = sphi 0, %s119
      %s139 = sphi 0, %s141
      %s142 = sphi 0, %s139
      %s143 = sphi 0, %s142
      %s159 = sphi 0, %s143
      %s165 = sphi 0, %s167
      %s168 = sphi 0, %s165
      %s169 = sphi 0, %s168
      %s185 = sphi 0, %s169
    $region4: #{tpu_custom_call.1} parent=1 // loop_header_branch
      %22 = sbr.rel (%p20) target = $region8
    $region5: #{tpu_custom_call.1} parent=1 // loop_body
      %s24 = ssub.s32 %s19, 1
      %s25 = ssub.s32 %s19, 2
      %s26 = sadd.s32 %s19, 1
      %s27 = ssub.s32 %s19, %s26
      %p28 = scmp.eq.s32.totalorder %s27, 0
      %s30 = sadd.s32 %s29, 1
      %s31 = scalar_select %p28, %s29, %s30
      %p34 = pneg %p28
      %p35 = scmp.eq.s32.totalorder %s19, 1
      %p36 = por %p34, %p35
      %p37 = scmp.ne.s32.totalorder %s29, %s32
      %p38 = scmp.eq.s32.totalorder %s19, 0
      %p39 = por %p37, %p38
      %p40 = scmp.ne.s32.totalorder %s29, %s32
      %p41 = scmp.eq.s32.totalorder %s24, 1
      %p42 = por %p40, %p41
      %p43 = scmp.ne.s32.totalorder %s32, %s33
      %p44 = scmp.eq.s32.totalorder %s24, 0
      %p45 = por %p43, %p44
      %p46 = scmp.ne.s32.totalorder %s32, %s33
      %p47 = scmp.eq.s32.totalorder %s25, 1
      %p48 = por %p46, %p47
      %p50 = scmp.ne.s32.totalorder %s33, %s49
      %p51 = scmp.eq.s32.totalorder %s25, 0
      %p52 = por %p50, %p51
      %s54 = sadd.s32 %s53, 1
      %p57 = scmp.eq.s32.totalorder %s19, 1
      %p58 = scmp.ne.s32.totalorder %s53, %s55
      %p59 = scmp.eq.s32.totalorder %s19, 0
      %p60 = por %p58, %p59
      %p61 = scmp.ne.s32.totalorder %s53, %s55
      %p62 = scmp.eq.s32.totalorder %s24, 1
      %p63 = por %p61, %p62
      %p64 = scmp.ne.s32.totalorder %s55, %s56
      %p65 = scmp.eq.s32.totalorder %s24, 0
      %p66 = por %p64, %p65
      %p67 = scmp.ne.s32.totalorder %s55, %s56
      %p68 = scmp.eq.s32.totalorder %s25, 1
      %p69 = por %p67, %p68
      %p71 = scmp.ne.s32.totalorder %s56, %s70
      %p72 = scmp.eq.s32.totalorder %s25, 0
      %p73 = por %p71, %p72
      %s75 = sadd.s32 %s74, 1
      %p78 = scmp.eq.s32.totalorder %s19, 1
      %p79 = scmp.ne.s32.totalorder %s74, %s76
      %p80 = scmp.eq.s32.totalorder %s19, 0
      %p81 = por %p79, %p80
      %p82 = scmp.ne.s32.totalorder %s74, %s76
      %p83 = scmp.eq.s32.totalorder %s24, 1
      %p84 = por %p82, %p83
      %p85 = scmp.ne.s32.totalorder %s76, %s77
      %p86 = scmp.eq.s32.totalorder %s24, 0
      %p87 = por %p85, %p86
      %p88 = scmp.ne.s32.totalorder %s76, %s77
      %p89 = scmp.eq.s32.totalorder %s25, 1
      %p90 = por %p88, %p89
      %p92 = scmp.ne.s32.totalorder %s77, %s91
      %p93 = scmp.eq.s32.totalorder %s25, 0
      %p94 = por %p92, %p93
      %s96 = sadd.s32 %s95, 1
      %p99 = scmp.eq.s32.totalorder %s19, 1
      %p100 = scmp.ne.s32.totalorder %s95, %s97
      %p101 = scmp.eq.s32.totalorder %s19, 0
      %p102 = por %p100, %p101
      %p103 = scmp.ne.s32.totalorder %s95, %s97
      %p104 = scmp.eq.s32.totalorder %s24, 1
      %p105 = por %p103, %p104
      %p106 = scmp.ne.s32.totalorder %s97, %s98
      %p107 = scmp.eq.s32.totalorder %s24, 0
      %p108 = por %p106, %p107
      %p109 = scmp.ne.s32.totalorder %s97, %s98
      %p110 = scmp.eq.s32.totalorder %s25, 1
      %p111 = por %p109, %p110
      %p113 = scmp.ne.s32.totalorder %s98, %s112
      %p114 = scmp.eq.s32.totalorder %s25, 0
      %p115 = por %p113, %p114
      %s117 = sadd.s32 %s116, 1
      %p120 = scmp.eq.s32.totalorder %s19, 1
      %p121 = scmp.ne.s32.totalorder %s116, %s118
      %p122 = scmp.eq.s32.totalorder %s19, 0
      %p123 = por %p121, %p122
      %p124 = scmp.ne.s32.totalorder %s116, %s118
      %p125 = scmp.eq.s32.totalorder %s24, 1
      %p126 = por %p124, %p125
      %p127 = scmp.ne.s32.totalorder %s118, %s119
      %p128 = scmp.eq.s32.totalorder %s24, 0
      %p129 = por %p127, %p128
      %p130 = scmp.ne.s32.totalorder %s118, %s119
      %p131 = scmp.eq.s32.totalorder %s25, 1
      %p132 = por %p130, %p131
      %p134 = scmp.ne.s32.totalorder %s119, %s133
      %p135 = scmp.eq.s32.totalorder %s25, 0
      %p136 = por %p134, %p135
      %s137 = ssub.s32 %s19, %s26
      %p138 = scmp.eq.s32.totalorder %s137, 0
      %s140 = sadd.s32 %s139, 1
      %s141 = scalar_select %p138, %s139, %s140
      %p144 = pneg %p138
      %p145 = scmp.eq.s32.totalorder %s19, 1
      %p146 = por %p144, %p145
      %p147 = scmp.ne.s32.totalorder %s139, %s142
      %p148 = scmp.eq.s32.totalorder %s19, 0
      %p149 = por %p147, %p148
      %p150 = scmp.ne.s32.totalorder %s139, %s142
      %p151 = scmp.eq.s32.totalorder %s24, 1
      %p152 = por %p150, %p151
      %p153 = scmp.ne.s32.totalorder %s142, %s143
      %p154 = scmp.eq.s32.totalorder %s24, 0
      %p155 = por %p153, %p154
      %p156 = scmp.ne.s32.totalorder %s142, %s143
      %p157 = scmp.eq.s32.totalorder %s25, 1
      %p158 = por %p156, %p157
      %p160 = scmp.ne.s32.totalorder %s143, %s159
      %p161 = scmp.eq.s32.totalorder %s25, 0
      %p162 = por %p160, %p161
      %s163 = ssub.s32 %s19, %s26
      %p164 = scmp.eq.s32.totalorder %s163, 0
      %s166 = sadd.s32 %s165, 1
      %s167 = scalar_select %p164, %s165, %s166
      %p170 = pneg %p164
      %p171 = scmp.eq.s32.totalorder %s19, 1
      %p172 = por %p170, %p171
      %p173 = scmp.ne.s32.totalorder %s165, %s168
      %p174 = scmp.eq.s32.totalorder %s19, 0
      %p175 = por %p173, %p174
      %p176 = scmp.ne.s32.totalorder %s165, %s168
      %p177 = scmp.eq.s32.totalorder %s24, 1
      %p178 = por %p176, %p177
      %p179 = scmp.ne.s32.totalorder %s168, %s169
      %p180 = scmp.eq.s32.totalorder %s24, 0
      %p181 = por %p179, %p180
      %p182 = scmp.ne.s32.totalorder %s168, %s169
      %p183 = scmp.eq.s32.totalorder %s25, 1
      %p184 = por %p182, %p183
      %p186 = scmp.ne.s32.totalorder %s169, %s185
      %p187 = scmp.eq.s32.totalorder %s25, 0
      %p188 = por %p186, %p187
      %p189 = scmp.le.s32.totalorder 1, %s19
      %p190 = scmp.lt.s32.totalorder %s19, 3
      %p191 = pnand %p189, %p190
      %p192 = pneg %p191
      // Predicated region
      $region9: #{tpu_custom_call.1} parent=5 // pred_check
        _
      $region10: #{tpu_custom_call.1} parent=5 // pred_check_branch
        %194 = sbr.rel (%p191) target = $region12
      $region11: #{tpu_custom_call.1} parent=5 // pred_region
        %s195 = ssub.s32 %s19, 1
        // Predicated region
        $region13: #{tpu_custom_call.1} parent=11 // pred_check
          %p196 = pneg %p66
        $region14: #{tpu_custom_call.1} parent=11 // pred_check_branch
          %198 = sbr.rel (%p196) target = $region16
        $region15: #{tpu_custom_call.1} parent=11 // pred_region
          _
        $region16: #{tpu_custom_call.1} parent=11 // pred_fallthru
          _
        // Predicated region
        $region17: #{tpu_custom_call.1} parent=11 // pred_check
          %p199 = pneg %p87
        $region18: #{tpu_custom_call.1} parent=11 // pred_check_branch
          %201 = sbr.rel (%p199) target = $region20
        $region19: #{tpu_custom_call.1} parent=11 // pred_region
          _
        $region20: #{tpu_custom_call.1} parent=11 // pred_fallthru
          _
        // Predicated region
        $region21: #{tpu_custom_call.1} parent=11 // pred_check
          %p202 = pneg %p108
        $region22: #{tpu_custom_call.1} parent=11 // pred_check_branch
          %204 = sbr.rel (%p202) target = $region24
        $region23: #{tpu_custom_call.1} parent=11 // pred_region
          _
        $region24: #{tpu_custom_call.1} parent=11 // pred_fallthru
          _
        // Predicated region
        $region25: #{tpu_custom_call.1} parent=11 // pred_check
          %p205 = pneg %p129
        $region26: #{tpu_custom_call.1} parent=11 // pred_check_branch
          %207 = sbr.rel (%p205) target = $region28
        $region27: #{tpu_custom_call.1} parent=11 // pred_region
          _
        $region28: #{tpu_custom_call.1} parent=11 // pred_fallthru
          _
      $region12: #{tpu_custom_call.1} parent=5 // pred_fallthru
        _
      %p208 = scmp.lt.s32.totalorder %s19, 2
      // Predicated region
      $region29: #{tpu_custom_call.1} parent=5 // pred_check
        %p209 = pneg %p208
      $region30: #{tpu_custom_call.1} parent=5 // pred_check_branch
        %211 = sbr.rel (%p209) target = $region32
      $region31: #{tpu_custom_call.1} parent=5 // pred_region
        // Predicated region
        $region33: #{tpu_custom_call.1} parent=31 // pred_check
          %p212 = pneg %p39
        $region34: #{tpu_custom_call.1} parent=31 // pred_check_branch
          %214 = sbr.rel (%p212) target = $region36
        $region35: #{tpu_custom_call.1} parent=31 // pred_region
          %s215 = smul.u32 4, %s19
          %p216 = scmp.lt.s32.totalorder %s215, 7
          %s217 = scalar_select %p216, %s215, 7
          %s218 = smul.addr %s217, 8
          %s219 = scalar_lea.vmem %s0, %s218
          %s220 = smul.u32 4, %s19
        $region36: #{tpu_custom_call.1} parent=31 // pred_fallthru
          _
      $region32: #{tpu_custom_call.1} parent=5 // pred_fallthru
        _
      %p221 = scmp.le.s32.totalorder 1, %s19
      %p222 = scmp.lt.s32.totalorder %s19, 3
      %p223 = pnand %p221, %p222
      %p224 = pneg %p223
      // Predicated region
      $region37: #{tpu_custom_call.1} parent=5 // pred_check
        _
      $region38: #{tpu_custom_call.1} parent=5 // pred_check_branch
        %226 = sbr.rel (%p223) target = $region40
      $region39: #{tpu_custom_call.1} parent=5 // pred_region
        %s227 = ssub.s32 %s19, 1
        %s228 = smul.u32 4, %s24
        %p229 = scmp.lt.s32.totalorder %s228, 7
        %s230 = scalar_select %p229, %s228, 7
        %s231 = smul.addr %s230, 8
        %s232 = scalar_lea.vmem %s0, %s231
        %p233 = pneg %p45
        %p234 = pneg %p42
        %p235 = pneg %p66
        %p236 = pneg %p63
        %p237 = pneg %p87
        %p238 = pneg %p84
        %p239 = pneg %p108
        %p240 = pneg %p105
        %p241 = pneg %p129
        %p242 = pneg %p126
        %p243 = pneg %p155
        %p244 = pneg %p152
        %s245 = sand.u32 %s142, 1
        %s246 = scalar_lea.sflag [#allocation3], %s245
        %s247 = sand.u32 %s142, 1
        %s248 = smul.addr %s247, 32
        %s249 = scalar_lea.vmem [#allocation2], %s248
        %p250 = pneg %p181
        %p251 = pneg %p178
        %s252 = sand.u32 %s168, 1
        %s253 = scalar_lea.sflag [#allocation5], %s252
        %s254 = sand.u32 %s168, 1
        %s255 = smul.addr %s254, 32
        %s256 = scalar_lea.vmem [#allocation4], %s255
        %s257 = smul.u32 4, %s24
        %p258 = scmp.lt.s32.totalorder %s257, 7
        %s259 = scalar_select %p258, %s257, 7
        %s260 = smul.addr %s259, 8
        %s261 = scalar_lea.vmem %s0, %s260
        %s262 = smul.u32 4, %s24
        %s263 = smul.u32 4, %s24
        %s264 = smul.u32 4, %s24
        %v265 = vld [vmem:[%s261] sm:$0xff]
        %v266 = vld [vmem:[%s261 + $0x8] sm:$0xff]
        %v267 = vld [vmem:[%s261 + $0x10] sm:$0xff]
        %v268 = vld [vmem:[%s261 + $0x18] sm:$0xff]
        %v269 = vlaneseq
        %v270 = vshrl.u32 %v269, 7
        %v271 = vlaneseq
        %v272 = vand.u32 %v271, 127
        %vm273 = vcmp.gt.s32.totalorder %v272, %v270
        %v274 = vsel %vm273, -inf, 0.0
        %v275 = vld [vmem:[%s1] sm:$0xff]
        %v276 = vld [vmem:[%s1 + $0x8] sm:$0xff]
        %v277 = vld [vmem:[%s1 + $0x10] sm:$0xff]
        %v278 = vld [vmem:[%s1 + $0x18] sm:$0xff]
        %s279 = scalar_lea.vmem %s1, 128
        %v280 = vld [vmem:[%s279] sm:$0xff]
        %v281 = vld [vmem:[%s279 + $0x8] sm:$0xff]
        %v282 = vld [vmem:[%s279 + $0x10] sm:$0xff]
        %v283 = vld [vmem:[%s279 + $0x18] sm:$0xff]
        %s284 = scalar_lea.vmem %s1, 256
        %v285 = vld [vmem:[%s284] sm:$0xff]
        %v286 = vld [vmem:[%s284 + $0x8] sm:$0xff]
        %v287 = vld [vmem:[%s284 + $0x10] sm:$0xff]
        %v288 = vld [vmem:[%s284 + $0x18] sm:$0xff]
        %v289 = vld [vmem:[%s2] sm:$0x1]
        %s290 = scalar_lea.vmem %s2, 4
        %v291 = vld [vmem:[%s290] sm:$0x1]
        %s292 = scalar_lea.vmem %s2, 8
        %v293 = vld [vmem:[%s292] sm:$0x1]
        %v295 = vlaneseq
        %v296 = vshrl.u32 %v295, 7
        %v297 = vsub.s32 0, %v296
        %v298 = vrot.slane %v289, %v297
        %vm300 = vcmask 261120
        %v302 = vsel %vm300, %v265, 0
        %v305 = vsel %vm300, %v266, 0
        %v308 = vsel %vm300, %v267, 0
        %v311 = vsel %vm300, %v268, 0
        %313 = vmatprep.subr.mxu0 0.0
        %314 = vmatpush1.msra.mxu0 0.0
        %315 = vmatprep.subr.mxu0 0.0
        %316 = vmatpush1.msra.mxu0 0.0
        %317 = vmatprep.subr.mxu0 0.0
        %318 = vmatpush1.msra.mxu0 0.0
        %319 = vmatprep.subr.mxu0 0.0
        %320 = vmatpush1.msra.mxu0 0.0
        %321 = vmatprep.subr.mxu0 0.0
        %322 = vmatpush1.msra.mxu0 0.0
        %323 = vmatprep.subr.mxu0 0.0
        %324 = vmatpush1.msra.mxu0 0.0
        %325 = vmatprep.subr.mxu0 0.0
        %326 = vmatpush1.msra.mxu0 0.0
        %327 = vmatprep.subr.mxu0 0.0
        %328 = vmatpush1.msra.mxu0 0.0
        %329 = vmatprep.subr.mxu0 0.0
        %330 = vmatpush1.msra.mxu0 0.0
        %331 = vmatprep.subr.mxu0 0.0
        %332 = vmatpush1.msra.mxu0 0.0
        %333 = vmatprep.subr.mxu0 0.0
        %334 = vmatpush1.msra.mxu0 0.0
        %335 = vmatprep.subr.mxu0 0.0
        %336 = vmatpush1.msra.mxu0 0.0
        %337 = vmatprep.subr.mxu0 0.0
        %338 = vmatpush1.msra.mxu0 %v278
        %339 = vmatprep.subr.mxu0 0.0
        %340 = vmatpush1.msra.mxu0 %v277
        %341 = vmatprep.subr.mxu0 0.0
        %342 = vmatpush1.msra.mxu0 %v276
        %343 = vmatprep.subr.mxu0 0.0
        %344 = vmatpush1.msra.mxu0 %v275
        %345 = vmatprep.subr.mxu0 0.0
        %346 = vmatpush2.msra.mxu0 0.0
        %347 = vmatprep.subr.mxu0 0.0
        %348 = vmatpush2.msra.mxu0 0.0
        %349 = vmatprep.subr.mxu0 0.0
        %350 = vmatpush2.msra.mxu0 0.0
        %351 = vmatprep.subr.mxu0 0.0
        %352 = vmatpush2.msra.mxu0 0.0
        %353 = vmatprep.subr.mxu0 0.0
        %354 = vmatpush2.msra.mxu0 0.0
        %355 = vmatprep.subr.mxu0 0.0
        %356 = vmatpush2.msra.mxu0 0.0
        %357 = vmatprep.subr.mxu0 0.0
        %358 = vmatpush2.msra.mxu0 0.0
        %359 = vmatprep.subr.mxu0 0.0
        %360 = vmatpush2.msra.mxu0 0.0
        %361 = vmatprep.subr.mxu0 0.0
        %362 = vmatpush2.msra.mxu0 0.0
        %363 = vmatprep.subr.mxu0 0.0
        %364 = vmatpush2.msra.mxu0 0.0
        %365 = vmatprep.subr.mxu0 0.0
        %366 = vmatpush2.msra.mxu0 0.0
        %367 = vmatprep.subr.mxu0 0.0
        %368 = vmatpush2.msra.mxu0 0.0
        %369 = vmatprep.subr.mxu0 0.0
        %370 = vmatpush2.msra.mxu0 0.0
        %371 = vmatprep.subr.mxu0 0.0
        %372 = vmatpush2.msra.mxu0 0.0
        %373 = vmatprep.subr.mxu0 0.0
        %374 = vmatpush2.msra.mxu0 0.0
        %375 = vmatprep.subr.mxu0 0.0
        %376 = vmatpush2.msra.mxu0 0.0
        %377 = vmatprep.mubr.f32.mxu0 0.0
        %378 = vmatmul.mubr.f32.gmra.mxu0 %v302
        %v379 = vpop.f32.mrf.mxu0
        %v380 = vadd.f32 %v298, %v379
        %v381 = vpop.f32.mrf.mxu0
        %382 = vmatprep.mubr.f32.mxu0 0.0
        %383 = vmatmul.mubr.f32.gmra.mxu0 %v305
        %v384 = vpop.f32.mrf.mxu0
        %v385 = vadd.f32 %v298, %v384
        %v386 = vpop.f32.mrf.mxu0
        %387 = vmatprep.mubr.f32.mxu0 0.0
        %388 = vmatmul.mubr.f32.gmra.mxu0 %v308
        %v389 = vpop.f32.mrf.mxu0
        %v390 = vadd.f32 %v298, %v389
        %v391 = vpop.f32.mrf.mxu0
        %392 = vmatprep.mubr.f32.mxu0 0.0
        %393 = vmatmul.mubr.f32.gmra.mxu0 %v311
        %v394 = vpop.f32.mrf.mxu0
        %v395 = vadd.f32 %v298, %v394
        %v396 = vpop.f32.mrf.mxu0
        %397 = vdwg.mxu0
        %v399 = vlaneseq
        %v400 = vshrl.u32 %v399, 7
        %v401 = vsub.s32 0, %v400
        %v402 = vrot.slane %v291, %v401
        %404 = vmatprep.subr.mxu0 0.0
        %405 = vmatpush1.msra.mxu0 0.0
        %406 = vmatprep.subr.mxu0 0.0
        %407 = vmatpush1.msra.mxu0 0.0
        %408 = vmatprep.subr.mxu0 0.0
        %409 = vmatpush1.msra.mxu0 0.0
        %410 = vmatprep.subr.mxu0 0.0
        %411 = vmatpush1.msra.mxu0 0.0
        %412 = vmatprep.subr.mxu0 0.0
        %413 = vmatpush1.msra.mxu0 0.0
        %414 = vmatprep.subr.mxu0 0.0
        %415 = vmatpush1.msra.mxu0 0.0
        %416 = vmatprep.subr.mxu0 0.0
        %417 = vmatpush1.msra.mxu0 0.0
        %418 = vmatprep.subr.mxu0 0.0
        %419 = vmatpush1.msra.mxu0 0.0
        %420 = vmatprep.subr.mxu0 0.0
        %421 = vmatpush1.msra.mxu0 0.0
        %422 = vmatprep.subr.mxu0 0.0
        %423 = vmatpush1.msra.mxu0 0.0
        %424 = vmatprep.subr.mxu0 0.0
        %425 = vmatpush1.msra.mxu0 0.0
        %426 = vmatprep.subr.mxu0 0.0
        %427 = vmatpush1.msra.mxu0 0.0
        %428 = vmatprep.subr.mxu0 0.0
        %429 = vmatpush1.msra.mxu0 %v283
        %430 = vmatprep.subr.mxu0 0.0
        %431 = vmatpush1.msra.mxu0 %v282
        %432 = vmatprep.subr.mxu0 0.0
        %433 = vmatpush1.msra.mxu0 %v281
        %434 = vmatprep.subr.mxu0 0.0
        %435 = vmatpush1.msra.mxu0 %v280
        %436 = vmatprep.subr.mxu0 0.0
        %437 = vmatpush2.msra.mxu0 0.0
        %438 = vmatprep.subr.mxu0 0.0
        %439 = vmatpush2.msra.mxu0 0.0
        %440 = vmatprep.subr.mxu0 0.0
        %441 = vmatpush2.msra.mxu0 0.0
        %442 = vmatprep.subr.mxu0 0.0
        %443 = vmatpush2.msra.mxu0 0.0
        %444 = vmatprep.subr.mxu0 0.0
        %445 = vmatpush2.msra.mxu0 0.0
        %446 = vmatprep.subr.mxu0 0.0
        %447 = vmatpush2.msra.mxu0 0.0
        %448 = vmatprep.subr.mxu0 0.0
        %449 = vmatpush2.msra.mxu0 0.0
        %450 = vmatprep.subr.mxu0 0.0
        %451 = vmatpush2.msra.mxu0 0.0
        %452 = vmatprep.subr.mxu0 0.0
        %453 = vmatpush2.msra.mxu0 0.0
        %454 = vmatprep.subr.mxu0 0.0
        %455 = vmatpush2.msra.mxu0 0.0
        %456 = vmatprep.subr.mxu0 0.0
        %457 = vmatpush2.msra.mxu0 0.0
        %458 = vmatprep.subr.mxu0 0.0
        %459 = vmatpush2.msra.mxu0 0.0
        %460 = vmatprep.subr.mxu0 0.0
        %461 = vmatpush2.msra.mxu0 0.0
        %462 = vmatprep.subr.mxu0 0.0
        %463 = vmatpush2.msra.mxu0 0.0
        %464 = vmatprep.subr.mxu0 0.0
        %465 = vmatpush2.msra.mxu0 0.0
        %466 = vmatprep.subr.mxu0 0.0
        %467 = vmatpush2.msra.mxu0 0.0
        %468 = vmatprep.mubr.f32.mxu0 0.0
        %469 = vmatmul.mubr.f32.gmra.mxu0 %v302
        %v470 = vpop.f32.mrf.mxu0
        %v471 = vadd.f32 %v402, %v470
        %v472 = vpop.f32.mrf.mxu0
        %473 = vmatprep.mubr.f32.mxu0 0.0
        %474 = vmatmul.mubr.f32.gmra.mxu0 %v305
        %v475 = vpop.f32.mrf.mxu0
        %v476 = vadd.f32 %v402, %v475
        %v477 = vpop.f32.mrf.mxu0
        %478 = vmatprep.mubr.f32.mxu0 0.0
        %479 = vmatmul.mubr.f32.gmra.mxu0 %v308
        %v480 = vpop.f32.mrf.mxu0
        %v481 = vadd.f32 %v402, %v480
        %v482 = vpop.f32.mrf.mxu0
        %483 = vmatprep.mubr.f32.mxu0 0.0
        %484 = vmatmul.mubr.f32.gmra.mxu0 %v311
        %v485 = vpop.f32.mrf.mxu0
        %v486 = vadd.f32 %v402, %v485
        %v487 = vpop.f32.mrf.mxu0
        %488 = vdwg.mxu0
        %v490 = vlaneseq
        %v491 = vshrl.u32 %v490, 7
        %v492 = vsub.s32 0, %v491
        %v493 = vrot.slane %v293, %v492
        %495 = vmatprep.subr.mxu0 0.0
        %496 = vmatpush1.msra.mxu0 0.0
        %497 = vmatprep.subr.mxu0 0.0
        %498 = vmatpush1.msra.mxu0 0.0
        %499 = vmatprep.subr.mxu0 0.0
        %500 = vmatpush1.msra.mxu0 0.0
        %501 = vmatprep.subr.mxu0 0.0
        %502 = vmatpush1.msra.mxu0 0.0
        %503 = vmatprep.subr.mxu0 0.0
        %504 = vmatpush1.msra.mxu0 0.0
        %505 = vmatprep.subr.mxu0 0.0
        %506 = vmatpush1.msra.mxu0 0.0
        %507 = vmatprep.subr.mxu0 0.0
        %508 = vmatpush1.msra.mxu0 0.0
        %509 = vmatprep.subr.mxu0 0.0
        %510 = vmatpush1.msra.mxu0 0.0
        %511 = vmatprep.subr.mxu0 0.0
        %512 = vmatpush1.msra.mxu0 0.0
        %513 = vmatprep.subr.mxu0 0.0
        %514 = vmatpush1.msra.mxu0 0.0
        %515 = vmatprep.subr.mxu0 0.0
        %516 = vmatpush1.msra.mxu0 0.0
        %517 = vmatprep.subr.mxu0 0.0
        %518 = vmatpush1.msra.mxu0 0.0
        %519 = vmatprep.subr.mxu0 0.0
        %520 = vmatpush1.msra.mxu0 %v288
        %521 = vmatprep.subr.mxu0 0.0
        %522 = vmatpush1.msra.mxu0 %v287
        %523 = vmatprep.subr.mxu0 0.0
        %524 = vmatpush1.msra.mxu0 %v286
        %525 = vmatprep.subr.mxu0 0.0
        %526 = vmatpush1.msra.mxu0 %v285
        %527 = vmatprep.subr.mxu0 0.0
        %528 = vmatpush2.msra.mxu0 0.0
        %529 = vmatprep.subr.mxu0 0.0
        %530 = vmatpush2.msra.mxu0 0.0
        %531 = vmatprep.subr.mxu0 0.0
        %532 = vmatpush2.msra.mxu0 0.0
        %533 = vmatprep.subr.mxu0 0.0
        %534 = vmatpush2.msra.mxu0 0.0
        %535 = vmatprep.subr.mxu0 0.0
        %536 = vmatpush2.msra.mxu0 0.0
        %537 = vmatprep.subr.mxu0 0.0
        %538 = vmatpush2.msra.mxu0 0.0
        %539 = vmatprep.subr.mxu0 0.0
        %540 = vmatpush2.msra.mxu0 0.0
        %541 = vmatprep.subr.mxu0 0.0
        %542 = vmatpush2.msra.mxu0 0.0
        %543 = vmatprep.subr.mxu0 0.0
        %544 = vmatpush2.msra.mxu0 0.0
        %545 = vmatprep.subr.mxu0 0.0
        %546 = vmatpush2.msra.mxu0 0.0
        %547 = vmatprep.subr.mxu0 0.0
        %548 = vmatpush2.msra.mxu0 0.0
        %549 = vmatprep.subr.mxu0 0.0
        %550 = vmatpush2.msra.mxu0 0.0
        %551 = vmatprep.subr.mxu0 0.0
        %552 = vmatpush2.msra.mxu0 0.0
        %553 = vmatprep.subr.mxu0 0.0
        %554 = vmatpush2.msra.mxu0 0.0
        %555 = vmatprep.subr.mxu0 0.0
        %556 = vmatpush2.msra.mxu0 0.0
        %557 = vmatprep.subr.mxu0 0.0
        %558 = vmatpush2.msra.mxu0 0.0
        %559 = vmatprep.mubr.f32.mxu0 0.0
        %560 = vmatmul.mubr.f32.gmra.mxu0 %v302
        %v561 = vpop.f32.mrf.mxu0
        %v562 = vadd.f32 %v493, %v561
        %v563 = vpop.f32.mrf.mxu0
        %564 = vmatprep.mubr.f32.mxu0 0.0
        %565 = vmatmul.mubr.f32.gmra.mxu0 %v305
        %v566 = vpop.f32.mrf.mxu0
        %v567 = vadd.f32 %v493, %v566
        %v568 = vpop.f32.mrf.mxu0
        %569 = vmatprep.mubr.f32.mxu0 0.0
        %570 = vmatmul.mubr.f32.gmra.mxu0 %v308
        %v571 = vpop.f32.mrf.mxu0
        %v572 = vadd.f32 %v493, %v571
        %v573 = vpop.f32.mrf.mxu0
        %574 = vmatprep.mubr.f32.mxu0 0.0
        %575 = vmatmul.mubr.f32.gmra.mxu0 %v311
        %v576 = vpop.f32.mrf.mxu0
        %v577 = vadd.f32 %v493, %v576
        %v578 = vpop.f32.mrf.mxu0
        %579 = vdwg.mxu0
        %vm580 = vcmask 64512
        %v582 = vsel %vm580, %v380, 0
        %v585 = vsel %vm580, %v471, 0
        %587 = vmatprep.subr.mxu0 0.0
        %588 = vmatpush1.xpose.msra.mxu0 0.0
        %589 = vmatprep.subr.mxu0 0.0
        %590 = vmatpush1.xpose.msra.mxu0 0.0
        %591 = vmatprep.subr.mxu0 0.0
        %592 = vmatpush1.xpose.msra.mxu0 0.0
        %593 = vmatprep.subr.mxu0 0.0
        %594 = vmatpush1.xpose.msra.mxu0 0.0
        %595 = vmatprep.subr.mxu0 0.0
        %596 = vmatpush1.xpose.msra.mxu0 0.0
        %597 = vmatprep.subr.mxu0 0.0
        %598 = vmatpush1.xpose.msra.mxu0 0.0
        %599 = vmatprep.subr.mxu0 0.0
        %600 = vmatpush1.xpose.msra.mxu0 0.0
        %601 = vmatprep.subr.mxu0 0.0
        %602 = vmatpush1.xpose.msra.mxu0 0.0
        %603 = vmatprep.subr.mxu0 0.0
        %604 = vmatpush1.xpose.msra.mxu0 0.0
        %605 = vmatprep.subr.mxu0 0.0
        %606 = vmatpush1.xpose.msra.mxu0 0.0
        %607 = vmatprep.subr.mxu0 0.0
        %608 = vmatpush1.xpose.msra.mxu0 0.0
        %609 = vmatprep.subr.mxu0 0.0
        %610 = vmatpush1.xpose.msra.mxu0 0.0
        %611 = vmatprep.subr.mxu0 0.0
        %612 = vmatpush1.xpose.msra.mxu0 0.0
        %613 = vmatprep.subr.mxu0 0.0
        %614 = vmatpush1.xpose.msra.mxu0 0.0
        %615 = vmatprep.subr.mxu0 0.0
        %616 = vmatpush1.xpose.msra.mxu0 0.0
        %617 = vmatprep.subr.mxu0 0.0
        %618 = vmatpush1.xpose.msra.mxu0 %v585
        %619 = vmatprep.subr.mxu0 0.0
        %620 = vmatpush2.xpose.msra.mxu0 0.0
        %621 = vmatprep.subr.mxu0 0.0
        %622 = vmatpush2.xpose.msra.mxu0 0.0
        %623 = vmatprep.subr.mxu0 0.0
        %624 = vmatpush2.xpose.msra.mxu0 0.0
        %625 = vmatprep.subr.mxu0 0.0
        %626 = vmatpush2.xpose.msra.mxu0 0.0
        %627 = vmatprep.subr.mxu0 0.0
        %628 = vmatpush2.xpose.msra.mxu0 0.0
        %629 = vmatprep.subr.mxu0 0.0
        %630 = vmatpush2.xpose.msra.mxu0 0.0
        %631 = vmatprep.subr.mxu0 0.0
        %632 = vmatpush2.xpose.msra.mxu0 0.0
        %633 = vmatprep.subr.mxu0 0.0
        %634 = vmatpush2.xpose.msra.mxu0 0.0
        %635 = vmatprep.subr.mxu0 0.0
        %636 = vmatpush2.xpose.msra.mxu0 0.0
        %637 = vmatprep.subr.mxu0 0.0
        %638 = vmatpush2.xpose.msra.mxu0 0.0
        %639 = vmatprep.subr.mxu0 0.0
        %640 = vmatpush2.xpose.msra.mxu0 0.0
        %641 = vmatprep.subr.mxu0 0.0
        %642 = vmatpush2.xpose.msra.mxu0 0.0
        %643 = vmatprep.subr.mxu0 0.0
        %644 = vmatpush2.xpose.msra.mxu0 0.0
        %645 = vmatprep.subr.mxu0 0.0
        %646 = vmatpush2.xpose.msra.mxu0 0.0
        %647 = vmatprep.subr.mxu0 0.0
        %648 = vmatpush2.xpose.msra.mxu0 0.0
        %649 = vmatprep.subr.mxu0 0.0
        %650 = vmatpush2.xpose.msra.mxu0 0.0
        %651 = vmatprep.mubr.f32.mxu0 0.0
        %652 = vmatmul.mubr.f32.gmra.mxu0 %v582
        %v653 = vpop.f32.mrf.mxu0
        %v654 = vadd.f32 %v274, %v653
        %v655 = vpop.f32.mrf.mxu0
        %656 = vdwg.mxu0
        %v658 = vsel %vm580, %v385, 0
        %v661 = vsel %vm580, %v476, 0
        %663 = vmatprep.subr.mxu0 0.0
        %664 = vmatpush1.xpose.msra.mxu0 0.0
        %665 = vmatprep.subr.mxu0 0.0
        %666 = vmatpush1.xpose.msra.mxu0 0.0
        %667 = vmatprep.subr.mxu0 0.0
        %668 = vmatpush1.xpose.msra.mxu0 0.0
        %669 = vmatprep.subr.mxu0 0.0
        %670 = vmatpush1.xpose.msra.mxu0 0.0
        %671 = vmatprep.subr.mxu0 0.0
        %672 = vmatpush1.xpose.msra.mxu0 0.0
        %673 = vmatprep.subr.mxu0 0.0
        %674 = vmatpush1.xpose.msra.mxu0 0.0
        %675 = vmatprep.subr.mxu0 0.0
        %676 = vmatpush1.xpose.msra.mxu0 0.0
        %677 = vmatprep.subr.mxu0 0.0
        %678 = vmatpush1.xpose.msra.mxu0 0.0
        %679 = vmatprep.subr.mxu0 0.0
        %680 = vmatpush1.xpose.msra.mxu0 0.0
        %681 = vmatprep.subr.mxu0 0.0
        %682 = vmatpush1.xpose.msra.mxu0 0.0
        %683 = vmatprep.subr.mxu0 0.0
        %684 = vmatpush1.xpose.msra.mxu0 0.0
        %685 = vmatprep.subr.mxu0 0.0
        %686 = vmatpush1.xpose.msra.mxu0 0.0
        %687 = vmatprep.subr.mxu0 0.0
        %688 = vmatpush1.xpose.msra.mxu0 0.0
        %689 = vmatprep.subr.mxu0 0.0
        %690 = vmatpush1.xpose.msra.mxu0 0.0
        %691 = vmatprep.subr.mxu0 0.0
        %692 = vmatpush1.xpose.msra.mxu0 0.0
        %693 = vmatprep.subr.mxu0 0.0
        %694 = vmatpush1.xpose.msra.mxu0 %v661
        %695 = vmatprep.subr.mxu0 0.0
        %696 = vmatpush2.xpose.msra.mxu0 0.0
        %697 = vmatprep.subr.mxu0 0.0
        %698 = vmatpush2.xpose.msra.mxu0 0.0
        %699 = vmatprep.subr.mxu0 0.0
        %700 = vmatpush2.xpose.msra.mxu0 0.0
        %701 = vmatprep.subr.mxu0 0.0
        %702 = vmatpush2.xpose.msra.mxu0 0.0
        %703 = vmatprep.subr.mxu0 0.0
        %704 = vmatpush2.xpose.msra.mxu0 0.0
        %705 = vmatprep.subr.mxu0 0.0
        %706 = vmatpush2.xpose.msra.mxu0 0.0
        %707 = vmatprep.subr.mxu0 0.0
        %708 = vmatpush2.xpose.msra.mxu0 0.0
        %709 = vmatprep.subr.mxu0 0.0
        %710 = vmatpush2.xpose.msra.mxu0 0.0
        %711 = vmatprep.subr.mxu0 0.0
        %712 = vmatpush2.xpose.msra.mxu0 0.0
        %713 = vmatprep.subr.mxu0 0.0
        %714 = vmatpush2.xpose.msra.mxu0 0.0
        %715 = vmatprep.subr.mxu0 0.0
        %716 = vmatpush2.xpose.msra.mxu0 0.0
        %717 = vmatprep.subr.mxu0 0.0
        %718 = vmatpush2.xpose.msra.mxu0 0.0
        %719 = vmatprep.subr.mxu0 0.0
        %720 = vmatpush2.xpose.msra.mxu0 0.0
        %721 = vmatprep.subr.mxu0 0.0
        %722 = vmatpush2.xpose.msra.mxu0 0.0
        %723 = vmatprep.subr.mxu0 0.0
        %724 = vmatpush2.xpose.msra.mxu0 0.0
        %725 = vmatprep.subr.mxu0 0.0
        %726 = vmatpush2.xpose.msra.mxu0 0.0
        %727 = vmatprep.mubr.f32.mxu0 0.0
        %728 = vmatmul.mubr.f32.gmra.mxu0 %v658
        %v729 = vpop.f32.mrf.mxu0
        %v730 = vadd.f32 %v274, %v729
        %v731 = vpop.f32.mrf.mxu0
        %732 = vdwg.mxu0
        %v734 = vsel %vm580, %v390, 0
        %v737 = vsel %vm580, %v481, 0
        %739 = vmatprep.subr.mxu0 0.0
        %740 = vmatpush1.xpose.msra.mxu0 0.0
        %741 = vmatprep.subr.mxu0 0.0
        %742 = vmatpush1.xpose.msra.mxu0 0.0
        %743 = vmatprep.subr.mxu0 0.0
        %744 = vmatpush1.xpose.msra.mxu0 0.0
        %745 = vmatprep.subr.mxu0 0.0
        %746 = vmatpush1.xpose.msra.mxu0 0.0
        %747 = vmatprep.subr.mxu0 0.0
        %748 = vmatpush1.xpose.msra.mxu0 0.0
        %749 = vmatprep.subr.mxu0 0.0
        %750 = vmatpush1.xpose.msra.mxu0 0.0
        %751 = vmatprep.subr.mxu0 0.0
        %752 = vmatpush1.xpose.msra.mxu0 0.0
        %753 = vmatprep.subr.mxu0 0.0
        %754 = vmatpush1.xpose.msra.mxu0 0.0
        %755 = vmatprep.subr.mxu0 0.0
        %756 = vmatpush1.xpose.msra.mxu0 0.0
        %757 = vmatprep.subr.mxu0 0.0
        %758 = vmatpush1.xpose.msra.mxu0 0.0
        %759 = vmatprep.subr.mxu0 0.0
        %760 = vmatpush1.xpose.msra.mxu0 0.0
        %761 = vmatprep.subr.mxu0 0.0
        %762 = vmatpush1.xpose.msra.mxu0 0.0
        %763 = vmatprep.subr.mxu0 0.0
        %764 = vmatpush1.xpose.msra.mxu0 0.0
        %765 = vmatprep.subr.mxu0 0.0
        %766 = vmatpush1.xpose.msra.mxu0 0.0
        %767 = vmatprep.subr.mxu0 0.0
        %768 = vmatpush1.xpose.msra.mxu0 0.0
        %769 = vmatprep.subr.mxu0 0.0
        %770 = vmatpush1.xpose.msra.mxu0 %v737
        %771 = vmatprep.subr.mxu0 0.0
        %772 = vmatpush2.xpose.msra.mxu0 0.0
        %773 = vmatprep.subr.mxu0 0.0
        %774 = vmatpush2.xpose.msra.mxu0 0.0
        %775 = vmatprep.subr.mxu0 0.0
        %776 = vmatpush2.xpose.msra.mxu0 0.0
        %777 = vmatprep.subr.mxu0 0.0
        %778 = vmatpush2.xpose.msra.mxu0 0.0
        %779 = vmatprep.subr.mxu0 0.0
        %780 = vmatpush2.xpose.msra.mxu0 0.0
        %781 = vmatprep.subr.mxu0 0.0
        %782 = vmatpush2.xpose.msra.mxu0 0.0
        %783 = vmatprep.subr.mxu0 0.0
        %784 = vmatpush2.xpose.msra.mxu0 0.0
        %785 = vmatprep.subr.mxu0 0.0
        %786 = vmatpush2.xpose.msra.mxu0 0.0
        %787 = vmatprep.subr.mxu0 0.0
        %788 = vmatpush2.xpose.msra.mxu0 0.0
        %789 = vmatprep.subr.mxu0 0.0
        %790 = vmatpush2.xpose.msra.mxu0 0.0
        %791 = vmatprep.subr.mxu0 0.0
        %792 = vmatpush2.xpose.msra.mxu0 0.0
        %793 = vmatprep.subr.mxu0 0.0
        %794 = vmatpush2.xpose.msra.mxu0 0.0
        %795 = vmatprep.subr.mxu0 0.0
        %796 = vmatpush2.xpose.msra.mxu0 0.0
        %797 = vmatprep.subr.mxu0 0.0
        %798 = vmatpush2.xpose.msra.mxu0 0.0
        %799 = vmatprep.subr.mxu0 0.0
        %800 = vmatpush2.xpose.msra.mxu0 0.0
        %801 = vmatprep.subr.mxu0 0.0
        %802 = vmatpush2.xpose.msra.mxu0 0.0
        %803 = vmatprep.mubr.f32.mxu0 0.0
        %804 = vmatmul.mubr.f32.gmra.mxu0 %v734
        %v805 = vpop.f32.mrf.mxu0
        %v806 = vadd.f32 %v274, %v805
        %v807 = vpop.f32.mrf.mxu0
        %808 = vdwg.mxu0
        %v810 = vsel %vm580, %v395, 0
        %v813 = vsel %vm580, %v486, 0
        %815 = vmatprep.subr.mxu0 0.0
        %816 = vmatpush1.xpose.msra.mxu0 0.0
        %817 = vmatprep.subr.mxu0 0.0
        %818 = vmatpush1.xpose.msra.mxu0 0.0
        %819 = vmatprep.subr.mxu0 0.0
        %820 = vmatpush1.xpose.msra.mxu0 0.0
        %821 = vmatprep.subr.mxu0 0.0
        %822 = vmatpush1.xpose.msra.mxu0 0.0
        %823 = vmatprep.subr.mxu0 0.0
        %824 = vmatpush1.xpose.msra.mxu0 0.0
        %825 = vmatprep.subr.mxu0 0.0
        %826 = vmatpush1.xpose.msra.mxu0 0.0
        %827 = vmatprep.subr.mxu0 0.0
        %828 = vmatpush1.xpose.msra.mxu0 0.0
        %829 = vmatprep.subr.mxu0 0.0
        %830 = vmatpush1.xpose.msra.mxu0 0.0
        %831 = vmatprep.subr.mxu0 0.0
        %832 = vmatpush1.xpose.msra.mxu0 0.0
        %833 = vmatprep.subr.mxu0 0.0
        %834 = vmatpush1.xpose.msra.mxu0 0.0
        %835 = vmatprep.subr.mxu0 0.0
        %836 = vmatpush1.xpose.msra.mxu0 0.0
        %837 = vmatprep.subr.mxu0 0.0
        %838 = vmatpush1.xpose.msra.mxu0 0.0
        %839 = vmatprep.subr.mxu0 0.0
        %840 = vmatpush1.xpose.msra.mxu0 0.0
        %841 = vmatprep.subr.mxu0 0.0
        %842 = vmatpush1.xpose.msra.mxu0 0.0
        %843 = vmatprep.subr.mxu0 0.0
        %844 = vmatpush1.xpose.msra.mxu0 0.0
        %845 = vmatprep.subr.mxu0 0.0
        %846 = vmatpush1.xpose.msra.mxu0 %v813
        %847 = vmatprep.subr.mxu0 0.0
        %848 = vmatpush2.xpose.msra.mxu0 0.0
        %849 = vmatprep.subr.mxu0 0.0
        %850 = vmatpush2.xpose.msra.mxu0 0.0
        %851 = vmatprep.subr.mxu0 0.0
        %852 = vmatpush2.xpose.msra.mxu0 0.0
        %853 = vmatprep.subr.mxu0 0.0
        %854 = vmatpush2.xpose.msra.mxu0 0.0
        %855 = vmatprep.subr.mxu0 0.0
        %856 = vmatpush2.xpose.msra.mxu0 0.0
        %857 = vmatprep.subr.mxu0 0.0
        %858 = vmatpush2.xpose.msra.mxu0 0.0
        %859 = vmatprep.subr.mxu0 0.0
        %860 = vmatpush2.xpose.msra.mxu0 0.0
        %861 = vmatprep.subr.mxu0 0.0
        %862 = vmatpush2.xpose.msra.mxu0 0.0
        %863 = vmatprep.subr.mxu0 0.0
        %864 = vmatpush2.xpose.msra.mxu0 0.0
        %865 = vmatprep.subr.mxu0 0.0
        %866 = vmatpush2.xpose.msra.mxu0 0.0
        %867 = vmatprep.subr.mxu0 0.0
        %868 = vmatpush2.xpose.msra.mxu0 0.0
        %869 = vmatprep.subr.mxu0 0.0
        %870 = vmatpush2.xpose.msra.mxu0 0.0
        %871 = vmatprep.subr.mxu0 0.0
        %872 = vmatpush2.xpose.msra.mxu0 0.0
        %873 = vmatprep.subr.mxu0 0.0
        %874 = vmatpush2.xpose.msra.mxu0 0.0
        %875 = vmatprep.subr.mxu0 0.0
        %876 = vmatpush2.xpose.msra.mxu0 0.0
        %877 = vmatprep.subr.mxu0 0.0
        %878 = vmatpush2.xpose.msra.mxu0 0.0
        %879 = vmatprep.mubr.f32.mxu0 0.0
        %880 = vmatmul.mubr.f32.gmra.mxu0 %v810
        %v881 = vpop.f32.mrf.mxu0
        %v882 = vadd.f32 %v274, %v881
        %v883 = vpop.f32.mrf.mxu0
        %884 = vdwg.mxu0
        %v885 = vsel %vm580, %v654, -inf
        %886 = vmax.xlane.f32.xlu0 %v885
        %v887 = vpop.xlane.xlu0 %886
        %v888 = vsel %vm580, %v730, -inf
        %889 = vmax.xlane.f32.xlu0 %v888
        %v890 = vpop.xlane.xlu0 %889
        %v891 = vsel %vm580, %v806, -inf
        %892 = vmax.xlane.f32.xlu0 %v891
        %v893 = vpop.xlane.xlu0 %892
        %v894 = vsel %vm580, %v882, -inf
        %895 = vmax.xlane.f32.xlu0 %v894
        %v896 = vpop.xlane.xlu0 %895
        %v897 = vsub.f32 %v654, %v887
        %v898 = vsub.f32 %v730, %v890
        %v899 = vsub.f32 %v806, %v893
        %v900 = vsub.f32 %v882, %v896
        %v901 = vmul.f32 %v897, 1.442695
        %v902 = vpow.pop %v901
        %v903 = vmul.f32 %v898, 1.442695
        %v904 = vpow.pop %v903
        %v905 = vmul.f32 %v899, 1.442695
        %v906 = vpow.pop %v905
        %v907 = vmul.f32 %v900, 1.442695
        %v908 = vpow.pop %v907
        %v909 = vsel %vm580, %v902, 0.0
        %910 = vadd.xlane.f32.xlu0 %v909
        %v911 = vpop.xlane.xlu0 %910
        %v912 = vsel %vm580, %v904, 0.0
        %913 = vadd.xlane.f32.xlu0 %v912
        %v914 = vpop.xlane.xlu0 %913
        %v915 = vsel %vm580, %v906, 0.0
        %916 = vadd.xlane.f32.xlu0 %v915
        %v917 = vpop.xlane.xlu0 %916
        %v918 = vsel %vm580, %v908, 0.0
        %919 = vadd.xlane.f32.xlu0 %v918
        %v920 = vpop.xlane.xlu0 %919
        %v921 = vrcp.pop %v911
        %v922 = vrcp.pop %v914
        %v923 = vrcp.pop %v917
        %v924 = vrcp.pop %v920
        %v925 = vmul.f32 %v902, %v921
        %v926 = vmul.f32 %v904, %v922
        %v927 = vmul.f32 %v906, %v923
        %v928 = vmul.f32 %v908, %v924
        %v929 = vadd.f32 %v925, 0.0
        %v930 = vadd.f32 %v926, 0.0
        %v931 = vadd.f32 %v927, 0.0
        %v932 = vadd.f32 %v928, 0.0
        %v934 = vsel %vm580, %v925, 0
        %936 = vmatprep.subr.mxu0 0.0
        %937 = vmatpush1.msra.mxu0 0.0
        %938 = vmatprep.subr.mxu0 0.0
        %939 = vmatpush1.msra.mxu0 0.0
        %940 = vmatprep.subr.mxu0 0.0
        %941 = vmatpush1.msra.mxu0 0.0
        %942 = vmatprep.subr.mxu0 0.0
        %943 = vmatpush1.msra.mxu0 0.0
        %944 = vmatprep.subr.mxu0 0.0
        %945 = vmatpush1.msra.mxu0 0.0
        %946 = vmatprep.subr.mxu0 0.0
        %947 = vmatpush1.msra.mxu0 0.0
        %948 = vmatprep.subr.mxu0 0.0
        %949 = vmatpush1.msra.mxu0 0.0
        %950 = vmatprep.subr.mxu0 0.0
        %951 = vmatpush1.msra.mxu0 0.0
        %952 = vmatprep.subr.mxu0 0.0
        %953 = vmatpush1.msra.mxu0 0.0
        %954 = vmatprep.subr.mxu0 0.0
        %955 = vmatpush1.msra.mxu0 0.0
        %956 = vmatprep.subr.mxu0 0.0
        %957 = vmatpush1.msra.mxu0 0.0
        %958 = vmatprep.subr.mxu0 0.0
        %959 = vmatpush1.msra.mxu0 0.0
        %960 = vmatprep.subr.mxu0 0.0
        %961 = vmatpush1.msra.mxu0 0.0
        %962 = vmatprep.subr.mxu0 0.0
        %963 = vmatpush1.msra.mxu0 0.0
        %964 = vmatprep.subr.mxu0 0.0
        %965 = vmatpush1.msra.mxu0 0.0
        %966 = vmatprep.subr.mxu0 0.0
        %967 = vmatpush1.msra.mxu0 %v562
        %968 = vmatprep.subr.mxu0 0.0
        %969 = vmatpush2.msra.mxu0 0.0
        %970 = vmatprep.subr.mxu0 0.0
        %971 = vmatpush2.msra.mxu0 0.0
        %972 = vmatprep.subr.mxu0 0.0
        %973 = vmatpush2.msra.mxu0 0.0
        %974 = vmatprep.subr.mxu0 0.0
        %975 = vmatpush2.msra.mxu0 0.0
        %976 = vmatprep.subr.mxu0 0.0
        %977 = vmatpush2.msra.mxu0 0.0
        %978 = vmatprep.subr.mxu0 0.0
        %979 = vmatpush2.msra.mxu0 0.0
        %980 = vmatprep.subr.mxu0 0.0
        %981 = vmatpush2.msra.mxu0 0.0
        %982 = vmatprep.subr.mxu0 0.0
        %983 = vmatpush2.msra.mxu0 0.0
        %984 = vmatprep.subr.mxu0 0.0
        %985 = vmatpush2.msra.mxu0 0.0
        %986 = vmatprep.subr.mxu0 0.0
        %987 = vmatpush2.msra.mxu0 0.0
        %988 = vmatprep.subr.mxu0 0.0
        %989 = vmatpush2.msra.mxu0 0.0
        %990 = vmatprep.subr.mxu0 0.0
        %991 = vmatpush2.msra.mxu0 0.0
        %992 = vmatprep.subr.mxu0 0.0
        %993 = vmatpush2.msra.mxu0 0.0
        %994 = vmatprep.subr.mxu0 0.0
        %995 = vmatpush2.msra.mxu0 0.0
        %996 = vmatprep.subr.mxu0 0.0
        %997 = vmatpush2.msra.mxu0 0.0
        %998 = vmatprep.subr.mxu0 0.0
        %999 = vmatpush2.msra.mxu0 0.0
        %1000 = vmatprep.mubr.f32.mxu0 0.0
        %1001 = vmatmul.mubr.f32.gmra.mxu0 %v934
        %v1002 = vpop.f32.mrf.mxu0
        %v1003 = vadd.f32 0.0, %v1002
        %v1004 = vpop.f32.mrf.mxu0
        %1005 = vdwg.mxu0
        %v1007 = vsel %vm580, %v926, 0
        %1009 = vmatprep.subr.mxu0 0.0
        %1010 = vmatpush1.msra.mxu0 0.0
        %1011 = vmatprep.subr.mxu0 0.0
        %1012 = vmatpush1.msra.mxu0 0.0
        %1013 = vmatprep.subr.mxu0 0.0
        %1014 = vmatpush1.msra.mxu0 0.0
        %1015 = vmatprep.subr.mxu0 0.0
        %1016 = vmatpush1.msra.mxu0 0.0
        %1017 = vmatprep.subr.mxu0 0.0
        %1018 = vmatpush1.msra.mxu0 0.0
        %1019 = vmatprep.subr.mxu0 0.0
        %1020 = vmatpush1.msra.mxu0 0.0
        %1021 = vmatprep.subr.mxu0 0.0
        %1022 = vmatpush1.msra.mxu0 0.0
        %1023 = vmatprep.subr.mxu0 0.0
        %1024 = vmatpush1.msra.mxu0 0.0
        %1025 = vmatprep.subr.mxu0 0.0
        %1026 = vmatpush1.msra.mxu0 0.0
        %1027 = vmatprep.subr.mxu0 0.0
        %1028 = vmatpush1.msra.mxu0 0.0
        %1029 = vmatprep.subr.mxu0 0.0
        %1030 = vmatpush1.msra.mxu0 0.0
        %1031 = vmatprep.subr.mxu0 0.0
        %1032 = vmatpush1.msra.mxu0 0.0
        %1033 = vmatprep.subr.mxu0 0.0
        %1034 = vmatpush1.msra.mxu0 0.0
        %1035 = vmatprep.subr.mxu0 0.0
        %1036 = vmatpush1.msra.mxu0 0.0
        %1037 = vmatprep.subr.mxu0 0.0
        %1038 = vmatpush1.msra.mxu0 0.0
        %1039 = vmatprep.subr.mxu0 0.0
        %1040 = vmatpush1.msra.mxu0 %v567
        %1041 = vmatprep.subr.mxu0 0.0
        %1042 = vmatpush2.msra.mxu0 0.0
        %1043 = vmatprep.subr.mxu0 0.0
        %1044 = vmatpush2.msra.mxu0 0.0
        %1045 = vmatprep.subr.mxu0 0.0
        %1046 = vmatpush2.msra.mxu0 0.0
        %1047 = vmatprep.subr.mxu0 0.0
        %1048 = vmatpush2.msra.mxu0 0.0
        %1049 = vmatprep.subr.mxu0 0.0
        %1050 = vmatpush2.msra.mxu0 0.0
        %1051 = vmatprep.subr.mxu0 0.0
        %1052 = vmatpush2.msra.mxu0 0.0
        %1053 = vmatprep.subr.mxu0 0.0
        %1054 = vmatpush2.msra.mxu0 0.0
        %1055 = vmatprep.subr.mxu0 0.0
        %1056 = vmatpush2.msra.mxu0 0.0
        %1057 = vmatprep.subr.mxu0 0.0
        %1058 = vmatpush2.msra.mxu0 0.0
        %1059 = vmatprep.subr.mxu0 0.0
        %1060 = vmatpush2.msra.mxu0 0.0
        %1061 = vmatprep.subr.mxu0 0.0
        %1062 = vmatpush2.msra.mxu0 0.0
        %1063 = vmatprep.subr.mxu0 0.0
        %1064 = vmatpush2.msra.mxu0 0.0
        %1065 = vmatprep.subr.mxu0 0.0
        %1066 = vmatpush2.msra.mxu0 0.0
        %1067 = vmatprep.subr.mxu0 0.0
        %1068 = vmatpush2.msra.mxu0 0.0
        %1069 = vmatprep.subr.mxu0 0.0
        %1070 = vmatpush2.msra.mxu0 0.0
        %1071 = vmatprep.subr.mxu0 0.0
        %1072 = vmatpush2.msra.mxu0 0.0
        %1073 = vmatprep.mubr.f32.mxu0 0.0
        %1074 = vmatmul.mubr.f32.gmra.mxu0 %v1007
        %v1075 = vpop.f32.mrf.mxu0
        %v1076 = vadd.f32 0.0, %v1075
        %v1077 = vpop.f32.mrf.mxu0
        %1078 = vdwg.mxu0
        %v1080 = vsel %vm580, %v927, 0
        %1082 = vmatprep.subr.mxu0 0.0
        %1083 = vmatpush1.msra.mxu0 0.0
        %1084 = vmatprep.subr.mxu0 0.0
        %1085 = vmatpush1.msra.mxu0 0.0
        %1086 = vmatprep.subr.mxu0 0.0
        %1087 = vmatpush1.msra.mxu0 0.0
        %1088 = vmatprep.subr.mxu0 0.0
        %1089 = vmatpush1.msra.mxu0 0.0
        %1090 = vmatprep.subr.mxu0 0.0
        %1091 = vmatpush1.msra.mxu0 0.0
        %1092 = vmatprep.subr.mxu0 0.0
        %1093 = vmatpush1.msra.mxu0 0.0
        %1094 = vmatprep.subr.mxu0 0.0
        %1095 = vmatpush1.msra.mxu0 0.0
        %1096 = vmatprep.subr.mxu0 0.0
        %1097 = vmatpush1.msra.mxu0 0.0
        %1098 = vmatprep.subr.mxu0 0.0
        %1099 = vmatpush1.msra.mxu0 0.0
        %1100 = vmatprep.subr.mxu0 0.0
        %1101 = vmatpush1.msra.mxu0 0.0
        %1102 = vmatprep.subr.mxu0 0.0
        %1103 = vmatpush1.msra.mxu0 0.0
        %1104 = vmatprep.subr.mxu0 0.0
        %1105 = vmatpush1.msra.mxu0 0.0
        %1106 = vmatprep.subr.mxu0 0.0
        %1107 = vmatpush1.msra.mxu0 0.0
        %1108 = vmatprep.subr.mxu0 0.0
        %1109 = vmatpush1.msra.mxu0 0.0
        %1110 = vmatprep.subr.mxu0 0.0
        %1111 = vmatpush1.msra.mxu0 0.0
        %1112 = vmatprep.subr.mxu0 0.0
        %1113 = vmatpush1.msra.mxu0 %v572
        %1114 = vmatprep.subr.mxu0 0.0
        %1115 = vmatpush2.msra.mxu0 0.0
        %1116 = vmatprep.subr.mxu0 0.0
        %1117 = vmatpush2.msra.mxu0 0.0
        %1118 = vmatprep.subr.mxu0 0.0
        %1119 = vmatpush2.msra.mxu0 0.0
        %1120 = vmatprep.subr.mxu0 0.0
        %1121 = vmatpush2.msra.mxu0 0.0
        %1122 = vmatprep.subr.mxu0 0.0
        %1123 = vmatpush2.msra.mxu0 0.0
        %1124 = vmatprep.subr.mxu0 0.0
        %1125 = vmatpush2.msra.mxu0 0.0
        %1126 = vmatprep.subr.mxu0 0.0
        %1127 = vmatpush2.msra.mxu0 0.0
        %1128 = vmatprep.subr.mxu0 0.0
        %1129 = vmatpush2.msra.mxu0 0.0
        %1130 = vmatprep.subr.mxu0 0.0
        %1131 = vmatpush2.msra.mxu0 0.0
        %1132 = vmatprep.subr.mxu0 0.0
        %1133 = vmatpush2.msra.mxu0 0.0
        %1134 = vmatprep.subr.mxu0 0.0
        %1135 = vmatpush2.msra.mxu0 0.0
        %1136 = vmatprep.subr.mxu0 0.0
        %1137 = vmatpush2.msra.mxu0 0.0
        %1138 = vmatprep.subr.mxu0 0.0
        %1139 = vmatpush2.msra.mxu0 0.0
        %1140 = vmatprep.subr.mxu0 0.0
        %1141 = vmatpush2.msra.mxu0 0.0
        %1142 = vmatprep.subr.mxu0 0.0
        %1143 = vmatpush2.msra.mxu0 0.0
        %1144 = vmatprep.subr.mxu0 0.0
        %1145 = vmatpush2.msra.mxu0 0.0
        %1146 = vmatprep.mubr.f32.mxu0 0.0
        %1147 = vmatmul.mubr.f32.gmra.mxu0 %v1080
        %v1148 = vpop.f32.mrf.mxu0
        %v1149 = vadd.f32 0.0, %v1148
        %v1150 = vpop.f32.mrf.mxu0
        %1151 = vdwg.mxu0
        %v1153 = vsel %vm580, %v928, 0
        %1155 = vmatprep.subr.mxu0 0.0
        %1156 = vmatpush1.msra.mxu0 0.0
        %1157 = vmatprep.subr.mxu0 0.0
        %1158 = vmatpush1.msra.mxu0 0.0
        %1159 = vmatprep.subr.mxu0 0.0
        %1160 = vmatpush1.msra.mxu0 0.0
        %1161 = vmatprep.subr.mxu0 0.0
        %1162 = vmatpush1.msra.mxu0 0.0
        %1163 = vmatprep.subr.mxu0 0.0
        %1164 = vmatpush1.msra.mxu0 0.0
        %1165 = vmatprep.subr.mxu0 0.0
        %1166 = vmatpush1.msra.mxu0 0.0
        %1167 = vmatprep.subr.mxu0 0.0
        %1168 = vmatpush1.msra.mxu0 0.0
        %1169 = vmatprep.subr.mxu0 0.0
        %1170 = vmatpush1.msra.mxu0 0.0
        %1171 = vmatprep.subr.mxu0 0.0
        %1172 = vmatpush1.msra.mxu0 0.0
        %1173 = vmatprep.subr.mxu0 0.0
        %1174 = vmatpush1.msra.mxu0 0.0
        %1175 = vmatprep.subr.mxu0 0.0
        %1176 = vmatpush1.msra.mxu0 0.0
        %1177 = vmatprep.subr.mxu0 0.0
        %1178 = vmatpush1.msra.mxu0 0.0
        %1179 = vmatprep.subr.mxu0 0.0
        %1180 = vmatpush1.msra.mxu0 0.0
        %1181 = vmatprep.subr.mxu0 0.0
        %1182 = vmatpush1.msra.mxu0 0.0
        %1183 = vmatprep.subr.mxu0 0.0
        %1184 = vmatpush1.msra.mxu0 0.0
        %1185 = vmatprep.subr.mxu0 0.0
        %1186 = vmatpush1.msra.mxu0 %v577
        %1187 = vmatprep.subr.mxu0 0.0
        %1188 = vmatpush2.msra.mxu0 0.0
        %1189 = vmatprep.subr.mxu0 0.0
        %1190 = vmatpush2.msra.mxu0 0.0
        %1191 = vmatprep.subr.mxu0 0.0
        %1192 = vmatpush2.msra.mxu0 0.0
        %1193 = vmatprep.subr.mxu0 0.0
        %1194 = vmatpush2.msra.mxu0 0.0
        %1195 = vmatprep.subr.mxu0 0.0
        %1196 = vmatpush2.msra.mxu0 0.0
        %1197 = vmatprep.subr.mxu0 0.0
        %1198 = vmatpush2.msra.mxu0 0.0
        %1199 = vmatprep.subr.mxu0 0.0
        %1200 = vmatpush2.msra.mxu0 0.0
        %1201 = vmatprep.subr.mxu0 0.0
        %1202 = vmatpush2.msra.mxu0 0.0
        %1203 = vmatprep.subr.mxu0 0.0
        %1204 = vmatpush2.msra.mxu0 0.0
        %1205 = vmatprep.subr.mxu0 0.0
        %1206 = vmatpush2.msra.mxu0 0.0
        %1207 = vmatprep.subr.mxu0 0.0
        %1208 = vmatpush2.msra.mxu0 0.0
        %1209 = vmatprep.subr.mxu0 0.0
        %1210 = vmatpush2.msra.mxu0 0.0
        %1211 = vmatprep.subr.mxu0 0.0
        %1212 = vmatpush2.msra.mxu0 0.0
        %1213 = vmatprep.subr.mxu0 0.0
        %1214 = vmatpush2.msra.mxu0 0.0
        %1215 = vmatprep.subr.mxu0 0.0
        %1216 = vmatpush2.msra.mxu0 0.0
        %1217 = vmatprep.subr.mxu0 0.0
        %1218 = vmatpush2.msra.mxu0 0.0
        %1219 = vmatprep.mubr.f32.mxu0 0.0
        %1220 = vmatmul.mubr.f32.gmra.mxu0 %v1153
        %v1221 = vpop.f32.mrf.mxu0
        %v1222 = vadd.f32 0.0, %v1221
        %v1223 = vpop.f32.mrf.mxu0
        %1224 = vdwg.mxu0
        %v1225 = vld [vmem:[%s3] sm:$0xff]
        %s1226 = scalar_lea.vmem %s1, 32
        %v1227 = vld [vmem:[%s1226] sm:$0xff]
        %v1228 = vld [vmem:[%s1226 + $0x8] sm:$0xff]
        %v1229 = vld [vmem:[%s1226 + $0x10] sm:$0xff]
        %v1230 = vld [vmem:[%s1226 + $0x18] sm:$0xff]
        %s1231 = scalar_lea.vmem %s1, 160
        %v1232 = vld [vmem:[%s1231] sm:$0xff]
        %v1233 = vld [vmem:[%s1231 + $0x8] sm:$0xff]
        %v1234 = vld [vmem:[%s1231 + $0x10] sm:$0xff]
        %v1235 = vld [vmem:[%s1231 + $0x18] sm:$0xff]
        %s1236 = scalar_lea.vmem %s1, 288
        %v1237 = vld [vmem:[%s1236] sm:$0xff]
        %v1238 = vld [vmem:[%s1236 + $0x8] sm:$0xff]
        %v1239 = vld [vmem:[%s1236 + $0x10] sm:$0xff]
        %v1240 = vld [vmem:[%s1236 + $0x18] sm:$0xff]
        %s1241 = scalar_lea.vmem %s2, 1
        %v1242 = vld [vmem:[%s1241] sm:$0x1]
        %s1243 = scalar_lea.vmem %s2, 5
        %v1244 = vld [vmem:[%s1243] sm:$0x1]
        %s1245 = scalar_lea.vmem %s2, 9
        %v1246 = vld [vmem:[%s1245] sm:$0x1]
        %v1248 = vlaneseq
        %v1249 = vshrl.u32 %v1248, 7
        %v1250 = vsub.s32 0, %v1249
        %v1251 = vrot.slane %v1242, %v1250
        %1253 = vmatprep.subr.mxu0 0.0
        %1254 = vmatpush1.msra.mxu0 0.0
        %1255 = vmatprep.subr.mxu0 0.0
        %1256 = vmatpush1.msra.mxu0 0.0
        %1257 = vmatprep.subr.mxu0 0.0
        %1258 = vmatpush1.msra.mxu0 0.0
        %1259 = vmatprep.subr.mxu0 0.0
        %1260 = vmatpush1.msra.mxu0 0.0
        %1261 = vmatprep.subr.mxu0 0.0
        %1262 = vmatpush1.msra.mxu0 0.0
        %1263 = vmatprep.subr.mxu0 0.0
        %1264 = vmatpush1.msra.mxu0 0.0
        %1265 = vmatprep.subr.mxu0 0.0
        %1266 = vmatpush1.msra.mxu0 0.0
        %1267 = vmatprep.subr.mxu0 0.0
        %1268 = vmatpush1.msra.mxu0 0.0
        %1269 = vmatprep.subr.mxu0 0.0
        %1270 = vmatpush1.msra.mxu0 0.0
        %1271 = vmatprep.subr.mxu0 0.0
        %1272 = vmatpush1.msra.mxu0 0.0
        %1273 = vmatprep.subr.mxu0 0.0
        %1274 = vmatpush1.msra.mxu0 0.0
        %1275 = vmatprep.subr.mxu0 0.0
        %1276 = vmatpush1.msra.mxu0 0.0
        %1277 = vmatprep.subr.mxu0 0.0
        %1278 = vmatpush1.msra.mxu0 %v1230
        %1279 = vmatprep.subr.mxu0 0.0
        %1280 = vmatpush1.msra.mxu0 %v1229
        %1281 = vmatprep.subr.mxu0 0.0
        %1282 = vmatpush1.msra.mxu0 %v1228
        %1283 = vmatprep.subr.mxu0 0.0
        %1284 = vmatpush1.msra.mxu0 %v1227
        %1285 = vmatprep.subr.mxu0 0.0
        %1286 = vmatpush2.msra.mxu0 0.0
        %1287 = vmatprep.subr.mxu0 0.0
        %1288 = vmatpush2.msra.mxu0 0.0
        %1289 = vmatprep.subr.mxu0 0.0
        %1290 = vmatpush2.msra.mxu0 0.0
        %1291 = vmatprep.subr.mxu0 0.0
        %1292 = vmatpush2.msra.mxu0 0.0
        %1293 = vmatprep.subr.mxu0 0.0
        %1294 = vmatpush2.msra.mxu0 0.0
        %1295 = vmatprep.subr.mxu0 0.0
        %1296 = vmatpush2.msra.mxu0 0.0
        %1297 = vmatprep.subr.mxu0 0.0
        %1298 = vmatpush2.msra.mxu0 0.0
        %1299 = vmatprep.subr.mxu0 0.0
        %1300 = vmatpush2.msra.mxu0 0.0
        %1301 = vmatprep.subr.mxu0 0.0
        %1302 = vmatpush2.msra.mxu0 0.0
        %1303 = vmatprep.subr.mxu0 0.0
        %1304 = vmatpush2.msra.mxu0 0.0
        %1305 = vmatprep.subr.mxu0 0.0
        %1306 = vmatpush2.msra.mxu0 0.0
        %1307 = vmatprep.subr.mxu0 0.0
        %1308 = vmatpush2.msra.mxu0 0.0
        %1309 = vmatprep.subr.mxu0 0.0
        %1310 = vmatpush2.msra.mxu0 0.0
        %1311 = vmatprep.subr.mxu0 0.0
        %1312 = vmatpush2.msra.mxu0 0.0
        %1313 = vmatprep.subr.mxu0 0.0
        %1314 = vmatpush2.msra.mxu0 0.0
        %1315 = vmatprep.subr.mxu0 0.0
        %1316 = vmatpush2.msra.mxu0 0.0
        %1317 = vmatprep.mubr.f32.mxu0 0.0
        %1318 = vmatmul.mubr.f32.gmra.mxu0 %v302
        %v1319 = vpop.f32.mrf.mxu0
        %v1320 = vadd.f32 %v1251, %v1319
        %v1321 = vpop.f32.mrf.mxu0
        %1322 = vmatprep.mubr.f32.mxu0 0.0
        %1323 = vmatmul.mubr.f32.gmra.mxu0 %v305
        %v1324 = vpop.f32.mrf.mxu0
        %v1325 = vadd.f32 %v1251, %v1324
        %v1326 = vpop.f32.mrf.mxu0
        %1327 = vmatprep.mubr.f32.mxu0 0.0
        %1328 = vmatmul.mubr.f32.gmra.mxu0 %v308
        %v1329 = vpop.f32.mrf.mxu0
        %v1330 = vadd.f32 %v1251, %v1329
        %v1331 = vpop.f32.mrf.mxu0
        %1332 = vmatprep.mubr.f32.mxu0 0.0
        %1333 = vmatmul.mubr.f32.gmra.mxu0 %v311
        %v1334 = vpop.f32.mrf.mxu0
        %v1335 = vadd.f32 %v1251, %v1334
        %v1336 = vpop.f32.mrf.mxu0
        %1337 = vdwg.mxu0
        %v1339 = vlaneseq
        %v1340 = vshrl.u32 %v1339, 7
        %v1341 = vsub.s32 0, %v1340
        %v1342 = vrot.slane %v1244, %v1341
        %1344 = vmatprep.subr.mxu0 0.0
        %1345 = vmatpush1.msra.mxu0 0.0
        %1346 = vmatprep.subr.mxu0 0.0
        %1347 = vmatpush1.msra.mxu0 0.0
        %1348 = vmatprep.subr.mxu0 0.0
        %1349 = vmatpush1.msra.mxu0 0.0
        %1350 = vmatprep.subr.mxu0 0.0
        %1351 = vmatpush1.msra.mxu0 0.0
        %1352 = vmatprep.subr.mxu0 0.0
        %1353 = vmatpush1.msra.mxu0 0.0
        %1354 = vmatprep.subr.mxu0 0.0
        %1355 = vmatpush1.msra.mxu0 0.0
        %1356 = vmatprep.subr.mxu0 0.0
        %1357 = vmatpush1.msra.mxu0 0.0
        %1358 = vmatprep.subr.mxu0 0.0
        %1359 = vmatpush1.msra.mxu0 0.0
        %1360 = vmatprep.subr.mxu0 0.0
        %1361 = vmatpush1.msra.mxu0 0.0
        %1362 = vmatprep.subr.mxu0 0.0
        %1363 = vmatpush1.msra.mxu0 0.0
        %1364 = vmatprep.subr.mxu0 0.0
        %1365 = vmatpush1.msra.mxu0 0.0
        %1366 = vmatprep.subr.mxu0 0.0
        %1367 = vmatpush1.msra.mxu0 0.0
        %1368 = vmatprep.subr.mxu0 0.0
        %1369 = vmatpush1.msra.mxu0 %v1235
        %1370 = vmatprep.subr.mxu0 0.0
        %1371 = vmatpush1.msra.mxu0 %v1234
        %1372 = vmatprep.subr.mxu0 0.0
        %1373 = vmatpush1.msra.mxu0 %v1233
        %1374 = vmatprep.subr.mxu0 0.0
        %1375 = vmatpush1.msra.mxu0 %v1232
        %1376 = vmatprep.subr.mxu0 0.0
        %1377 = vmatpush2.msra.mxu0 0.0
        %1378 = vmatprep.subr.mxu0 0.0
        %1379 = vmatpush2.msra.mxu0 0.0
        %1380 = vmatprep.subr.mxu0 0.0
        %1381 = vmatpush2.msra.mxu0 0.0
        %1382 = vmatprep.subr.mxu0 0.0
        %1383 = vmatpush2.msra.mxu0 0.0
        %1384 = vmatprep.subr.mxu0 0.0
        %1385 = vmatpush2.msra.mxu0 0.0
        %1386 = vmatprep.subr.mxu0 0.0
        %1387 = vmatpush2.msra.mxu0 0.0
        %1388 = vmatprep.subr.mxu0 0.0
        %1389 = vmatpush2.msra.mxu0 0.0
        %1390 = vmatprep.subr.mxu0 0.0
        %1391 = vmatpush2.msra.mxu0 0.0
        %1392 = vmatprep.subr.mxu0 0.0
        %1393 = vmatpush2.msra.mxu0 0.0
        %1394 = vmatprep.subr.mxu0 0.0
        %1395 = vmatpush2.msra.mxu0 0.0
        %1396 = vmatprep.subr.mxu0 0.0
        %1397 = vmatpush2.msra.mxu0 0.0
        %1398 = vmatprep.subr.mxu0 0.0
        %1399 = vmatpush2.msra.mxu0 0.0
        %1400 = vmatprep.subr.mxu0 0.0
        %1401 = vmatpush2.msra.mxu0 0.0
        %1402 = vmatprep.subr.mxu0 0.0
        %1403 = vmatpush2.msra.mxu0 0.0
        %1404 = vmatprep.subr.mxu0 0.0
        %1405 = vmatpush2.msra.mxu0 0.0
        %1406 = vmatprep.subr.mxu0 0.0
        %1407 = vmatpush2.msra.mxu0 0.0
        %1408 = vmatprep.mubr.f32.mxu0 0.0
        %1409 = vmatmul.mubr.f32.gmra.mxu0 %v302
        %v1410 = vpop.f32.mrf.mxu0
        %v1411 = vadd.f32 %v1342, %v1410
        %v1412 = vpop.f32.mrf.mxu0
        %1413 = vmatprep.mubr.f32.mxu0 0.0
        %1414 = vmatmul.mubr.f32.gmra.mxu0 %v305
        %v1415 = vpop.f32.mrf.mxu0
        %v1416 = vadd.f32 %v1342, %v1415
        %v1417 = vpop.f32.mrf.mxu0
        %1418 = vmatprep.mubr.f32.mxu0 0.0
        %1419 = vmatmul.mubr.f32.gmra.mxu0 %v308
        %v1420 = vpop.f32.mrf.mxu0
        %v1421 = vadd.f32 %v1342, %v1420
        %v1422 = vpop.f32.mrf.mxu0
        %1423 = vmatprep.mubr.f32.mxu0 0.0
        %1424 = vmatmul.mubr.f32.gmra.mxu0 %v311
        %v1425 = vpop.f32.mrf.mxu0
        %v1426 = vadd.f32 %v1342, %v1425
        %v1427 = vpop.f32.mrf.mxu0
        %1428 = vdwg.mxu0
        %v1430 = vlaneseq
        %v1431 = vshrl.u32 %v1430, 7
        %v1432 = vsub.s32 0, %v1431
        %v1433 = vrot.slane %v1246, %v1432
        %1435 = vmatprep.subr.mxu0 0.0
        %1436 = vmatpush1.msra.mxu0 0.0
        %1437 = vmatprep.subr.mxu0 0.0
        %1438 = vmatpush1.msra.mxu0 0.0
        %1439 = vmatprep.subr.mxu0 0.0
        %1440 = vmatpush1.msra.mxu0 0.0
        %1441 = vmatprep.subr.mxu0 0.0
        %1442 = vmatpush1.msra.mxu0 0.0
        %1443 = vmatprep.subr.mxu0 0.0
        %1444 = vmatpush1.msra.mxu0 0.0
        %1445 = vmatprep.subr.mxu0 0.0
        %1446 = vmatpush1.msra.mxu0 0.0
        %1447 = vmatprep.subr.mxu0 0.0
        %1448 = vmatpush1.msra.mxu0 0.0
        %1449 = vmatprep.subr.mxu0 0.0
        %1450 = vmatpush1.msra.mxu0 0.0
        %1451 = vmatprep.subr.mxu0 0.0
        %1452 = vmatpush1.msra.mxu0 0.0
        %1453 = vmatprep.subr.mxu0 0.0
        %1454 = vmatpush1.msra.mxu0 0.0
        %1455 = vmatprep.subr.mxu0 0.0
        %1456 = vmatpush1.msra.mxu0 0.0
        %1457 = vmatprep.subr.mxu0 0.0
        %1458 = vmatpush1.msra.mxu0 0.0
        %1459 = vmatprep.subr.mxu0 0.0
        %1460 = vmatpush1.msra.mxu0 %v1240
        %1461 = vmatprep.subr.mxu0 0.0
        %1462 = vmatpush1.msra.mxu0 %v1239
        %1463 = vmatprep.subr.mxu0 0.0
        %1464 = vmatpush1.msra.mxu0 %v1238
        %1465 = vmatprep.subr.mxu0 0.0
        %1466 = vmatpush1.msra.mxu0 %v1237
        %1467 = vmatprep.subr.mxu0 0.0
        %1468 = vmatpush2.msra.mxu0 0.0
        %1469 = vmatprep.subr.mxu0 0.0
        %1470 = vmatpush2.msra.mxu0 0.0
        %1471 = vmatprep.subr.mxu0 0.0
        %1472 = vmatpush2.msra.mxu0 0.0
        %1473 = vmatprep.subr.mxu0 0.0
        %1474 = vmatpush2.msra.mxu0 0.0
        %1475 = vmatprep.subr.mxu0 0.0
        %1476 = vmatpush2.msra.mxu0 0.0
        %1477 = vmatprep.subr.mxu0 0.0
        %1478 = vmatpush2.msra.mxu0 0.0
        %1479 = vmatprep.subr.mxu0 0.0
        %1480 = vmatpush2.msra.mxu0 0.0
        %1481 = vmatprep.subr.mxu0 0.0
        %1482 = vmatpush2.msra.mxu0 0.0
        %1483 = vmatprep.subr.mxu0 0.0
        %1484 = vmatpush2.msra.mxu0 0.0
        %1485 = vmatprep.subr.mxu0 0.0
        %1486 = vmatpush2.msra.mxu0 0.0
        %1487 = vmatprep.subr.mxu0 0.0
        %1488 = vmatpush2.msra.mxu0 0.0
        %1489 = vmatprep.subr.mxu0 0.0
        %1490 = vmatpush2.msra.mxu0 0.0
        %1491 = vmatprep.subr.mxu0 0.0
        %1492 = vmatpush2.msra.mxu0 0.0
        %1493 = vmatprep.subr.mxu0 0.0
        %1494 = vmatpush2.msra.mxu0 0.0
        %1495 = vmatprep.subr.mxu0 0.0
        %1496 = vmatpush2.msra.mxu0 0.0
        %1497 = vmatprep.subr.mxu0 0.0
        %1498 = vmatpush2.msra.mxu0 0.0
        %1499 = vmatprep.mubr.f32.mxu0 0.0
        %1500 = vmatmul.mubr.f32.gmra.mxu0 %v302
        %v1501 = vpop.f32.mrf.mxu0
        %v1502 = vadd.f32 %v1433, %v1501
        %v1503 = vpop.f32.mrf.mxu0
        %1504 = vmatprep.mubr.f32.mxu0 0.0
        %1505 = vmatmul.mubr.f32.gmra.mxu0 %v305
        %v1506 = vpop.f32.mrf.mxu0
        %v1507 = vadd.f32 %v1433, %v1506
        %v1508 = vpop.f32.mrf.mxu0
        %1509 = vmatprep.mubr.f32.mxu0 0.0
        %1510 = vmatmul.mubr.f32.gmra.mxu0 %v308
        %v1511 = vpop.f32.mrf.mxu0
        %v1512 = vadd.f32 %v1433, %v1511
        %v1513 = vpop.f32.mrf.mxu0
        %1514 = vmatprep.mubr.f32.mxu0 0.0
        %1515 = vmatmul.mubr.f32.gmra.mxu0 %v311
        %v1516 = vpop.f32.mrf.mxu0
        %v1517 = vadd.f32 %v1433, %v1516
        %v1518 = vpop.f32.mrf.mxu0
        %1519 = vdwg.mxu0
        %v1521 = vsel %vm580, %v1320, 0
        %v1524 = vsel %vm580, %v1411, 0
        %1526 = vmatprep.subr.mxu0 0.0
        %1527 = vmatpush1.xpose.msra.mxu0 0.0
        %1528 = vmatprep.subr.mxu0 0.0
        %1529 = vmatpush1.xpose.msra.mxu0 0.0
        %1530 = vmatprep.subr.mxu0 0.0
        %1531 = vmatpush1.xpose.msra.mxu0 0.0
        %1532 = vmatprep.subr.mxu0 0.0
        %1533 = vmatpush1.xpose.msra.mxu0 0.0
        %1534 = vmatprep.subr.mxu0 0.0
        %1535 = vmatpush1.xpose.msra.mxu0 0.0
        %1536 = vmatprep.subr.mxu0 0.0
        %1537 = vmatpush1.xpose.msra.mxu0 0.0
        %1538 = vmatprep.subr.mxu0 0.0
        %1539 = vmatpush1.xpose.msra.mxu0 0.0
        %1540 = vmatprep.subr.mxu0 0.0
        %1541 = vmatpush1.xpose.msra.mxu0 0.0
        %1542 = vmatprep.subr.mxu0 0.0
        %1543 = vmatpush1.xpose.msra.mxu0 0.0
        %1544 = vmatprep.subr.mxu0 0.0
        %1545 = vmatpush1.xpose.msra.mxu0 0.0
        %1546 = vmatprep.subr.mxu0 0.0
        %1547 = vmatpush1.xpose.msra.mxu0 0.0
        %1548 = vmatprep.subr.mxu0 0.0
        %1549 = vmatpush1.xpose.msra.mxu0 0.0
        %1550 = vmatprep.subr.mxu0 0.0
        %1551 = vmatpush1.xpose.msra.mxu0 0.0
        %1552 = vmatprep.subr.mxu0 0.0
        %1553 = vmatpush1.xpose.msra.mxu0 0.0
        %1554 = vmatprep.subr.mxu0 0.0
        %1555 = vmatpush1.xpose.msra.mxu0 0.0
        %1556 = vmatprep.subr.mxu0 0.0
        %1557 = vmatpush1.xpose.msra.mxu0 %v1524
        %1558 = vmatprep.subr.mxu0 0.0
        %1559 = vmatpush2.xpose.msra.mxu0 0.0
        %1560 = vmatprep.subr.mxu0 0.0
        %1561 = vmatpush2.xpose.msra.mxu0 0.0
        %1562 = vmatprep.subr.mxu0 0.0
        %1563 = vmatpush2.xpose.msra.mxu0 0.0
        %1564 = vmatprep.subr.mxu0 0.0
        %1565 = vmatpush2.xpose.msra.mxu0 0.0
        %1566 = vmatprep.subr.mxu0 0.0
        %1567 = vmatpush2.xpose.msra.mxu0 0.0
        %1568 = vmatprep.subr.mxu0 0.0
        %1569 = vmatpush2.xpose.msra.mxu0 0.0
        %1570 = vmatprep.subr.mxu0 0.0
        %1571 = vmatpush2.xpose.msra.mxu0 0.0
        %1572 = vmatprep.subr.mxu0 0.0
        %1573 = vmatpush2.xpose.msra.mxu0 0.0
        %1574 = vmatprep.subr.mxu0 0.0
        %1575 = vmatpush2.xpose.msra.mxu0 0.0
        %1576 = vmatprep.subr.mxu0 0.0
        %1577 = vmatpush2.xpose.msra.mxu0 0.0
        %1578 = vmatprep.subr.mxu0 0.0
        %1579 = vmatpush2.xpose.msra.mxu0 0.0
        %1580 = vmatprep.subr.mxu0 0.0
        %1581 = vmatpush2.xpose.msra.mxu0 0.0
        %1582 = vmatprep.subr.mxu0 0.0
        %1583 = vmatpush2.xpose.msra.mxu0 0.0
        %1584 = vmatprep.subr.mxu0 0.0
        %1585 = vmatpush2.xpose.msra.mxu0 0.0
        %1586 = vmatprep.subr.mxu0 0.0
        %1587 = vmatpush2.xpose.msra.mxu0 0.0
        %1588 = vmatprep.subr.mxu0 0.0
        %1589 = vmatpush2.xpose.msra.mxu0 0.0
        %1590 = vmatprep.mubr.f32.mxu0 0.0
        %1591 = vmatmul.mubr.f32.gmra.mxu0 %v1521
        %v1592 = vpop.f32.mrf.mxu0
        %v1593 = vadd.f32 %v274, %v1592
        %v1594 = vpop.f32.mrf.mxu0
        %1595 = vdwg.mxu0
        %v1597 = vsel %vm580, %v1325, 0
        %v1600 = vsel %vm580, %v1416, 0
        %1602 = vmatprep.subr.mxu0 0.0
        %1603 = vmatpush1.xpose.msra.mxu0 0.0
        %1604 = vmatprep.subr.mxu0 0.0
        %1605 = vmatpush1.xpose.msra.mxu0 0.0
        %1606 = vmatprep.subr.mxu0 0.0
        %1607 = vmatpush1.xpose.msra.mxu0 0.0
        %1608 = vmatprep.subr.mxu0 0.0
        %1609 = vmatpush1.xpose.msra.mxu0 0.0
        %1610 = vmatprep.subr.mxu0 0.0
        %1611 = vmatpush1.xpose.msra.mxu0 0.0
        %1612 = vmatprep.subr.mxu0 0.0
        %1613 = vmatpush1.xpose.msra.mxu0 0.0
        %1614 = vmatprep.subr.mxu0 0.0
        %1615 = vmatpush1.xpose.msra.mxu0 0.0
        %1616 = vmatprep.subr.mxu0 0.0
        %1617 = vmatpush1.xpose.msra.mxu0 0.0
        %1618 = vmatprep.subr.mxu0 0.0
        %1619 = vmatpush1.xpose.msra.mxu0 0.0
        %1620 = vmatprep.subr.mxu0 0.0
        %1621 = vmatpush1.xpose.msra.mxu0 0.0
        %1622 = vmatprep.subr.mxu0 0.0
        %1623 = vmatpush1.xpose.msra.mxu0 0.0
        %1624 = vmatprep.subr.mxu0 0.0
        %1625 = vmatpush1.xpose.msra.mxu0 0.0
        %1626 = vmatprep.subr.mxu0 0.0
        %1627 = vmatpush1.xpose.msra.mxu0 0.0
        %1628 = vmatprep.subr.mxu0 0.0
        %1629 = vmatpush1.xpose.msra.mxu0 0.0
        %1630 = vmatprep.subr.mxu0 0.0
        %1631 = vmatpush1.xpose.msra.mxu0 0.0
        %1632 = vmatprep.subr.mxu0 0.0
        %1633 = vmatpush1.xpose.msra.mxu0 %v1600
        %1634 = vmatprep.subr.mxu0 0.0
        %1635 = vmatpush2.xpose.msra.mxu0 0.0
        %1636 = vmatprep.subr.mxu0 0.0
        %1637 = vmatpush2.xpose.msra.mxu0 0.0
        %1638 = vmatprep.subr.mxu0 0.0
        %1639 = vmatpush2.xpose.msra.mxu0 0.0
        %1640 = vmatprep.subr.mxu0 0.0
        %1641 = vmatpush2.xpose.msra.mxu0 0.0
        %1642 = vmatprep.subr.mxu0 0.0
        %1643 = vmatpush2.xpose.msra.mxu0 0.0
        %1644 = vmatprep.subr.mxu0 0.0
        %1645 = vmatpush2.xpose.msra.mxu0 0.0
        %1646 = vmatprep.subr.mxu0 0.0
        %1647 = vmatpush2.xpose.msra.mxu0 0.0
        %1648 = vmatprep.subr.mxu0 0.0
        %1649 = vmatpush2.xpose.msra.mxu0 0.0
        %1650 = vmatprep.subr.mxu0 0.0
        %1651 = vmatpush2.xpose.msra.mxu0 0.0
        %1652 = vmatprep.subr.mxu0 0.0
        %1653 = vmatpush2.xpose.msra.mxu0 0.0
        %1654 = vmatprep.subr.mxu0 0.0
        %1655 = vmatpush2.xpose.msra.mxu0 0.0
        %1656 = vmatprep.subr.mxu0 0.0
        %1657 = vmatpush2.xpose.msra.mxu0 0.0
        %1658 = vmatprep.subr.mxu0 0.0
        %1659 = vmatpush2.xpose.msra.mxu0 0.0
        %1660 = vmatprep.subr.mxu0 0.0
        %1661 = vmatpush2.xpose.msra.mxu0 0.0
        %1662 = vmatprep.subr.mxu0 0.0
        %1663 = vmatpush2.xpose.msra.mxu0 0.0
        %1664 = vmatprep.subr.mxu0 0.0
        %1665 = vmatpush2.xpose.msra.mxu0 0.0
        %1666 = vmatprep.mubr.f32.mxu0 0.0
        %1667 = vmatmul.mubr.f32.gmra.mxu0 %v1597
        %v1668 = vpop.f32.mrf.mxu0
        %v1669 = vadd.f32 %v274, %v1668
        %v1670 = vpop.f32.mrf.mxu0
        %1671 = vdwg.mxu0
        %v1673 = vsel %vm580, %v1330, 0
        %v1676 = vsel %vm580, %v1421, 0
        %1678 = vmatprep.subr.mxu0 0.0
        %1679 = vmatpush1.xpose.msra.mxu0 0.0
        %1680 = vmatprep.subr.mxu0 0.0
        %1681 = vmatpush1.xpose.msra.mxu0 0.0
        %1682 = vmatprep.subr.mxu0 0.0
        %1683 = vmatpush1.xpose.msra.mxu0 0.0
        %1684 = vmatprep.subr.mxu0 0.0
        %1685 = vmatpush1.xpose.msra.mxu0 0.0
        %1686 = vmatprep.subr.mxu0 0.0
        %1687 = vmatpush1.xpose.msra.mxu0 0.0
        %1688 = vmatprep.subr.mxu0 0.0
        %1689 = vmatpush1.xpose.msra.mxu0 0.0
        %1690 = vmatprep.subr.mxu0 0.0
        %1691 = vmatpush1.xpose.msra.mxu0 0.0
        %1692 = vmatprep.subr.mxu0 0.0
        %1693 = vmatpush1.xpose.msra.mxu0 0.0
        %1694 = vmatprep.subr.mxu0 0.0
        %1695 = vmatpush1.xpose.msra.mxu0 0.0
        %1696 = vmatprep.subr.mxu0 0.0
        %1697 = vmatpush1.xpose.msra.mxu0 0.0
        %1698 = vmatprep.subr.mxu0 0.0
        %1699 = vmatpush1.xpose.msra.mxu0 0.0
        %1700 = vmatprep.subr.mxu0 0.0
        %1701 = vmatpush1.xpose.msra.mxu0 0.0
        %1702 = vmatprep.subr.mxu0 0.0
        %1703 = vmatpush1.xpose.msra.mxu0 0.0
        %1704 = vmatprep.subr.mxu0 0.0
        %1705 = vmatpush1.xpose.msra.mxu0 0.0
        %1706 = vmatprep.subr.mxu0 0.0
        %1707 = vmatpush1.xpose.msra.mxu0 0.0
        %1708 = vmatprep.subr.mxu0 0.0
        %1709 = vmatpush1.xpose.msra.mxu0 %v1676
        %1710 = vmatprep.subr.mxu0 0.0
        %1711 = vmatpush2.xpose.msra.mxu0 0.0
        %1712 = vmatprep.subr.mxu0 0.0
        %1713 = vmatpush2.xpose.msra.mxu0 0.0
        %1714 = vmatprep.subr.mxu0 0.0
        %1715 = vmatpush2.xpose.msra.mxu0 0.0
        %1716 = vmatprep.subr.mxu0 0.0
        %1717 = vmatpush2.xpose.msra.mxu0 0.0
        %1718 = vmatprep.subr.mxu0 0.0
        %1719 = vmatpush2.xpose.msra.mxu0 0.0
        %1720 = vmatprep.subr.mxu0 0.0
        %1721 = vmatpush2.xpose.msra.mxu0 0.0
        %1722 = vmatprep.subr.mxu0 0.0
        %1723 = vmatpush2.xpose.msra.mxu0 0.0
        %1724 = vmatprep.subr.mxu0 0.0
        %1725 = vmatpush2.xpose.msra.mxu0 0.0
        %1726 = vmatprep.subr.mxu0 0.0
        %1727 = vmatpush2.xpose.msra.mxu0 0.0
        %1728 = vmatprep.subr.mxu0 0.0
        %1729 = vmatpush2.xpose.msra.mxu0 0.0
        %1730 = vmatprep.subr.mxu0 0.0
        %1731 = vmatpush2.xpose.msra.mxu0 0.0
        %1732 = vmatprep.subr.mxu0 0.0
        %1733 = vmatpush2.xpose.msra.mxu0 0.0
        %1734 = vmatprep.subr.mxu0 0.0
        %1735 = vmatpush2.xpose.msra.mxu0 0.0
        %1736 = vmatprep.subr.mxu0 0.0
        %1737 = vmatpush2.xpose.msra.mxu0 0.0
        %1738 = vmatprep.subr.mxu0 0.0
        %1739 = vmatpush2.xpose.msra.mxu0 0.0
        %1740 = vmatprep.subr.mxu0 0.0
        %1741 = vmatpush2.xpose.msra.mxu0 0.0
        %1742 = vmatprep.mubr.f32.mxu0 0.0
        %1743 = vmatmul.mubr.f32.gmra.mxu0 %v1673
        %v1744 = vpop.f32.mrf.mxu0
        %v1745 = vadd.f32 %v274, %v1744
        %v1746 = vpop.f32.mrf.mxu0
        %1747 = vdwg.mxu0
        %v1749 = vsel %vm580, %v1335, 0
        %v1752 = vsel %vm580, %v1426, 0
        %1754 = vmatprep.subr.mxu0 0.0
        %1755 = vmatpush1.xpose.msra.mxu0 0.0
        %1756 = vmatprep.subr.mxu0 0.0
        %1757 = vmatpush1.xpose.msra.mxu0 0.0
        %1758 = vmatprep.subr.mxu0 0.0
        %1759 = vmatpush1.xpose.msra.mxu0 0.0
        %1760 = vmatprep.subr.mxu0 0.0
        %1761 = vmatpush1.xpose.msra.mxu0 0.0
        %1762 = vmatprep.subr.mxu0 0.0
        %1763 = vmatpush1.xpose.msra.mxu0 0.0
        %1764 = vmatprep.subr.mxu0 0.0
        %1765 = vmatpush1.xpose.msra.mxu0 0.0
        %1766 = vmatprep.subr.mxu0 0.0
        %1767 = vmatpush1.xpose.msra.mxu0 0.0
        %1768 = vmatprep.subr.mxu0 0.0
        %1769 = vmatpush1.xpose.msra.mxu0 0.0
        %1770 = vmatprep.subr.mxu0 0.0
        %1771 = vmatpush1.xpose.msra.mxu0 0.0
        %1772 = vmatprep.subr.mxu0 0.0
        %1773 = vmatpush1.xpose.msra.mxu0 0.0
        %1774 = vmatprep.subr.mxu0 0.0
        %1775 = vmatpush1.xpose.msra.mxu0 0.0
        %1776 = vmatprep.subr.mxu0 0.0
        %1777 = vmatpush1.xpose.msra.mxu0 0.0
        %1778 = vmatprep.subr.mxu0 0.0
        %1779 = vmatpush1.xpose.msra.mxu0 0.0
        %1780 = vmatprep.subr.mxu0 0.0
        %1781 = vmatpush1.xpose.msra.mxu0 0.0
        %1782 = vmatprep.subr.mxu0 0.0
        %1783 = vmatpush1.xpose.msra.mxu0 0.0
        %1784 = vmatprep.subr.mxu0 0.0
        %1785 = vmatpush1.xpose.msra.mxu0 %v1752
        %1786 = vmatprep.subr.mxu0 0.0
        %1787 = vmatpush2.xpose.msra.mxu0 0.0
        %1788 = vmatprep.subr.mxu0 0.0
        %1789 = vmatpush2.xpose.msra.mxu0 0.0
        %1790 = vmatprep.subr.mxu0 0.0
        %1791 = vmatpush2.xpose.msra.mxu0 0.0
        %1792 = vmatprep.subr.mxu0 0.0
        %1793 = vmatpush2.xpose.msra.mxu0 0.0
        %1794 = vmatprep.subr.mxu0 0.0
        %1795 = vmatpush2.xpose.msra.mxu0 0.0
        %1796 = vmatprep.subr.mxu0 0.0
        %1797 = vmatpush2.xpose.msra.mxu0 0.0
        %1798 = vmatprep.subr.mxu0 0.0
        %1799 = vmatpush2.xpose.msra.mxu0 0.0
        %1800 = vmatprep.subr.mxu0 0.0
        %1801 = vmatpush2.xpose.msra.mxu0 0.0
        %1802 = vmatprep.subr.mxu0 0.0
        %1803 = vmatpush2.xpose.msra.mxu0 0.0
        %1804 = vmatprep.subr.mxu0 0.0
        %1805 = vmatpush2.xpose.msra.mxu0 0.0
        %1806 = vmatprep.subr.mxu0 0.0
        %1807 = vmatpush2.xpose.msra.mxu0 0.0
        %1808 = vmatprep.subr.mxu0 0.0
        %1809 = vmatpush2.xpose.msra.mxu0 0.0
        %1810 = vmatprep.subr.mxu0 0.0
        %1811 = vmatpush2.xpose.msra.mxu0 0.0
        %1812 = vmatprep.subr.mxu0 0.0
        %1813 = vmatpush2.xpose.msra.mxu0 0.0
        %1814 = vmatprep.subr.mxu0 0.0
        %1815 = vmatpush2.xpose.msra.mxu0 0.0
        %1816 = vmatprep.subr.mxu0 0.0
        %1817 = vmatpush2.xpose.msra.mxu0 0.0
        %1818 = vmatprep.mubr.f32.mxu0 0.0
        %1819 = vmatmul.mubr.f32.gmra.mxu0 %v1749
        %v1820 = vpop.f32.mrf.mxu0
        %v1821 = vadd.f32 %v274, %v1820
        %v1822 = vpop.f32.mrf.mxu0
        %1823 = vdwg.mxu0
        %v1824 = vsel %vm580, %v1593, -inf
        %1825 = vmax.xlane.f32.xlu0 %v1824
        %v1826 = vpop.xlane.xlu0 %1825
        %v1827 = vsel %vm580, %v1669, -inf
        %1828 = vmax.xlane.f32.xlu0 %v1827
        %v1829 = vpop.xlane.xlu0 %1828
        %v1830 = vsel %vm580, %v1745, -inf
        %1831 = vmax.xlane.f32.xlu0 %v1830
        %v1832 = vpop.xlane.xlu0 %1831
        %v1833 = vsel %vm580, %v1821, -inf
        %1834 = vmax.xlane.f32.xlu0 %v1833
        %v1835 = vpop.xlane.xlu0 %1834
        %v1836 = vsub.f32 %v1593, %v1826
        %v1837 = vsub.f32 %v1669, %v1829
        %v1838 = vsub.f32 %v1745, %v1832
        %v1839 = vsub.f32 %v1821, %v1835
        %v1840 = vmul.f32 %v1836, 1.442695
        %v1841 = vpow.pop %v1840
        %v1842 = vmul.f32 %v1837, 1.442695
        %v1843 = vpow.pop %v1842
        %v1844 = vmul.f32 %v1838, 1.442695
        %v1845 = vpow.pop %v1844
        %v1846 = vmul.f32 %v1839, 1.442695
        %v1847 = vpow.pop %v1846
        %v1848 = vsel %vm580, %v1841, 0.0
        %1849 = vadd.xlane.f32.xlu0 %v1848
        %v1850 = vpop.xlane.xlu0 %1849
        %v1851 = vsel %vm580, %v1843, 0.0
        %1852 = vadd.xlane.f32.xlu0 %v1851
        %v1853 = vpop.xlane.xlu0 %1852
        %v1854 = vsel %vm580, %v1845, 0.0
        %1855 = vadd.xlane.f32.xlu0 %v1854
        %v1856 = vpop.xlane.xlu0 %1855
        %v1857 = vsel %vm580, %v1847, 0.0
        %1858 = vadd.xlane.f32.xlu0 %v1857
        %v1859 = vpop.xlane.xlu0 %1858
        %v1860 = vrcp.pop %v1850
        %v1861 = vrcp.pop %v1853
        %v1862 = vrcp.pop %v1856
        %v1863 = vrcp.pop %v1859
        %v1864 = vmul.f32 %v1841, %v1860
        %v1865 = vmul.f32 %v1843, %v1861
        %v1866 = vmul.f32 %v1845, %v1862
        %v1867 = vmul.f32 %v1847, %v1863
        %v1868 = vadd.f32 %v929, %v1864
        %v1869 = vadd.f32 %v930, %v1865
        %v1870 = vadd.f32 %v931, %v1866
        %v1871 = vadd.f32 %v932, %v1867
        %v1873 = vsel %vm580, %v1864, 0
        %1875 = vmatprep.subr.mxu0 0.0
        %1876 = vmatpush1.msra.mxu0 0.0
        %1877 = vmatprep.subr.mxu0 0.0
        %1878 = vmatpush1.msra.mxu0 0.0
        %1879 = vmatprep.subr.mxu0 0.0
        %1880 = vmatpush1.msra.mxu0 0.0
        %1881 = vmatprep.subr.mxu0 0.0
        %1882 = vmatpush1.msra.mxu0 0.0
        %1883 = vmatprep.subr.mxu0 0.0
        %1884 = vmatpush1.msra.mxu0 0.0
        %1885 = vmatprep.subr.mxu0 0.0
        %1886 = vmatpush1.msra.mxu0 0.0
        %1887 = vmatprep.subr.mxu0 0.0
        %1888 = vmatpush1.msra.mxu0 0.0
        %1889 = vmatprep.subr.mxu0 0.0
        %1890 = vmatpush1.msra.mxu0 0.0
        %1891 = vmatprep.subr.mxu0 0.0
        %1892 = vmatpush1.msra.mxu0 0.0
        %1893 = vmatprep.subr.mxu0 0.0
        %1894 = vmatpush1.msra.mxu0 0.0
        %1895 = vmatprep.subr.mxu0 0.0
        %1896 = vmatpush1.msra.mxu0 0.0
        %1897 = vmatprep.subr.mxu0 0.0
        %1898 = vmatpush1.msra.mxu0 0.0
        %1899 = vmatprep.subr.mxu0 0.0
        %1900 = vmatpush1.msra.mxu0 0.0
        %1901 = vmatprep.subr.mxu0 0.0
        %1902 = vmatpush1.msra.mxu0 0.0
        %1903 = vmatprep.subr.mxu0 0.0
        %1904 = vmatpush1.msra.mxu0 0.0
        %1905 = vmatprep.subr.mxu0 0.0
        %1906 = vmatpush1.msra.mxu0 %v1502
        %1907 = vmatprep.subr.mxu0 0.0
        %1908 = vmatpush2.msra.mxu0 0.0
        %1909 = vmatprep.subr.mxu0 0.0
        %1910 = vmatpush2.msra.mxu0 0.0
        %1911 = vmatprep.subr.mxu0 0.0
        %1912 = vmatpush2.msra.mxu0 0.0
        %1913 = vmatprep.subr.mxu0 0.0
        %1914 = vmatpush2.msra.mxu0 0.0
        %1915 = vmatprep.subr.mxu0 0.0
        %1916 = vmatpush2.msra.mxu0 0.0
        %1917 = vmatprep.subr.mxu0 0.0
        %1918 = vmatpush2.msra.mxu0 0.0
        %1919 = vmatprep.subr.mxu0 0.0
        %1920 = vmatpush2.msra.mxu0 0.0
        %1921 = vmatprep.subr.mxu0 0.0
        %1922 = vmatpush2.msra.mxu0 0.0
        %1923 = vmatprep.subr.mxu0 0.0
        %1924 = vmatpush2.msra.mxu0 0.0
        %1925 = vmatprep.subr.mxu0 0.0
        %1926 = vmatpush2.msra.mxu0 0.0
        %1927 = vmatprep.subr.mxu0 0.0
        %1928 = vmatpush2.msra.mxu0 0.0
        %1929 = vmatprep.subr.mxu0 0.0
        %1930 = vmatpush2.msra.mxu0 0.0
        %1931 = vmatprep.subr.mxu0 0.0
        %1932 = vmatpush2.msra.mxu0 0.0
        %1933 = vmatprep.subr.mxu0 0.0
        %1934 = vmatpush2.msra.mxu0 0.0
        %1935 = vmatprep.subr.mxu0 0.0
        %1936 = vmatpush2.msra.mxu0 0.0
        %1937 = vmatprep.subr.mxu0 0.0
        %1938 = vmatpush2.msra.mxu0 0.0
        %1939 = vmatprep.mubr.f32.mxu0 0.0
        %1940 = vmatmul.mubr.f32.gmra.mxu0 %v1873
        %v1941 = vpop.f32.mrf.mxu0
        %v1942 = vadd.f32 0.0, %v1941
        %v1943 = vpop.f32.mrf.mxu0
        %1944 = vdwg.mxu0
        %v1946 = vsel %vm580, %v1865, 0
        %1948 = vmatprep.subr.mxu0 0.0
        %1949 = vmatpush1.msra.mxu0 0.0
        %1950 = vmatprep.subr.mxu0 0.0
        %1951 = vmatpush1.msra.mxu0 0.0
        %1952 = vmatprep.subr.mxu0 0.0
        %1953 = vmatpush1.msra.mxu0 0.0
        %1954 = vmatprep.subr.mxu0 0.0
        %1955 = vmatpush1.msra.mxu0 0.0
        %1956 = vmatprep.subr.mxu0 0.0
        %1957 = vmatpush1.msra.mxu0 0.0
        %1958 = vmatprep.subr.mxu0 0.0
        %1959 = vmatpush1.msra.mxu0 0.0
        %1960 = vmatprep.subr.mxu0 0.0
        %1961 = vmatpush1.msra.mxu0 0.0
        %1962 = vmatprep.subr.mxu0 0.0
        %1963 = vmatpush1.msra.mxu0 0.0
        %1964 = vmatprep.subr.mxu0 0.0
        %1965 = vmatpush1.msra.mxu0 0.0
        %1966 = vmatprep.subr.mxu0 0.0
        %1967 = vmatpush1.msra.mxu0 0.0
        %1968 = vmatprep.subr.mxu0 0.0
        %1969 = vmatpush1.msra.mxu0 0.0
        %1970 = vmatprep.subr.mxu0 0.0
        %1971 = vmatpush1.msra.mxu0 0.0
        %1972 = vmatprep.subr.mxu0 0.0
        %1973 = vmatpush1.msra.mxu0 0.0
        %1974 = vmatprep.subr.mxu0 0.0
        %1975 = vmatpush1.msra.mxu0 0.0
        %1976 = vmatprep.subr.mxu0 0.0
        %1977 = vmatpush1.msra.mxu0 0.0
        %1978 = vmatprep.subr.mxu0 0.0
        %1979 = vmatpush1.msra.mxu0 %v1507
        %1980 = vmatprep.subr.mxu0 0.0
        %1981 = vmatpush2.msra.mxu0 0.0
        %1982 = vmatprep.subr.mxu0 0.0
        %1983 = vmatpush2.msra.mxu0 0.0
        %1984 = vmatprep.subr.mxu0 0.0
        %1985 = vmatpush2.msra.mxu0 0.0
        %1986 = vmatprep.subr.mxu0 0.0
        %1987 = vmatpush2.msra.mxu0 0.0
        %1988 = vmatprep.subr.mxu0 0.0
        %1989 = vmatpush2.msra.mxu0 0.0
        %1990 = vmatprep.subr.mxu0 0.0
        %1991 = vmatpush2.msra.mxu0 0.0
        %1992 = vmatprep.subr.mxu0 0.0
        %1993 = vmatpush2.msra.mxu0 0.0
        %1994 = vmatprep.subr.mxu0 0.0
        %1995 = vmatpush2.msra.mxu0 0.0
        %1996 = vmatprep.subr.mxu0 0.0
        %1997 = vmatpush2.msra.mxu0 0.0
        %1998 = vmatprep.subr.mxu0 0.0
        %1999 = vmatpush2.msra.mxu0 0.0
        %2000 = vmatprep.subr.mxu0 0.0
        %2001 = vmatpush2.msra.mxu0 0.0
        %2002 = vmatprep.subr.mxu0 0.0
        %2003 = vmatpush2.msra.mxu0 0.0
        %2004 = vmatprep.subr.mxu0 0.0
        %2005 = vmatpush2.msra.mxu0 0.0
        %2006 = vmatprep.subr.mxu0 0.0
        %2007 = vmatpush2.msra.mxu0 0.0
        %2008 = vmatprep.subr.mxu0 0.0
        %2009 = vmatpush2.msra.mxu0 0.0
        %2010 = vmatprep.subr.mxu0 0.0
        %2011 = vmatpush2.msra.mxu0 0.0
        %2012 = vmatprep.mubr.f32.mxu0 0.0
        %2013 = vmatmul.mubr.f32.gmra.mxu0 %v1946
        %v2014 = vpop.f32.mrf.mxu0
        %v2015 = vadd.f32 0.0, %v2014
        %v2016 = vpop.f32.mrf.mxu0
        %2017 = vdwg.mxu0
        %v2019 = vsel %vm580, %v1866, 0
        %2021 = vmatprep.subr.mxu0 0.0
        %2022 = vmatpush1.msra.mxu0 0.0
        %2023 = vmatprep.subr.mxu0 0.0
        %2024 = vmatpush1.msra.mxu0 0.0
        %2025 = vmatprep.subr.mxu0 0.0
        %2026 = vmatpush1.msra.mxu0 0.0
        %2027 = vmatprep.subr.mxu0 0.0
        %2028 = vmatpush1.msra.mxu0 0.0
        %2029 = vmatprep.subr.mxu0 0.0
        %2030 = vmatpush1.msra.mxu0 0.0
        %2031 = vmatprep.subr.mxu0 0.0
        %2032 = vmatpush1.msra.mxu0 0.0
        %2033 = vmatprep.subr.mxu0 0.0
        %2034 = vmatpush1.msra.mxu0 0.0
        %2035 = vmatprep.subr.mxu0 0.0
        %2036 = vmatpush1.msra.mxu0 0.0
        %2037 = vmatprep.subr.mxu0 0.0
        %2038 = vmatpush1.msra.mxu0 0.0
        %2039 = vmatprep.subr.mxu0 0.0
        %2040 = vmatpush1.msra.mxu0 0.0
        %2041 = vmatprep.subr.mxu0 0.0
        %2042 = vmatpush1.msra.mxu0 0.0
        %2043 = vmatprep.subr.mxu0 0.0
        %2044 = vmatpush1.msra.mxu0 0.0
        %2045 = vmatprep.subr.mxu0 0.0
        %2046 = vmatpush1.msra.mxu0 0.0
        %2047 = vmatprep.subr.mxu0 0.0
        %2048 = vmatpush1.msra.mxu0 0.0
        %2049 = vmatprep.subr.mxu0 0.0
        %2050 = vmatpush1.msra.mxu0 0.0
        %2051 = vmatprep.subr.mxu0 0.0
        %2052 = vmatpush1.msra.mxu0 %v1512
        %2053 = vmatprep.subr.mxu0 0.0
        %2054 = vmatpush2.msra.mxu0 0.0
        %2055 = vmatprep.subr.mxu0 0.0
        %2056 = vmatpush2.msra.mxu0 0.0
        %2057 = vmatprep.subr.mxu0 0.0
        %2058 = vmatpush2.msra.mxu0 0.0
        %2059 = vmatprep.subr.mxu0 0.0
        %2060 = vmatpush2.msra.mxu0 0.0
        %2061 = vmatprep.subr.mxu0 0.0
        %2062 = vmatpush2.msra.mxu0 0.0
        %2063 = vmatprep.subr.mxu0 0.0
        %2064 = vmatpush2.msra.mxu0 0.0
        %2065 = vmatprep.subr.mxu0 0.0
        %2066 = vmatpush2.msra.mxu0 0.0
        %2067 = vmatprep.subr.mxu0 0.0
        %2068 = vmatpush2.msra.mxu0 0.0
        %2069 = vmatprep.subr.mxu0 0.0
        %2070 = vmatpush2.msra.mxu0 0.0
        %2071 = vmatprep.subr.mxu0 0.0
        %2072 = vmatpush2.msra.mxu0 0.0
        %2073 = vmatprep.subr.mxu0 0.0
        %2074 = vmatpush2.msra.mxu0 0.0
        %2075 = vmatprep.subr.mxu0 0.0
        %2076 = vmatpush2.msra.mxu0 0.0
        %2077 = vmatprep.subr.mxu0 0.0
        %2078 = vmatpush2.msra.mxu0 0.0
        %2079 = vmatprep.subr.mxu0 0.0
        %2080 = vmatpush2.msra.mxu0 0.0
        %2081 = vmatprep.subr.mxu0 0.0
        %2082 = vmatpush2.msra.mxu0 0.0
        %2083 = vmatprep.subr.mxu0 0.0
        %2084 = vmatpush2.msra.mxu0 0.0
        %2085 = vmatprep.mubr.f32.mxu0 0.0
        %2086 = vmatmul.mubr.f32.gmra.mxu0 %v2019
        %v2087 = vpop.f32.mrf.mxu0
        %v2088 = vadd.f32 0.0, %v2087
        %v2089 = vpop.f32.mrf.mxu0
        %2090 = vdwg.mxu0
        %v2092 = vsel %vm580, %v1867, 0
        %2094 = vmatprep.subr.mxu0 0.0
        %2095 = vmatpush1.msra.mxu0 0.0
        %2096 = vmatprep.subr.mxu0 0.0
        %2097 = vmatpush1.msra.mxu0 0.0
        %2098 = vmatprep.subr.mxu0 0.0
        %2099 = vmatpush1.msra.mxu0 0.0
        %2100 = vmatprep.subr.mxu0 0.0
        %2101 = vmatpush1.msra.mxu0 0.0
        %2102 = vmatprep.subr.mxu0 0.0
        %2103 = vmatpush1.msra.mxu0 0.0
        %2104 = vmatprep.subr.mxu0 0.0
        %2105 = vmatpush1.msra.mxu0 0.0
        %2106 = vmatprep.subr.mxu0 0.0
        %2107 = vmatpush1.msra.mxu0 0.0
        %2108 = vmatprep.subr.mxu0 0.0
        %2109 = vmatpush1.msra.mxu0 0.0
        %2110 = vmatprep.subr.mxu0 0.0
        %2111 = vmatpush1.msra.mxu0 0.0
        %2112 = vmatprep.subr.mxu0 0.0
        %2113 = vmatpush1.msra.mxu0 0.0
        %2114 = vmatprep.subr.mxu0 0.0
        %2115 = vmatpush1.msra.mxu0 0.0
        %2116 = vmatprep.subr.mxu0 0.0
        %2117 = vmatpush1.msra.mxu0 0.0
        %2118 = vmatprep.subr.mxu0 0.0
        %2119 = vmatpush1.msra.mxu0 0.0
        %2120 = vmatprep.subr.mxu0 0.0
        %2121 = vmatpush1.msra.mxu0 0.0
        %2122 = vmatprep.subr.mxu0 0.0
        %2123 = vmatpush1.msra.mxu0 0.0
        %2124 = vmatprep.subr.mxu0 0.0
        %2125 = vmatpush1.msra.mxu0 %v1517
        %2126 = vmatprep.subr.mxu0 0.0
        %2127 = vmatpush2.msra.mxu0 0.0
        %2128 = vmatprep.subr.mxu0 0.0
        %2129 = vmatpush2.msra.mxu0 0.0
        %2130 = vmatprep.subr.mxu0 0.0
        %2131 = vmatpush2.msra.mxu0 0.0
        %2132 = vmatprep.subr.mxu0 0.0
        %2133 = vmatpush2.msra.mxu0 0.0
        %2134 = vmatprep.subr.mxu0 0.0
        %2135 = vmatpush2.msra.mxu0 0.0
        %2136 = vmatprep.subr.mxu0 0.0
        %2137 = vmatpush2.msra.mxu0 0.0
        %2138 = vmatprep.subr.mxu0 0.0
        %2139 = vmatpush2.msra.mxu0 0.0
        %2140 = vmatprep.subr.mxu0 0.0
        %2141 = vmatpush2.msra.mxu0 0.0
        %2142 = vmatprep.subr.mxu0 0.0
        %2143 = vmatpush2.msra.mxu0 0.0
        %2144 = vmatprep.subr.mxu0 0.0
        %2145 = vmatpush2.msra.mxu0 0.0
        %2146 = vmatprep.subr.mxu0 0.0
        %2147 = vmatpush2.msra.mxu0 0.0
        %2148 = vmatprep.subr.mxu0 0.0
        %2149 = vmatpush2.msra.mxu0 0.0
        %2150 = vmatprep.subr.mxu0 0.0
        %2151 = vmatpush2.msra.mxu0 0.0
        %2152 = vmatprep.subr.mxu0 0.0
        %2153 = vmatpush2.msra.mxu0 0.0
        %2154 = vmatprep.subr.mxu0 0.0
        %2155 = vmatpush2.msra.mxu0 0.0
        %2156 = vmatprep.subr.mxu0 0.0
        %2157 = vmatpush2.msra.mxu0 0.0
        %2158 = vmatprep.mubr.f32.mxu0 0.0
        %2159 = vmatmul.mubr.f32.gmra.mxu0 %v2092
        %v2160 = vpop.f32.mrf.mxu0
        %v2161 = vadd.f32 0.0, %v2160
        %v2162 = vpop.f32.mrf.mxu0
        %2163 = vdwg.mxu0
        %s2164 = scalar_lea.vmem %s3, 8
        %v2165 = vld [vmem:[%s2164] sm:$0xff]
        %v2167 = vsel %vm580, %v1942, 0
        %v2170 = vsel %vm580, %v2015, 0
        %v2173 = vsel %vm580, %v2088, 0
        %v2176 = vsel %vm580, %v2161, 0
        %2178 = vmatprep.subr.mxu0 0.0
        %2179 = vmatpush1.msra.mxu0 0.0
        %2180 = vmatprep.subr.mxu0 0.0
        %2181 = vmatpush1.msra.mxu0 0.0
        %2182 = vmatprep.subr.mxu0 0.0
        %2183 = vmatpush1.msra.mxu0 0.0
        %2184 = vmatprep.subr.mxu0 0.0
        %2185 = vmatpush1.msra.mxu0 0.0
        %2186 = vmatprep.subr.mxu0 0.0
        %2187 = vmatpush1.msra.mxu0 0.0
        %2188 = vmatprep.subr.mxu0 0.0
        %2189 = vmatpush1.msra.mxu0 0.0
        %2190 = vmatprep.subr.mxu0 0.0
        %2191 = vmatpush1.msra.mxu0 0.0
        %2192 = vmatprep.subr.mxu0 0.0
        %2193 = vmatpush1.msra.mxu0 0.0
        %2194 = vmatprep.subr.mxu0 0.0
        %2195 = vmatpush1.msra.mxu0 0.0
        %2196 = vmatprep.subr.mxu0 0.0
        %2197 = vmatpush1.msra.mxu0 0.0
        %2198 = vmatprep.subr.mxu0 0.0
        %2199 = vmatpush1.msra.mxu0 0.0
        %2200 = vmatprep.subr.mxu0 0.0
        %2201 = vmatpush1.msra.mxu0 0.0
        %2202 = vmatprep.subr.mxu0 0.0
        %2203 = vmatpush1.msra.mxu0 0.0
        %2204 = vmatprep.subr.mxu0 0.0
        %2205 = vmatpush1.msra.mxu0 0.0
        %2206 = vmatprep.subr.mxu0 0.0
        %2207 = vmatpush1.msra.mxu0 0.0
        %2208 = vmatprep.subr.mxu0 0.0
        %2209 = vmatpush1.msra.mxu0 %v2165
        %2210 = vmatprep.subr.mxu0 0.0
        %2211 = vmatpush2.msra.mxu0 0.0
        %2212 = vmatprep.subr.mxu0 0.0
        %2213 = vmatpush2.msra.mxu0 0.0
        %2214 = vmatprep.subr.mxu0 0.0
        %2215 = vmatpush2.msra.mxu0 0.0
        %2216 = vmatprep.subr.mxu0 0.0
        %2217 = vmatpush2.msra.mxu0 0.0
        %2218 = vmatprep.subr.mxu0 0.0
        %2219 = vmatpush2.msra.mxu0 0.0
        %2220 = vmatprep.subr.mxu0 0.0
        %2221 = vmatpush2.msra.mxu0 0.0
        %2222 = vmatprep.subr.mxu0 0.0
        %2223 = vmatpush2.msra.mxu0 0.0
        %2224 = vmatprep.subr.mxu0 0.0
        %2225 = vmatpush2.msra.mxu0 0.0
        %2226 = vmatprep.subr.mxu0 0.0
        %2227 = vmatpush2.msra.mxu0 0.0
        %2228 = vmatprep.subr.mxu0 0.0
        %2229 = vmatpush2.msra.mxu0 0.0
        %2230 = vmatprep.subr.mxu0 0.0
        %2231 = vmatpush2.msra.mxu0 0.0
        %2232 = vmatprep.subr.mxu0 0.0
        %2233 = vmatpush2.msra.mxu0 0.0
        %2234 = vmatprep.subr.mxu0 0.0
        %2235 = vmatpush2.msra.mxu0 0.0
        %2236 = vmatprep.subr.mxu0 0.0
        %2237 = vmatpush2.msra.mxu0 0.0
        %2238 = vmatprep.subr.mxu0 0.0
        %2239 = vmatpush2.msra.mxu0 0.0
        %2240 = vmatprep.subr.mxu0 0.0
        %2241 = vmatpush2.msra.mxu0 0.0
        %2242 = vmatprep.mubr.f32.mxu0 0.0
        %2243 = vmatmul.mubr.f32.gmra.mxu0 %v2167
        %v2244 = vpop.f32.mrf.mxu0
        %v2245 = vadd.f32 0.0, %v2244
        %v2246 = vpop.f32.mrf.mxu0
        %2247 = vmatprep.mubr.f32.mxu0 0.0
        %2248 = vmatmul.mubr.f32.gmra.mxu0 %v2170
        %v2249 = vpop.f32.mrf.mxu0
        %v2250 = vadd.f32 0.0, %v2249
        %v2251 = vpop.f32.mrf.mxu0
        %2252 = vmatprep.mubr.f32.mxu0 0.0
        %2253 = vmatmul.mubr.f32.gmra.mxu0 %v2173
        %v2254 = vpop.f32.mrf.mxu0
        %v2255 = vadd.f32 0.0, %v2254
        %v2256 = vpop.f32.mrf.mxu0
        %2257 = vmatprep.mubr.f32.mxu0 0.0
        %2258 = vmatmul.mubr.f32.gmra.mxu0 %v2176
        %v2259 = vpop.f32.mrf.mxu0
        %v2260 = vadd.f32 0.0, %v2259
        %v2261 = vpop.f32.mrf.mxu0
        %2262 = vdwg.mxu0
        %v2264 = vsel %vm580, %v1003, 0
        %v2267 = vsel %vm580, %v1076, 0
        %v2270 = vsel %vm580, %v1149, 0
        %v2273 = vsel %vm580, %v1222, 0
        %2275 = vmatprep.subr.mxu0 0.0
        %2276 = vmatpush1.msra.mxu0 0.0
        %2277 = vmatprep.subr.mxu0 0.0
        %2278 = vmatpush1.msra.mxu0 0.0
        %2279 = vmatprep.subr.mxu0 0.0
        %2280 = vmatpush1.msra.mxu0 0.0
        %2281 = vmatprep.subr.mxu0 0.0
        %2282 = vmatpush1.msra.mxu0 0.0
        %2283 = vmatprep.subr.mxu0 0.0
        %2284 = vmatpush1.msra.mxu0 0.0
        %2285 = vmatprep.subr.mxu0 0.0
        %2286 = vmatpush1.msra.mxu0 0.0
        %2287 = vmatprep.subr.mxu0 0.0
        %2288 = vmatpush1.msra.mxu0 0.0
        %2289 = vmatprep.subr.mxu0 0.0
        %2290 = vmatpush1.msra.mxu0 0.0
        %2291 = vmatprep.subr.mxu0 0.0
        %2292 = vmatpush1.msra.mxu0 0.0
        %2293 = vmatprep.subr.mxu0 0.0
        %2294 = vmatpush1.msra.mxu0 0.0
        %2295 = vmatprep.subr.mxu0 0.0
        %2296 = vmatpush1.msra.mxu0 0.0
        %2297 = vmatprep.subr.mxu0 0.0
        %2298 = vmatpush1.msra.mxu0 0.0
        %2299 = vmatprep.subr.mxu0 0.0
        %2300 = vmatpush1.msra.mxu0 0.0
        %2301 = vmatprep.subr.mxu0 0.0
        %2302 = vmatpush1.msra.mxu0 0.0
        %2303 = vmatprep.subr.mxu0 0.0
        %2304 = vmatpush1.msra.mxu0 0.0
        %2305 = vmatprep.subr.mxu0 0.0
        %2306 = vmatpush1.msra.mxu0 %v1225
        %2307 = vmatprep.subr.mxu0 0.0
        %2308 = vmatpush2.msra.mxu0 0.0
        %2309 = vmatprep.subr.mxu0 0.0
        %2310 = vmatpush2.msra.mxu0 0.0
        %2311 = vmatprep.subr.mxu0 0.0
        %2312 = vmatpush2.msra.mxu0 0.0
        %2313 = vmatprep.subr.mxu0 0.0
        %2314 = vmatpush2.msra.mxu0 0.0
        %2315 = vmatprep.subr.mxu0 0.0
        %2316 = vmatpush2.msra.mxu0 0.0
        %2317 = vmatprep.subr.mxu0 0.0
        %2318 = vmatpush2.msra.mxu0 0.0
        %2319 = vmatprep.subr.mxu0 0.0
        %2320 = vmatpush2.msra.mxu0 0.0
        %2321 = vmatprep.subr.mxu0 0.0
        %2322 = vmatpush2.msra.mxu0 0.0
        %2323 = vmatprep.subr.mxu0 0.0
        %2324 = vmatpush2.msra.mxu0 0.0
        %2325 = vmatprep.subr.mxu0 0.0
        %2326 = vmatpush2.msra.mxu0 0.0
        %2327 = vmatprep.subr.mxu0 0.0
        %2328 = vmatpush2.msra.mxu0 0.0
        %2329 = vmatprep.subr.mxu0 0.0
        %2330 = vmatpush2.msra.mxu0 0.0
        %2331 = vmatprep.subr.mxu0 0.0
        %2332 = vmatpush2.msra.mxu0 0.0
        %2333 = vmatprep.subr.mxu0 0.0
        %2334 = vmatpush2.msra.mxu0 0.0
        %2335 = vmatprep.subr.mxu0 0.0
        %2336 = vmatpush2.msra.mxu0 0.0
        %2337 = vmatprep.subr.mxu0 0.0
        %2338 = vmatpush2.msra.mxu0 0.0
        %2339 = vmatprep.mubr.f32.mxu0 0.0
        %2340 = vmatmul.mubr.f32.gmra.mxu0 %v2264
        %v2341 = vpop.f32.mrf.mxu0
        %v2342 = vadd.f32 %v2245, %v2341
        %v2343 = vpop.f32.mrf.mxu0
        %2344 = vmatprep.mubr.f32.mxu0 0.0
        %2345 = vmatmul.mubr.f32.gmra.mxu0 %v2267
        %v2346 = vpop.f32.mrf.mxu0
        %v2347 = vadd.f32 %v2250, %v2346
        %v2348 = vpop.f32.mrf.mxu0
        %2349 = vmatprep.mubr.f32.mxu0 0.0
        %2350 = vmatmul.mubr.f32.gmra.mxu0 %v2270
        %v2351 = vpop.f32.mrf.mxu0
        %v2352 = vadd.f32 %v2255, %v2351
        %v2353 = vpop.f32.mrf.mxu0
        %2354 = vmatprep.mubr.f32.mxu0 0.0
        %2355 = vmatmul.mubr.f32.gmra.mxu0 %v2273
        %v2356 = vpop.f32.mrf.mxu0
        %v2357 = vadd.f32 %v2260, %v2356
        %v2358 = vpop.f32.mrf.mxu0
        %2359 = vdwg.mxu0
        %s2360 = scalar_lea.vmem %s1, 64
        %v2361 = vld [vmem:[%s2360] sm:$0xff]
        %v2362 = vld [vmem:[%s2360 + $0x8] sm:$0xff]
        %v2363 = vld [vmem:[%s2360 + $0x10] sm:$0xff]
        %v2364 = vld [vmem:[%s2360 + $0x18] sm:$0xff]
        %s2365 = scalar_lea.vmem %s1, 192
        %v2366 = vld [vmem:[%s2365] sm:$0xff]
        %v2367 = vld [vmem:[%s2365 + $0x8] sm:$0xff]
        %v2368 = vld [vmem:[%s2365 + $0x10] sm:$0xff]
        %v2369 = vld [vmem:[%s2365 + $0x18] sm:$0xff]
        %s2370 = scalar_lea.vmem %s1, 320
        %v2371 = vld [vmem:[%s2370] sm:$0xff]
        %v2372 = vld [vmem:[%s2370 + $0x8] sm:$0xff]
        %v2373 = vld [vmem:[%s2370 + $0x10] sm:$0xff]
        %v2374 = vld [vmem:[%s2370 + $0x18] sm:$0xff]
        %s2375 = scalar_lea.vmem %s2, 2
        %v2376 = vld [vmem:[%s2375] sm:$0x1]
        %s2377 = scalar_lea.vmem %s2, 6
        %v2378 = vld [vmem:[%s2377] sm:$0x1]
        %s2379 = scalar_lea.vmem %s2, 10
        %v2380 = vld [vmem:[%s2379] sm:$0x1]
        %v2382 = vlaneseq
        %v2383 = vshrl.u32 %v2382, 7
        %v2384 = vsub.s32 0, %v2383
        %v2385 = vrot.slane %v2376, %v2384
        %2387 = vmatprep.subr.mxu0 0.0
        %2388 = vmatpush1.msra.mxu0 0.0
        %2389 = vmatprep.subr.mxu0 0.0
        %2390 = vmatpush1.msra.mxu0 0.0
        %2391 = vmatprep.subr.mxu0 0.0
        %2392 = vmatpush1.msra.mxu0 0.0
        %2393 = vmatprep.subr.mxu0 0.0
        %2394 = vmatpush1.msra.mxu0 0.0
        %2395 = vmatprep.subr.mxu0 0.0
        %2396 = vmatpush1.msra.mxu0 0.0
        %2397 = vmatprep.subr.mxu0 0.0
        %2398 = vmatpush1.msra.mxu0 0.0
        %2399 = vmatprep.subr.mxu0 0.0
        %2400 = vmatpush1.msra.mxu0 0.0
        %2401 = vmatprep.subr.mxu0 0.0
        %2402 = vmatpush1.msra.mxu0 0.0
        %2403 = vmatprep.subr.mxu0 0.0
        %2404 = vmatpush1.msra.mxu0 0.0
        %2405 = vmatprep.subr.mxu0 0.0
        %2406 = vmatpush1.msra.mxu0 0.0
        %2407 = vmatprep.subr.mxu0 0.0
        %2408 = vmatpush1.msra.mxu0 0.0
        %2409 = vmatprep.subr.mxu0 0.0
        %2410 = vmatpush1.msra.mxu0 0.0
        %2411 = vmatprep.subr.mxu0 0.0
        %2412 = vmatpush1.msra.mxu0 %v2364
        %2413 = vmatprep.subr.mxu0 0.0
        %2414 = vmatpush1.msra.mxu0 %v2363
        %2415 = vmatprep.subr.mxu0 0.0
        %2416 = vmatpush1.msra.mxu0 %v2362
        %2417 = vmatprep.subr.mxu0 0.0
        %2418 = vmatpush1.msra.mxu0 %v2361
        %2419 = vmatprep.subr.mxu0 0.0
        %2420 = vmatpush2.msra.mxu0 0.0
        %2421 = vmatprep.subr.mxu0 0.0
        %2422 = vmatpush2.msra.mxu0 0.0
        %2423 = vmatprep.subr.mxu0 0.0
        %2424 = vmatpush2.msra.mxu0 0.0
        %2425 = vmatprep.subr.mxu0 0.0
        %2426 = vmatpush2.msra.mxu0 0.0
        %2427 = vmatprep.subr.mxu0 0.0
        %2428 = vmatpush2.msra.mxu0 0.0
        %2429 = vmatprep.subr.mxu0 0.0
        %2430 = vmatpush2.msra.mxu0 0.0
        %2431 = vmatprep.subr.mxu0 0.0
        %2432 = vmatpush2.msra.mxu0 0.0
        %2433 = vmatprep.subr.mxu0 0.0
        %2434 = vmatpush2.msra.mxu0 0.0
        %2435 = vmatprep.subr.mxu0 0.0
        %2436 = vmatpush2.msra.mxu0 0.0
        %2437 = vmatprep.subr.mxu0 0.0
        %2438 = vmatpush2.msra.mxu0 0.0
        %2439 = vmatprep.subr.mxu0 0.0
        %2440 = vmatpush2.msra.mxu0 0.0
        %2441 = vmatprep.subr.mxu0 0.0
        %2442 = vmatpush2.msra.mxu0 0.0
        %2443 = vmatprep.subr.mxu0 0.0
        %2444 = vmatpush2.msra.mxu0 0.0
        %2445 = vmatprep.subr.mxu0 0.0
        %2446 = vmatpush2.msra.mxu0 0.0
        %2447 = vmatprep.subr.mxu0 0.0
        %2448 = vmatpush2.msra.mxu0 0.0
        %2449 = vmatprep.subr.mxu0 0.0
        %2450 = vmatpush2.msra.mxu0 0.0
        %2451 = vmatprep.mubr.f32.mxu0 0.0
        %2452 = vmatmul.mubr.f32.gmra.mxu0 %v302
        %v2453 = vpop.f32.mrf.mxu0
        %v2454 = vadd.f32 %v2385, %v2453
        %v2455 = vpop.f32.mrf.mxu0
        %2456 = vmatprep.mubr.f32.mxu0 0.0
        %2457 = vmatmul.mubr.f32.gmra.mxu0 %v305
        %v2458 = vpop.f32.mrf.mxu0
        %v2459 = vadd.f32 %v2385, %v2458
        %v2460 = vpop.f32.mrf.mxu0
        %2461 = vmatprep.mubr.f32.mxu0 0.0
        %2462 = vmatmul.mubr.f32.gmra.mxu0 %v308
        %v2463 = vpop.f32.mrf.mxu0
        %v2464 = vadd.f32 %v2385, %v2463
        %v2465 = vpop.f32.mrf.mxu0
        %2466 = vmatprep.mubr.f32.mxu0 0.0
        %2467 = vmatmul.mubr.f32.gmra.mxu0 %v311
        %v2468 = vpop.f32.mrf.mxu0
        %v2469 = vadd.f32 %v2385, %v2468
        %v2470 = vpop.f32.mrf.mxu0
        %2471 = vdwg.mxu0
        %v2473 = vlaneseq
        %v2474 = vshrl.u32 %v2473, 7
        %v2475 = vsub.s32 0, %v2474
        %v2476 = vrot.slane %v2378, %v2475
        %2478 = vmatprep.subr.mxu0 0.0
        %2479 = vmatpush1.msra.mxu0 0.0
        %2480 = vmatprep.subr.mxu0 0.0
        %2481 = vmatpush1.msra.mxu0 0.0
        %2482 = vmatprep.subr.mxu0 0.0
        %2483 = vmatpush1.msra.mxu0 0.0
        %2484 = vmatprep.subr.mxu0 0.0
        %2485 = vmatpush1.msra.mxu0 0.0
        %2486 = vmatprep.subr.mxu0 0.0
        %2487 = vmatpush1.msra.mxu0 0.0
        %2488 = vmatprep.subr.mxu0 0.0
        %2489 = vmatpush1.msra.mxu0 0.0
        %2490 = vmatprep.subr.mxu0 0.0
        %2491 = vmatpush1.msra.mxu0 0.0
        %2492 = vmatprep.subr.mxu0 0.0
        %2493 = vmatpush1.msra.mxu0 0.0
        %2494 = vmatprep.subr.mxu0 0.0
        %2495 = vmatpush1.msra.mxu0 0.0
        %2496 = vmatprep.subr.mxu0 0.0
        %2497 = vmatpush1.msra.mxu0 0.0
        %2498 = vmatprep.subr.mxu0 0.0
        %2499 = vmatpush1.msra.mxu0 0.0
        %2500 = vmatprep.subr.mxu0 0.0
        %2501 = vmatpush1.msra.mxu0 0.0
        %2502 = vmatprep.subr.mxu0 0.0
        %2503 = vmatpush1.msra.mxu0 %v2369
        %2504 = vmatprep.subr.mxu0 0.0
        %2505 = vmatpush1.msra.mxu0 %v2368
        %2506 = vmatprep.subr.mxu0 0.0
        %2507 = vmatpush1.msra.mxu0 %v2367
        %2508 = vmatprep.subr.mxu0 0.0
        %2509 = vmatpush1.msra.mxu0 %v2366
        %2510 = vmatprep.subr.mxu0 0.0
        %2511 = vmatpush2.msra.mxu0 0.0
        %2512 = vmatprep.subr.mxu0 0.0
        %2513 = vmatpush2.msra.mxu0 0.0
        %2514 = vmatprep.subr.mxu0 0.0
        %2515 = vmatpush2.msra.mxu0 0.0
        %2516 = vmatprep.subr.mxu0 0.0
        %2517 = vmatpush2.msra.mxu0 0.0
        %2518 = vmatprep.subr.mxu0 0.0
        %2519 = vmatpush2.msra.mxu0 0.0
        %2520 = vmatprep.subr.mxu0 0.0
        %2521 = vmatpush2.msra.mxu0 0.0
        %2522 = vmatprep.subr.mxu0 0.0
        %2523 = vmatpush2.msra.mxu0 0.0
        %2524 = vmatprep.subr.mxu0 0.0
        %2525 = vmatpush2.msra.mxu0 0.0
        %2526 = vmatprep.subr.mxu0 0.0
        %2527 = vmatpush2.msra.mxu0 0.0
        %2528 = vmatprep.subr.mxu0 0.0
        %2529 = vmatpush2.msra.mxu0 0.0
        %2530 = vmatprep.subr.mxu0 0.0
        %2531 = vmatpush2.msra.mxu0 0.0
        %2532 = vmatprep.subr.mxu0 0.0
        %2533 = vmatpush2.msra.mxu0 0.0
        %2534 = vmatprep.subr.mxu0 0.0
        %2535 = vmatpush2.msra.mxu0 0.0
        %2536 = vmatprep.subr.mxu0 0.0
        %2537 = vmatpush2.msra.mxu0 0.0
        %2538 = vmatprep.subr.mxu0 0.0
        %2539 = vmatpush2.msra.mxu0 0.0
        %2540 = vmatprep.subr.mxu0 0.0
        %2541 = vmatpush2.msra.mxu0 0.0
        %2542 = vmatprep.mubr.f32.mxu0 0.0
        %2543 = vmatmul.mubr.f32.gmra.mxu0 %v302
        %v2544 = vpop.f32.mrf.mxu0
        %v2545 = vadd.f32 %v2476, %v2544
        %v2546 = vpop.f32.mrf.mxu0
        %2547 = vmatprep.mubr.f32.mxu0 0.0
        %2548 = vmatmul.mubr.f32.gmra.mxu0 %v305
        %v2549 = vpop.f32.mrf.mxu0
        %v2550 = vadd.f32 %v2476, %v2549
        %v2551 = vpop.f32.mrf.mxu0
        %2552 = vmatprep.mubr.f32.mxu0 0.0
        %2553 = vmatmul.mubr.f32.gmra.mxu0 %v308
        %v2554 = vpop.f32.mrf.mxu0
        %v2555 = vadd.f32 %v2476, %v2554
        %v2556 = vpop.f32.mrf.mxu0
        %2557 = vmatprep.mubr.f32.mxu0 0.0
        %2558 = vmatmul.mubr.f32.gmra.mxu0 %v311
        %v2559 = vpop.f32.mrf.mxu0
        %v2560 = vadd.f32 %v2476, %v2559
        %v2561 = vpop.f32.mrf.mxu0
        %2562 = vdwg.mxu0
        %v2564 = vlaneseq
        %v2565 = vshrl.u32 %v2564, 7
        %v2566 = vsub.s32 0, %v2565
        %v2567 = vrot.slane %v2380, %v2566
        %2569 = vmatprep.subr.mxu0 0.0
        %2570 = vmatpush1.msra.mxu0 0.0
        %2571 = vmatprep.subr.mxu0 0.0
        %2572 = vmatpush1.msra.mxu0 0.0
        %2573 = vmatprep.subr.mxu0 0.0
        %2574 = vmatpush1.msra.mxu0 0.0
        %2575 = vmatprep.subr.mxu0 0.0
        %2576 = vmatpush1.msra.mxu0 0.0
        %2577 = vmatprep.subr.mxu0 0.0
        %2578 = vmatpush1.msra.mxu0 0.0
        %2579 = vmatprep.subr.mxu0 0.0
        %2580 = vmatpush1.msra.mxu0 0.0
        %2581 = vmatprep.subr.mxu0 0.0
        %2582 = vmatpush1.msra.mxu0 0.0
        %2583 = vmatprep.subr.mxu0 0.0
        %2584 = vmatpush1.msra.mxu0 0.0
        %2585 = vmatprep.subr.mxu0 0.0
        %2586 = vmatpush1.msra.mxu0 0.0
        %2587 = vmatprep.subr.mxu0 0.0
        %2588 = vmatpush1.msra.mxu0 0.0
        %2589 = vmatprep.subr.mxu0 0.0
        %2590 = vmatpush1.msra.mxu0 0.0
        %2591 = vmatprep.subr.mxu0 0.0
        %2592 = vmatpush1.msra.mxu0 0.0
        %2593 = vmatprep.subr.mxu0 0.0
        %2594 = vmatpush1.msra.mxu0 %v2374
        %2595 = vmatprep.subr.mxu0 0.0
        %2596 = vmatpush1.msra.mxu0 %v2373
        %2597 = vmatprep.subr.mxu0 0.0
        %2598 = vmatpush1.msra.mxu0 %v2372
        %2599 = vmatprep.subr.mxu0 0.0
        %2600 = vmatpush1.msra.mxu0 %v2371
        %2601 = vmatprep.subr.mxu0 0.0
        %2602 = vmatpush2.msra.mxu0 0.0
        %2603 = vmatprep.subr.mxu0 0.0
        %2604 = vmatpush2.msra.mxu0 0.0
        %2605 = vmatprep.subr.mxu0 0.0
        %2606 = vmatpush2.msra.mxu0 0.0
        %2607 = vmatprep.subr.mxu0 0.0
        %2608 = vmatpush2.msra.mxu0 0.0
        %2609 = vmatprep.subr.mxu0 0.0
        %2610 = vmatpush2.msra.mxu0 0.0
        %2611 = vmatprep.subr.mxu0 0.0
        %2612 = vmatpush2.msra.mxu0 0.0
        %2613 = vmatprep.subr.mxu0 0.0
        %2614 = vmatpush2.msra.mxu0 0.0
        %2615 = vmatprep.subr.mxu0 0.0
        %2616 = vmatpush2.msra.mxu0 0.0
        %2617 = vmatprep.subr.mxu0 0.0
        %2618 = vmatpush2.msra.mxu0 0.0
        %2619 = vmatprep.subr.mxu0 0.0
        %2620 = vmatpush2.msra.mxu0 0.0
        %2621 = vmatprep.subr.mxu0 0.0
        %2622 = vmatpush2.msra.mxu0 0.0
        %2623 = vmatprep.subr.mxu0 0.0
        %2624 = vmatpush2.msra.mxu0 0.0
        %2625 = vmatprep.subr.mxu0 0.0
        %2626 = vmatpush2.msra.mxu0 0.0
        %2627 = vmatprep.subr.mxu0 0.0
        %2628 = vmatpush2.msra.mxu0 0.0
        %2629 = vmatprep.subr.mxu0 0.0
        %2630 = vmatpush2.msra.mxu0 0.0
        %2631 = vmatprep.subr.mxu0 0.0
        %2632 = vmatpush2.msra.mxu0 0.0
        %2633 = vmatprep.mubr.f32.mxu0 0.0
        %2634 = vmatmul.mubr.f32.gmra.mxu0 %v302
        %v2635 = vpop.f32.mrf.mxu0
        %v2636 = vadd.f32 %v2567, %v2635
        %v2637 = vpop.f32.mrf.mxu0
        %2638 = vmatprep.mubr.f32.mxu0 0.0
        %2639 = vmatmul.mubr.f32.gmra.mxu0 %v305
        %v2640 = vpop.f32.mrf.mxu0
        %v2641 = vadd.f32 %v2567, %v2640
        %v2642 = vpop.f32.mrf.mxu0
        %2643 = vmatprep.mubr.f32.mxu0 0.0
        %2644 = vmatmul.mubr.f32.gmra.mxu0 %v308
        %v2645 = vpop.f32.mrf.mxu0
        %v2646 = vadd.f32 %v2567, %v2645
        %v2647 = vpop.f32.mrf.mxu0
        %2648 = vmatprep.mubr.f32.mxu0 0.0
        %2649 = vmatmul.mubr.f32.gmra.mxu0 %v311
        %v2650 = vpop.f32.mrf.mxu0
        %v2651 = vadd.f32 %v2567, %v2650
        %v2652 = vpop.f32.mrf.mxu0
        %2653 = vdwg.mxu0
        %v2655 = vsel %vm580, %v2454, 0
        %v2658 = vsel %vm580, %v2545, 0
        %2660 = vmatprep.subr.mxu0 0.0
        %2661 = vmatpush1.xpose.msra.mxu0 0.0
        %2662 = vmatprep.subr.mxu0 0.0
        %2663 = vmatpush1.xpose.msra.mxu0 0.0
        %2664 = vmatprep.subr.mxu0 0.0
        %2665 = vmatpush1.xpose.msra.mxu0 0.0
        %2666 = vmatprep.subr.mxu0 0.0
        %2667 = vmatpush1.xpose.msra.mxu0 0.0
        %2668 = vmatprep.subr.mxu0 0.0
        %2669 = vmatpush1.xpose.msra.mxu0 0.0
        %2670 = vmatprep.subr.mxu0 0.0
        %2671 = vmatpush1.xpose.msra.mxu0 0.0
        %2672 = vmatprep.subr.mxu0 0.0
        %2673 = vmatpush1.xpose.msra.mxu0 0.0
        %2674 = vmatprep.subr.mxu0 0.0
        %2675 = vmatpush1.xpose.msra.mxu0 0.0
        %2676 = vmatprep.subr.mxu0 0.0
        %2677 = vmatpush1.xpose.msra.mxu0 0.0
        %2678 = vmatprep.subr.mxu0 0.0
        %2679 = vmatpush1.xpose.msra.mxu0 0.0
        %2680 = vmatprep.subr.mxu0 0.0
        %2681 = vmatpush1.xpose.msra.mxu0 0.0
        %2682 = vmatprep.subr.mxu0 0.0
        %2683 = vmatpush1.xpose.msra.mxu0 0.0
        %2684 = vmatprep.subr.mxu0 0.0
        %2685 = vmatpush1.xpose.msra.mxu0 0.0
        %2686 = vmatprep.subr.mxu0 0.0
        %2687 = vmatpush1.xpose.msra.mxu0 0.0
        %2688 = vmatprep.subr.mxu0 0.0
        %2689 = vmatpush1.xpose.msra.mxu0 0.0
        %2690 = vmatprep.subr.mxu0 0.0
        %2691 = vmatpush1.xpose.msra.mxu0 %v2658
        %2692 = vmatprep.subr.mxu0 0.0
        %2693 = vmatpush2.xpose.msra.mxu0 0.0
        %2694 = vmatprep.subr.mxu0 0.0
        %2695 = vmatpush2.xpose.msra.mxu0 0.0
        %2696 = vmatprep.subr.mxu0 0.0
        %2697 = vmatpush2.xpose.msra.mxu0 0.0
        %2698 = vmatprep.subr.mxu0 0.0
        %2699 = vmatpush2.xpose.msra.mxu0 0.0
        %2700 = vmatprep.subr.mxu0 0.0
        %2701 = vmatpush2.xpose.msra.mxu0 0.0
        %2702 = vmatprep.subr.mxu0 0.0
        %2703 = vmatpush2.xpose.msra.mxu0 0.0
        %2704 = vmatprep.subr.mxu0 0.0
        %2705 = vmatpush2.xpose.msra.mxu0 0.0
        %2706 = vmatprep.subr.mxu0 0.0
        %2707 = vmatpush2.xpose.msra.mxu0 0.0
        %2708 = vmatprep.subr.mxu0 0.0
        %2709 = vmatpush2.xpose.msra.mxu0 0.0
        %2710 = vmatprep.subr.mxu0 0.0
        %2711 = vmatpush2.xpose.msra.mxu0 0.0
        %2712 = vmatprep.subr.mxu0 0.0
        %2713 = vmatpush2.xpose.msra.mxu0 0.0
        %2714 = vmatprep.subr.mxu0 0.0
        %2715 = vmatpush2.xpose.msra.mxu0 0.0
        %2716 = vmatprep.subr.mxu0 0.0
        %2717 = vmatpush2.xpose.msra.mxu0 0.0
        %2718 = vmatprep.subr.mxu0 0.0
        %2719 = vmatpush2.xpose.msra.mxu0 0.0
        %2720 = vmatprep.subr.mxu0 0.0
        %2721 = vmatpush2.xpose.msra.mxu0 0.0
        %2722 = vmatprep.subr.mxu0 0.0
        %2723 = vmatpush2.xpose.msra.mxu0 0.0
        %2724 = vmatprep.mubr.f32.mxu0 0.0
        %2725 = vmatmul.mubr.f32.gmra.mxu0 %v2655
        %v2726 = vpop.f32.mrf.mxu0
        %v2727 = vadd.f32 %v274, %v2726
        %v2728 = vpop.f32.mrf.mxu0
        %2729 = vdwg.mxu0
        %v2731 = vsel %vm580, %v2459, 0
        %v2734 = vsel %vm580, %v2550, 0
        %2736 = vmatprep.subr.mxu0 0.0
        %2737 = vmatpush1.xpose.msra.mxu0 0.0
        %2738 = vmatprep.subr.mxu0 0.0
        %2739 = vmatpush1.xpose.msra.mxu0 0.0
        %2740 = vmatprep.subr.mxu0 0.0
        %2741 = vmatpush1.xpose.msra.mxu0 0.0
        %2742 = vmatprep.subr.mxu0 0.0
        %2743 = vmatpush1.xpose.msra.mxu0 0.0
        %2744 = vmatprep.subr.mxu0 0.0
        %2745 = vmatpush1.xpose.msra.mxu0 0.0
        %2746 = vmatprep.subr.mxu0 0.0
        %2747 = vmatpush1.xpose.msra.mxu0 0.0
        %2748 = vmatprep.subr.mxu0 0.0
        %2749 = vmatpush1.xpose.msra.mxu0 0.0
        %2750 = vmatprep.subr.mxu0 0.0
        %2751 = vmatpush1.xpose.msra.mxu0 0.0
        %2752 = vmatprep.subr.mxu0 0.0
        %2753 = vmatpush1.xpose.msra.mxu0 0.0
        %2754 = vmatprep.subr.mxu0 0.0
        %2755 = vmatpush1.xpose.msra.mxu0 0.0
        %2756 = vmatprep.subr.mxu0 0.0
        %2757 = vmatpush1.xpose.msra.mxu0 0.0
        %2758 = vmatprep.subr.mxu0 0.0
        %2759 = vmatpush1.xpose.msra.mxu0 0.0
        %2760 = vmatprep.subr.mxu0 0.0
        %2761 = vmatpush1.xpose.msra.mxu0 0.0
        %2762 = vmatprep.subr.mxu0 0.0
        %2763 = vmatpush1.xpose.msra.mxu0 0.0
        %2764 = vmatprep.subr.mxu0 0.0
        %2765 = vmatpush1.xpose.msra.mxu0 0.0
        %2766 = vmatprep.subr.mxu0 0.0
        %2767 = vmatpush1.xpose.msra.mxu0 %v2734
        %2768 = vmatprep.subr.mxu0 0.0
        %2769 = vmatpush2.xpose.msra.mxu0 0.0
        %2770 = vmatprep.subr.mxu0 0.0
        %2771 = vmatpush2.xpose.msra.mxu0 0.0
        %2772 = vmatprep.subr.mxu0 0.0
        %2773 = vmatpush2.xpose.msra.mxu0 0.0
        %2774 = vmatprep.subr.mxu0 0.0
        %2775 = vmatpush2.xpose.msra.mxu0 0.0
        %2776 = vmatprep.subr.mxu0 0.0
        %2777 = vmatpush2.xpose.msra.mxu0 0.0
        %2778 = vmatprep.subr.mxu0 0.0
        %2779 = vmatpush2.xpose.msra.mxu0 0.0
        %2780 = vmatprep.subr.mxu0 0.0
        %2781 = vmatpush2.xpose.msra.mxu0 0.0
        %2782 = vmatprep.subr.mxu0 0.0
        %2783 = vmatpush2.xpose.msra.mxu0 0.0
        %2784 = vmatprep.subr.mxu0 0.0
        %2785 = vmatpush2.xpose.msra.mxu0 0.0
        %2786 = vmatprep.subr.mxu0 0.0
        %2787 = vmatpush2.xpose.msra.mxu0 0.0
        %2788 = vmatprep.subr.mxu0 0.0
        %2789 = vmatpush2.xpose.msra.mxu0 0.0
        %2790 = vmatprep.subr.mxu0 0.0
        %2791 = vmatpush2.xpose.msra.mxu0 0.0
        %2792 = vmatprep.subr.mxu0 0.0
        %2793 = vmatpush2.xpose.msra.mxu0 0.0
        %2794 = vmatprep.subr.mxu0 0.0
        %2795 = vmatpush2.xpose.msra.mxu0 0.0
        %2796 = vmatprep.subr.mxu0 0.0
        %2797 = vmatpush2.xpose.msra.mxu0 0.0
        %2798 = vmatprep.subr.mxu0 0.0
        %2799 = vmatpush2.xpose.msra.mxu0 0.0
        %2800 = vmatprep.mubr.f32.mxu0 0.0
        %2801 = vmatmul.mubr.f32.gmra.mxu0 %v2731
        %v2802 = vpop.f32.mrf.mxu0
        %v2803 = vadd.f32 %v274, %v2802
        %v2804 = vpop.f32.mrf.mxu0
        %2805 = vdwg.mxu0
        %v2807 = vsel %vm580, %v2464, 0
        %v2810 = vsel %vm580, %v2555, 0
        %2812 = vmatprep.subr.mxu0 0.0
        %2813 = vmatpush1.xpose.msra.mxu0 0.0
        %2814 = vmatprep.subr.mxu0 0.0
        %2815 = vmatpush1.xpose.msra.mxu0 0.0
        %2816 = vmatprep.subr.mxu0 0.0
        %2817 = vmatpush1.xpose.msra.mxu0 0.0
        %2818 = vmatprep.subr.mxu0 0.0
        %2819 = vmatpush1.xpose.msra.mxu0 0.0
        %2820 = vmatprep.subr.mxu0 0.0
        %2821 = vmatpush1.xpose.msra.mxu0 0.0
        %2822 = vmatprep.subr.mxu0 0.0
        %2823 = vmatpush1.xpose.msra.mxu0 0.0
        %2824 = vmatprep.subr.mxu0 0.0
        %2825 = vmatpush1.xpose.msra.mxu0 0.0
        %2826 = vmatprep.subr.mxu0 0.0
        %2827 = vmatpush1.xpose.msra.mxu0 0.0
        %2828 = vmatprep.subr.mxu0 0.0
        %2829 = vmatpush1.xpose.msra.mxu0 0.0
        %2830 = vmatprep.subr.mxu0 0.0
        %2831 = vmatpush1.xpose.msra.mxu0 0.0
        %2832 = vmatprep.subr.mxu0 0.0
        %2833 = vmatpush1.xpose.msra.mxu0 0.0
        %2834 = vmatprep.subr.mxu0 0.0
        %2835 = vmatpush1.xpose.msra.mxu0 0.0
        %2836 = vmatprep.subr.mxu0 0.0
        %2837 = vmatpush1.xpose.msra.mxu0 0.0
        %2838 = vmatprep.subr.mxu0 0.0
        %2839 = vmatpush1.xpose.msra.mxu0 0.0
        %2840 = vmatprep.subr.mxu0 0.0
        %2841 = vmatpush1.xpose.msra.mxu0 0.0
        %2842 = vmatprep.subr.mxu0 0.0
        %2843 = vmatpush1.xpose.msra.mxu0 %v2810
        %2844 = vmatprep.subr.mxu0 0.0
        %2845 = vmatpush2.xpose.msra.mxu0 0.0
        %2846 = vmatprep.subr.mxu0 0.0
        %2847 = vmatpush2.xpose.msra.mxu0 0.0
        %2848 = vmatprep.subr.mxu0 0.0
        %2849 = vmatpush2.xpose.msra.mxu0 0.0
        %2850 = vmatprep.subr.mxu0 0.0
        %2851 = vmatpush2.xpose.msra.mxu0 0.0
        %2852 = vmatprep.subr.mxu0 0.0
        %2853 = vmatpush2.xpose.msra.mxu0 0.0
        %2854 = vmatprep.subr.mxu0 0.0
        %2855 = vmatpush2.xpose.msra.mxu0 0.0
        %2856 = vmatprep.subr.mxu0 0.0
        %2857 = vmatpush2.xpose.msra.mxu0 0.0
        %2858 = vmatprep.subr.mxu0 0.0
        %2859 = vmatpush2.xpose.msra.mxu0 0.0
        %2860 = vmatprep.subr.mxu0 0.0
        %2861 = vmatpush2.xpose.msra.mxu0 0.0
        %2862 = vmatprep.subr.mxu0 0.0
        %2863 = vmatpush2.xpose.msra.mxu0 0.0
        %2864 = vmatprep.subr.mxu0 0.0
        %2865 = vmatpush2.xpose.msra.mxu0 0.0
        %2866 = vmatprep.subr.mxu0 0.0
        %2867 = vmatpush2.xpose.msra.mxu0 0.0
        %2868 = vmatprep.subr.mxu0 0.0
        %2869 = vmatpush2.xpose.msra.mxu0 0.0
        %2870 = vmatprep.subr.mxu0 0.0
        %2871 = vmatpush2.xpose.msra.mxu0 0.0
        %2872 = vmatprep.subr.mxu0 0.0
        %2873 = vmatpush2.xpose.msra.mxu0 0.0
        %2874 = vmatprep.subr.mxu0 0.0
        %2875 = vmatpush2.xpose.msra.mxu0 0.0
        %2876 = vmatprep.mubr.f32.mxu0 0.0
        %2877 = vmatmul.mubr.f32.gmra.mxu0 %v2807
        %v2878 = vpop.f32.mrf.mxu0
        %v2879 = vadd.f32 %v274, %v2878
        %v2880 = vpop.f32.mrf.mxu0
        %2881 = vdwg.mxu0
        %v2883 = vsel %vm580, %v2469, 0
        %v2886 = vsel %vm580, %v2560, 0
        %2888 = vmatprep.subr.mxu0 0.0
        %2889 = vmatpush1.xpose.msra.mxu0 0.0
        %2890 = vmatprep.subr.mxu0 0.0
        %2891 = vmatpush1.xpose.msra.mxu0 0.0
        %2892 = vmatprep.subr.mxu0 0.0
        %2893 = vmatpush1.xpose.msra.mxu0 0.0
        %2894 = vmatprep.subr.mxu0 0.0
        %2895 = vmatpush1.xpose.msra.mxu0 0.0
        %2896 = vmatprep.subr.mxu0 0.0
        %2897 = vmatpush1.xpose.msra.mxu0 0.0
        %2898 = vmatprep.subr.mxu0 0.0
        %2899 = vmatpush1.xpose.msra.mxu0 0.0
        %2900 = vmatprep.subr.mxu0 0.0
        %2901 = vmatpush1.xpose.msra.mxu0 0.0
        %2902 = vmatprep.subr.mxu0 0.0
        %2903 = vmatpush1.xpose.msra.mxu0 0.0
        %2904 = vmatprep.subr.mxu0 0.0
        %2905 = vmatpush1.xpose.msra.mxu0 0.0
        %2906 = vmatprep.subr.mxu0 0.0
        %2907 = vmatpush1.xpose.msra.mxu0 0.0
        %2908 = vmatprep.subr.mxu0 0.0
        %2909 = vmatpush1.xpose.msra.mxu0 0.0
        %2910 = vmatprep.subr.mxu0 0.0
        %2911 = vmatpush1.xpose.msra.mxu0 0.0
        %2912 = vmatprep.subr.mxu0 0.0
        %2913 = vmatpush1.xpose.msra.mxu0 0.0
        %2914 = vmatprep.subr.mxu0 0.0
        %2915 = vmatpush1.xpose.msra.mxu0 0.0
        %2916 = vmatprep.subr.mxu0 0.0
        %2917 = vmatpush1.xpose.msra.mxu0 0.0
        %2918 = vmatprep.subr.mxu0 0.0
        %2919 = vmatpush1.xpose.msra.mxu0 %v2886
        %2920 = vmatprep.subr.mxu0 0.0
        %2921 = vmatpush2.xpose.msra.mxu0 0.0
        %2922 = vmatprep.subr.mxu0 0.0
        %2923 = vmatpush2.xpose.msra.mxu0 0.0
        %2924 = vmatprep.subr.mxu0 0.0
        %2925 = vmatpush2.xpose.msra.mxu0 0.0
        %2926 = vmatprep.subr.mxu0 0.0
        %2927 = vmatpush2.xpose.msra.mxu0 0.0
        %2928 = vmatprep.subr.mxu0 0.0
        %2929 = vmatpush2.xpose.msra.mxu0 0.0
        %2930 = vmatprep.subr.mxu0 0.0
        %2931 = vmatpush2.xpose.msra.mxu0 0.0
        %2932 = vmatprep.subr.mxu0 0.0
        %2933 = vmatpush2.xpose.msra.mxu0 0.0
        %2934 = vmatprep.subr.mxu0 0.0
        %2935 = vmatpush2.xpose.msra.mxu0 0.0
        %2936 = vmatprep.subr.mxu0 0.0
        %2937 = vmatpush2.xpose.msra.mxu0 0.0
        %2938 = vmatprep.subr.mxu0 0.0
        %2939 = vmatpush2.xpose.msra.mxu0 0.0
        %2940 = vmatprep.subr.mxu0 0.0
        %2941 = vmatpush2.xpose.msra.mxu0 0.0
        %2942 = vmatprep.subr.mxu0 0.0
        %2943 = vmatpush2.xpose.msra.mxu0 0.0
        %2944 = vmatprep.subr.mxu0 0.0
        %2945 = vmatpush2.xpose.msra.mxu0 0.0
        %2946 = vmatprep.subr.mxu0 0.0
        %2947 = vmatpush2.xpose.msra.mxu0 0.0
        %2948 = vmatprep.subr.mxu0 0.0
        %2949 = vmatpush2.xpose.msra.mxu0 0.0
        %2950 = vmatprep.subr.mxu0 0.0
        %2951 = vmatpush2.xpose.msra.mxu0 0.0
        %2952 = vmatprep.mubr.f32.mxu0 0.0
        %2953 = vmatmul.mubr.f32.gmra.mxu0 %v2883
        %v2954 = vpop.f32.mrf.mxu0
        %v2955 = vadd.f32 %v274, %v2954
        %v2956 = vpop.f32.mrf.mxu0
        %2957 = vdwg.mxu0
        %v2958 = vsel %vm580, %v2727, -inf
        %2959 = vmax.xlane.f32.xlu0 %v2958
        %v2960 = vpop.xlane.xlu0 %2959
        %v2961 = vsel %vm580, %v2803, -inf
        %2962 = vmax.xlane.f32.xlu0 %v2961
        %v2963 = vpop.xlane.xlu0 %2962
        %v2964 = vsel %vm580, %v2879, -inf
        %2965 = vmax.xlane.f32.xlu0 %v2964
        %v2966 = vpop.xlane.xlu0 %2965
        %v2967 = vsel %vm580, %v2955, -inf
        %2968 = vmax.xlane.f32.xlu0 %v2967
        %v2969 = vpop.xlane.xlu0 %2968
        %v2970 = vsub.f32 %v2727, %v2960
        %v2971 = vsub.f32 %v2803, %v2963
        %v2972 = vsub.f32 %v2879, %v2966
        %v2973 = vsub.f32 %v2955, %v2969
        %v2974 = vmul.f32 %v2970, 1.442695
        %v2975 = vpow.pop %v2974
        %v2976 = vmul.f32 %v2971, 1.442695
        %v2977 = vpow.pop %v2976
        %v2978 = vmul.f32 %v2972, 1.442695
        %v2979 = vpow.pop %v2978
        %v2980 = vmul.f32 %v2973, 1.442695
        %v2981 = vpow.pop %v2980
        %v2982 = vsel %vm580, %v2975, 0.0
        %2983 = vadd.xlane.f32.xlu0 %v2982
        %v2984 = vpop.xlane.xlu0 %2983
        %v2985 = vsel %vm580, %v2977, 0.0
        %2986 = vadd.xlane.f32.xlu0 %v2985
        %v2987 = vpop.xlane.xlu0 %2986
        %v2988 = vsel %vm580, %v2979, 0.0
        %2989 = vadd.xlane.f32.xlu0 %v2988
        %v2990 = vpop.xlane.xlu0 %2989
        %v2991 = vsel %vm580, %v2981, 0.0
        %2992 = vadd.xlane.f32.xlu0 %v2991
        %v2993 = vpop.xlane.xlu0 %2992
        %v2994 = vrcp.pop %v2984
        %v2995 = vrcp.pop %v2987
        %v2996 = vrcp.pop %v2990
        %v2997 = vrcp.pop %v2993
        %v2998 = vmul.f32 %v2975, %v2994
        %v2999 = vmul.f32 %v2977, %v2995
        %v3000 = vmul.f32 %v2979, %v2996
        %v3001 = vmul.f32 %v2981, %v2997
        %v3002 = vadd.f32 %v1868, %v2998
        %v3003 = vadd.f32 %v1869, %v2999
        %v3004 = vadd.f32 %v1870, %v3000
        %v3005 = vadd.f32 %v1871, %v3001
        %v3007 = vsel %vm580, %v2998, 0
        %3009 = vmatprep.subr.mxu0 0.0
        %3010 = vmatpush1.msra.mxu0 0.0
        %3011 = vmatprep.subr.mxu0 0.0
        %3012 = vmatpush1.msra.mxu0 0.0
        %3013 = vmatprep.subr.mxu0 0.0
        %3014 = vmatpush1.msra.mxu0 0.0
        %3015 = vmatprep.subr.mxu0 0.0
        %3016 = vmatpush1.msra.mxu0 0.0
        %3017 = vmatprep.subr.mxu0 0.0
        %3018 = vmatpush1.msra.mxu0 0.0
        %3019 = vmatprep.subr.mxu0 0.0
        %3020 = vmatpush1.msra.mxu0 0.0
        %3021 = vmatprep.subr.mxu0 0.0
        %3022 = vmatpush1.msra.mxu0 0.0
        %3023 = vmatprep.subr.mxu0 0.0
        %3024 = vmatpush1.msra.mxu0 0.0
        %3025 = vmatprep.subr.mxu0 0.0
        %3026 = vmatpush1.msra.mxu0 0.0
        %3027 = vmatprep.subr.mxu0 0.0
        %3028 = vmatpush1.msra.mxu0 0.0
        %3029 = vmatprep.subr.mxu0 0.0
        %3030 = vmatpush1.msra.mxu0 0.0
        %3031 = vmatprep.subr.mxu0 0.0
        %3032 = vmatpush1.msra.mxu0 0.0
        %3033 = vmatprep.subr.mxu0 0.0
        %3034 = vmatpush1.msra.mxu0 0.0
        %3035 = vmatprep.subr.mxu0 0.0
        %3036 = vmatpush1.msra.mxu0 0.0
        %3037 = vmatprep.subr.mxu0 0.0
        %3038 = vmatpush1.msra.mxu0 0.0
        %3039 = vmatprep.subr.mxu0 0.0
        %3040 = vmatpush1.msra.mxu0 %v2636
        %3041 = vmatprep.subr.mxu0 0.0
        %3042 = vmatpush2.msra.mxu0 0.0
        %3043 = vmatprep.subr.mxu0 0.0
        %3044 = vmatpush2.msra.mxu0 0.0
        %3045 = vmatprep.subr.mxu0 0.0
        %3046 = vmatpush2.msra.mxu0 0.0
        %3047 = vmatprep.subr.mxu0 0.0
        %3048 = vmatpush2.msra.mxu0 0.0
        %3049 = vmatprep.subr.mxu0 0.0
        %3050 = vmatpush2.msra.mxu0 0.0
        %3051 = vmatprep.subr.mxu0 0.0
        %3052 = vmatpush2.msra.mxu0 0.0
        %3053 = vmatprep.subr.mxu0 0.0
        %3054 = vmatpush2.msra.mxu0 0.0
        %3055 = vmatprep.subr.mxu0 0.0
        %3056 = vmatpush2.msra.mxu0 0.0
        %3057 = vmatprep.subr.mxu0 0.0
        %3058 = vmatpush2.msra.mxu0 0.0
        %3059 = vmatprep.subr.mxu0 0.0
        %3060 = vmatpush2.msra.mxu0 0.0
        %3061 = vmatprep.subr.mxu0 0.0
        %3062 = vmatpush2.msra.mxu0 0.0
        %3063 = vmatprep.subr.mxu0 0.0
        %3064 = vmatpush2.msra.mxu0 0.0
        %3065 = vmatprep.subr.mxu0 0.0
        %3066 = vmatpush2.msra.mxu0 0.0
        %3067 = vmatprep.subr.mxu0 0.0
        %3068 = vmatpush2.msra.mxu0 0.0
        %3069 = vmatprep.subr.mxu0 0.0
        %3070 = vmatpush2.msra.mxu0 0.0
        %3071 = vmatprep.subr.mxu0 0.0
        %3072 = vmatpush2.msra.mxu0 0.0
        %3073 = vmatprep.mubr.f32.mxu0 0.0
        %3074 = vmatmul.mubr.f32.gmra.mxu0 %v3007
        %v3075 = vpop.f32.mrf.mxu0
        %v3076 = vadd.f32 0.0, %v3075
        %v3077 = vpop.f32.mrf.mxu0
        %3078 = vdwg.mxu0
        %v3080 = vsel %vm580, %v2999, 0
        %3082 = vmatprep.subr.mxu0 0.0
        %3083 = vmatpush1.msra.mxu0 0.0
        %3084 = vmatprep.subr.mxu0 0.0
        %3085 = vmatpush1.msra.mxu0 0.0
        %3086 = vmatprep.subr.mxu0 0.0
        %3087 = vmatpush1.msra.mxu0 0.0
        %3088 = vmatprep.subr.mxu0 0.0
        %3089 = vmatpush1.msra.mxu0 0.0
        %3090 = vmatprep.subr.mxu0 0.0
        %3091 = vmatpush1.msra.mxu0 0.0
        %3092 = vmatprep.subr.mxu0 0.0
        %3093 = vmatpush1.msra.mxu0 0.0
        %3094 = vmatprep.subr.mxu0 0.0
        %3095 = vmatpush1.msra.mxu0 0.0
        %3096 = vmatprep.subr.mxu0 0.0
        %3097 = vmatpush1.msra.mxu0 0.0
        %3098 = vmatprep.subr.mxu0 0.0
        %3099 = vmatpush1.msra.mxu0 0.0
        %3100 = vmatprep.subr.mxu0 0.0
        %3101 = vmatpush1.msra.mxu0 0.0
        %3102 = vmatprep.subr.mxu0 0.0
        %3103 = vmatpush1.msra.mxu0 0.0
        %3104 = vmatprep.subr.mxu0 0.0
        %3105 = vmatpush1.msra.mxu0 0.0
        %3106 = vmatprep.subr.mxu0 0.0
        %3107 = vmatpush1.msra.mxu0 0.0
        %3108 = vmatprep.subr.mxu0 0.0
        %3109 = vmatpush1.msra.mxu0 0.0
        %3110 = vmatprep.subr.mxu0 0.0
        %3111 = vmatpush1.msra.mxu0 0.0
        %3112 = vmatprep.subr.mxu0 0.0
        %3113 = vmatpush1.msra.mxu0 %v2641
        %3114 = vmatprep.subr.mxu0 0.0
        %3115 = vmatpush2.msra.mxu0 0.0
        %3116 = vmatprep.subr.mxu0 0.0
        %3117 = vmatpush2.msra.mxu0 0.0
        %3118 = vmatprep.subr.mxu0 0.0
        %3119 = vmatpush2.msra.mxu0 0.0
        %3120 = vmatprep.subr.mxu0 0.0
        %3121 = vmatpush2.msra.mxu0 0.0
        %3122 = vmatprep.subr.mxu0 0.0
        %3123 = vmatpush2.msra.mxu0 0.0
        %3124 = vmatprep.subr.mxu0 0.0
        %3125 = vmatpush2.msra.mxu0 0.0
        %3126 = vmatprep.subr.mxu0 0.0
        %3127 = vmatpush2.msra.mxu0 0.0
        %3128 = vmatprep.subr.mxu0 0.0
        %3129 = vmatpush2.msra.mxu0 0.0
        %3130 = vmatprep.subr.mxu0 0.0
        %3131 = vmatpush2.msra.mxu0 0.0
        %3132 = vmatprep.subr.mxu0 0.0
        %3133 = vmatpush2.msra.mxu0 0.0
        %3134 = vmatprep.subr.mxu0 0.0
        %3135 = vmatpush2.msra.mxu0 0.0
        %3136 = vmatprep.subr.mxu0 0.0
        %3137 = vmatpush2.msra.mxu0 0.0
        %3138 = vmatprep.subr.mxu0 0.0
        %3139 = vmatpush2.msra.mxu0 0.0
        %3140 = vmatprep.subr.mxu0 0.0
        %3141 = vmatpush2.msra.mxu0 0.0
        %3142 = vmatprep.subr.mxu0 0.0
        %3143 = vmatpush2.msra.mxu0 0.0
        %3144 = vmatprep.subr.mxu0 0.0
        %3145 = vmatpush2.msra.mxu0 0.0
        %3146 = vmatprep.mubr.f32.mxu0 0.0
        %3147 = vmatmul.mubr.f32.gmra.mxu0 %v3080
        %v3148 = vpop.f32.mrf.mxu0
        %v3149 = vadd.f32 0.0, %v3148
        %v3150 = vpop.f32.mrf.mxu0
        %3151 = vdwg.mxu0
        %v3153 = vsel %vm580, %v3000, 0
        %3155 = vmatprep.subr.mxu0 0.0
        %3156 = vmatpush1.msra.mxu0 0.0
        %3157 = vmatprep.subr.mxu0 0.0
        %3158 = vmatpush1.msra.mxu0 0.0
        %3159 = vmatprep.subr.mxu0 0.0
        %3160 = vmatpush1.msra.mxu0 0.0
        %3161 = vmatprep.subr.mxu0 0.0
        %3162 = vmatpush1.msra.mxu0 0.0
        %3163 = vmatprep.subr.mxu0 0.0
        %3164 = vmatpush1.msra.mxu0 0.0
        %3165 = vmatprep.subr.mxu0 0.0
        %3166 = vmatpush1.msra.mxu0 0.0
        %3167 = vmatprep.subr.mxu0 0.0
        %3168 = vmatpush1.msra.mxu0 0.0
        %3169 = vmatprep.subr.mxu0 0.0
        %3170 = vmatpush1.msra.mxu0 0.0
        %3171 = vmatprep.subr.mxu0 0.0
        %3172 = vmatpush1.msra.mxu0 0.0
        %3173 = vmatprep.subr.mxu0 0.0
        %3174 = vmatpush1.msra.mxu0 0.0
        %3175 = vmatprep.subr.mxu0 0.0
        %3176 = vmatpush1.msra.mxu0 0.0
        %3177 = vmatprep.subr.mxu0 0.0
        %3178 = vmatpush1.msra.mxu0 0.0
        %3179 = vmatprep.subr.mxu0 0.0
        %3180 = vmatpush1.msra.mxu0 0.0
        %3181 = vmatprep.subr.mxu0 0.0
        %3182 = vmatpush1.msra.mxu0 0.0
        %3183 = vmatprep.subr.mxu0 0.0
        %3184 = vmatpush1.msra.mxu0 0.0
        %3185 = vmatprep.subr.mxu0 0.0
        %3186 = vmatpush1.msra.mxu0 %v2646
        %3187 = vmatprep.subr.mxu0 0.0
        %3188 = vmatpush2.msra.mxu0 0.0
        %3189 = vmatprep.subr.mxu0 0.0
        %3190 = vmatpush2.msra.mxu0 0.0
        %3191 = vmatprep.subr.mxu0 0.0
        %3192 = vmatpush2.msra.mxu0 0.0
        %3193 = vmatprep.subr.mxu0 0.0
        %3194 = vmatpush2.msra.mxu0 0.0
        %3195 = vmatprep.subr.mxu0 0.0
        %3196 = vmatpush2.msra.mxu0 0.0
        %3197 = vmatprep.subr.mxu0 0.0
        %3198 = vmatpush2.msra.mxu0 0.0
        %3199 = vmatprep.subr.mxu0 0.0
        %3200 = vmatpush2.msra.mxu0 0.0
        %3201 = vmatprep.subr.mxu0 0.0
        %3202 = vmatpush2.msra.mxu0 0.0
        %3203 = vmatprep.subr.mxu0 0.0
        %3204 = vmatpush2.msra.mxu0 0.0
        %3205 = vmatprep.subr.mxu0 0.0
        %3206 = vmatpush2.msra.mxu0 0.0
        %3207 = vmatprep.subr.mxu0 0.0
        %3208 = vmatpush2.msra.mxu0 0.0
        %3209 = vmatprep.subr.mxu0 0.0
        %3210 = vmatpush2.msra.mxu0 0.0
        %3211 = vmatprep.subr.mxu0 0.0
        %3212 = vmatpush2.msra.mxu0 0.0
        %3213 = vmatprep.subr.mxu0 0.0
        %3214 = vmatpush2.msra.mxu0 0.0
        %3215 = vmatprep.subr.mxu0 0.0
        %3216 = vmatpush2.msra.mxu0 0.0
        %3217 = vmatprep.subr.mxu0 0.0
        %3218 = vmatpush2.msra.mxu0 0.0
        %3219 = vmatprep.mubr.f32.mxu0 0.0
        %3220 = vmatmul.mubr.f32.gmra.mxu0 %v3153
        %v3221 = vpop.f32.mrf.mxu0
        %v3222 = vadd.f32 0.0, %v3221
        %v3223 = vpop.f32.mrf.mxu0
        %3224 = vdwg.mxu0
        %v3226 = vsel %vm580, %v3001, 0
        %3228 = vmatprep.subr.mxu0 0.0
        %3229 = vmatpush1.msra.mxu0 0.0
        %3230 = vmatprep.subr.mxu0 0.0
        %3231 = vmatpush1.msra.mxu0 0.0
        %3232 = vmatprep.subr.mxu0 0.0
        %3233 = vmatpush1.msra.mxu0 0.0
        %3234 = vmatprep.subr.mxu0 0.0
        %3235 = vmatpush1.msra.mxu0 0.0
        %3236 = vmatprep.subr.mxu0 0.0
        %3237 = vmatpush1.msra.mxu0 0.0
        %3238 = vmatprep.subr.mxu0 0.0
        %3239 = vmatpush1.msra.mxu0 0.0
        %3240 = vmatprep.subr.mxu0 0.0
        %3241 = vmatpush1.msra.mxu0 0.0
        %3242 = vmatprep.subr.mxu0 0.0
        %3243 = vmatpush1.msra.mxu0 0.0
        %3244 = vmatprep.subr.mxu0 0.0
        %3245 = vmatpush1.msra.mxu0 0.0
        %3246 = vmatprep.subr.mxu0 0.0
        %3247 = vmatpush1.msra.mxu0 0.0
        %3248 = vmatprep.subr.mxu0 0.0
        %3249 = vmatpush1.msra.mxu0 0.0
        %3250 = vmatprep.subr.mxu0 0.0
        %3251 = vmatpush1.msra.mxu0 0.0
        %3252 = vmatprep.subr.mxu0 0.0
        %3253 = vmatpush1.msra.mxu0 0.0
        %3254 = vmatprep.subr.mxu0 0.0
        %3255 = vmatpush1.msra.mxu0 0.0
        %3256 = vmatprep.subr.mxu0 0.0
        %3257 = vmatpush1.msra.mxu0 0.0
        %3258 = vmatprep.subr.mxu0 0.0
        %3259 = vmatpush1.msra.mxu0 %v2651
        %3260 = vmatprep.subr.mxu0 0.0
        %3261 = vmatpush2.msra.mxu0 0.0
        %3262 = vmatprep.subr.mxu0 0.0
        %3263 = vmatpush2.msra.mxu0 0.0
        %3264 = vmatprep.subr.mxu0 0.0
        %3265 = vmatpush2.msra.mxu0 0.0
        %3266 = vmatprep.subr.mxu0 0.0
        %3267 = vmatpush2.msra.mxu0 0.0
        %3268 = vmatprep.subr.mxu0 0.0
        %3269 = vmatpush2.msra.mxu0 0.0
        %3270 = vmatprep.subr.mxu0 0.0
        %3271 = vmatpush2.msra.mxu0 0.0
        %3272 = vmatprep.subr.mxu0 0.0
        %3273 = vmatpush2.msra.mxu0 0.0
        %3274 = vmatprep.subr.mxu0 0.0
        %3275 = vmatpush2.msra.mxu0 0.0
        %3276 = vmatprep.subr.mxu0 0.0
        %3277 = vmatpush2.msra.mxu0 0.0
        %3278 = vmatprep.subr.mxu0 0.0
        %3279 = vmatpush2.msra.mxu0 0.0
        %3280 = vmatprep.subr.mxu0 0.0
        %3281 = vmatpush2.msra.mxu0 0.0
        %3282 = vmatprep.subr.mxu0 0.0
        %3283 = vmatpush2.msra.mxu0 0.0
        %3284 = vmatprep.subr.mxu0 0.0
        %3285 = vmatpush2.msra.mxu0 0.0
        %3286 = vmatprep.subr.mxu0 0.0
        %3287 = vmatpush2.msra.mxu0 0.0
        %3288 = vmatprep.subr.mxu0 0.0
        %3289 = vmatpush2.msra.mxu0 0.0
        %3290 = vmatprep.subr.mxu0 0.0
        %3291 = vmatpush2.msra.mxu0 0.0
        %3292 = vmatprep.mubr.f32.mxu0 0.0
        %3293 = vmatmul.mubr.f32.gmra.mxu0 %v3226
        %v3294 = vpop.f32.mrf.mxu0
        %v3295 = vadd.f32 0.0, %v3294
        %v3296 = vpop.f32.mrf.mxu0
        %3297 = vdwg.mxu0
        %s3298 = scalar_lea.vmem %s3, 16
        %v3299 = vld [vmem:[%s3298] sm:$0xff]
        %v3301 = vsel %vm580, %v3076, 0
        %v3304 = vsel %vm580, %v3149, 0
        %v3307 = vsel %vm580, %v3222, 0
        %v3310 = vsel %vm580, %v3295, 0
        %3312 = vmatprep.subr.mxu0 0.0
        %3313 = vmatpush1.msra.mxu0 0.0
        %3314 = vmatprep.subr.mxu0 0.0
        %3315 = vmatpush1.msra.mxu0 0.0
        %3316 = vmatprep.subr.mxu0 0.0
        %3317 = vmatpush1.msra.mxu0 0.0
        %3318 = vmatprep.subr.mxu0 0.0
        %3319 = vmatpush1.msra.mxu0 0.0
        %3320 = vmatprep.subr.mxu0 0.0
        %3321 = vmatpush1.msra.mxu0 0.0
        %3322 = vmatprep.subr.mxu0 0.0
        %3323 = vmatpush1.msra.mxu0 0.0
        %3324 = vmatprep.subr.mxu0 0.0
        %3325 = vmatpush1.msra.mxu0 0.0
        %3326 = vmatprep.subr.mxu0 0.0
        %3327 = vmatpush1.msra.mxu0 0.0
        %3328 = vmatprep.subr.mxu0 0.0
        %3329 = vmatpush1.msra.mxu0 0.0
        %3330 = vmatprep.subr.mxu0 0.0
        %3331 = vmatpush1.msra.mxu0 0.0
        %3332 = vmatprep.subr.mxu0 0.0
        %3333 = vmatpush1.msra.mxu0 0.0
        %3334 = vmatprep.subr.mxu0 0.0
        %3335 = vmatpush1.msra.mxu0 0.0
        %3336 = vmatprep.subr.mxu0 0.0
        %3337 = vmatpush1.msra.mxu0 0.0
        %3338 = vmatprep.subr.mxu0 0.0
        %3339 = vmatpush1.msra.mxu0 0.0
        %3340 = vmatprep.subr.mxu0 0.0
        %3341 = vmatpush1.msra.mxu0 0.0
        %3342 = vmatprep.subr.mxu0 0.0
        %3343 = vmatpush1.msra.mxu0 %v3299
        %3344 = vmatprep.subr.mxu0 0.0
        %3345 = vmatpush2.msra.mxu0 0.0
        %3346 = vmatprep.subr.mxu0 0.0
        %3347 = vmatpush2.msra.mxu0 0.0
        %3348 = vmatprep.subr.mxu0 0.0
        %3349 = vmatpush2.msra.mxu0 0.0
        %3350 = vmatprep.subr.mxu0 0.0
        %3351 = vmatpush2.msra.mxu0 0.0
        %3352 = vmatprep.subr.mxu0 0.0
        %3353 = vmatpush2.msra.mxu0 0.0
        %3354 = vmatprep.subr.mxu0 0.0
        %3355 = vmatpush2.msra.mxu0 0.0
        %3356 = vmatprep.subr.mxu0 0.0
        %3357 = vmatpush2.msra.mxu0 0.0
        %3358 = vmatprep.subr.mxu0 0.0
        %3359 = vmatpush2.msra.mxu0 0.0
        %3360 = vmatprep.subr.mxu0 0.0
        %3361 = vmatpush2.msra.mxu0 0.0
        %3362 = vmatprep.subr.mxu0 0.0
        %3363 = vmatpush2.msra.mxu0 0.0
        %3364 = vmatprep.subr.mxu0 0.0
        %3365 = vmatpush2.msra.mxu0 0.0
        %3366 = vmatprep.subr.mxu0 0.0
        %3367 = vmatpush2.msra.mxu0 0.0
        %3368 = vmatprep.subr.mxu0 0.0
        %3369 = vmatpush2.msra.mxu0 0.0
        %3370 = vmatprep.subr.mxu0 0.0
        %3371 = vmatpush2.msra.mxu0 0.0
        %3372 = vmatprep.subr.mxu0 0.0
        %3373 = vmatpush2.msra.mxu0 0.0
        %3374 = vmatprep.subr.mxu0 0.0
        %3375 = vmatpush2.msra.mxu0 0.0
        %3376 = vmatprep.mubr.f32.mxu0 0.0
        %3377 = vmatmul.mubr.f32.gmra.mxu0 %v3301
        %v3378 = vpop.f32.mrf.mxu0
        %v3379 = vadd.f32 0.0, %v3378
        %v3380 = vpop.f32.mrf.mxu0
        %3381 = vmatprep.mubr.f32.mxu0 0.0
        %3382 = vmatmul.mubr.f32.gmra.mxu0 %v3304
        %v3383 = vpop.f32.mrf.mxu0
        %v3384 = vadd.f32 0.0, %v3383
        %v3385 = vpop.f32.mrf.mxu0
        %3386 = vmatprep.mubr.f32.mxu0 0.0
        %3387 = vmatmul.mubr.f32.gmra.mxu0 %v3307
        %v3388 = vpop.f32.mrf.mxu0
        %v3389 = vadd.f32 0.0, %v3388
        %v3390 = vpop.f32.mrf.mxu0
        %3391 = vmatprep.mubr.f32.mxu0 0.0
        %3392 = vmatmul.mubr.f32.gmra.mxu0 %v3310
        %v3393 = vpop.f32.mrf.mxu0
        %v3394 = vadd.f32 0.0, %v3393
        %v3395 = vpop.f32.mrf.mxu0
        %3396 = vdwg.mxu0
        %v3397 = vadd.f32 %v2342, %v3379
        %v3398 = vadd.f32 %v2347, %v3384
        %v3399 = vadd.f32 %v2352, %v3389
        %v3400 = vadd.f32 %v2357, %v3394
        %s3401 = scalar_lea.vmem %s1, 96
        %v3402 = vld [vmem:[%s3401] sm:$0xff]
        %v3403 = vld [vmem:[%s3401 + $0x8] sm:$0xff]
        %v3404 = vld [vmem:[%s3401 + $0x10] sm:$0xff]
        %v3405 = vld [vmem:[%s3401 + $0x18] sm:$0xff]
        %s3406 = scalar_lea.vmem %s1, 224
        %v3407 = vld [vmem:[%s3406] sm:$0xff]
        %v3408 = vld [vmem:[%s3406 + $0x8] sm:$0xff]
        %v3409 = vld [vmem:[%s3406 + $0x10] sm:$0xff]
        %v3410 = vld [vmem:[%s3406 + $0x18] sm:$0xff]
        %s3411 = scalar_lea.vmem %s1, 352
        %v3412 = vld [vmem:[%s3411] sm:$0xff]
        %v3413 = vld [vmem:[%s3411 + $0x8] sm:$0xff]
        %v3414 = vld [vmem:[%s3411 + $0x10] sm:$0xff]
        %v3415 = vld [vmem:[%s3411 + $0x18] sm:$0xff]
        %s3416 = scalar_lea.vmem %s2, 3
        %v3417 = vld [vmem:[%s3416] sm:$0x1]
        %s3418 = scalar_lea.vmem %s2, 7
        %v3419 = vld [vmem:[%s3418] sm:$0x1]
        %s3420 = scalar_lea.vmem %s2, 11
        %v3421 = vld [vmem:[%s3420] sm:$0x1]
        %v3423 = vlaneseq
        %v3424 = vshrl.u32 %v3423, 7
        %v3425 = vsub.s32 0, %v3424
        %v3426 = vrot.slane %v3417, %v3425
        %3428 = vmatprep.subr.mxu0 0.0
        %3429 = vmatpush1.msra.mxu0 0.0
        %3430 = vmatprep.subr.mxu0 0.0
        %3431 = vmatpush1.msra.mxu0 0.0
        %3432 = vmatprep.subr.mxu0 0.0
        %3433 = vmatpush1.msra.mxu0 0.0
        %3434 = vmatprep.subr.mxu0 0.0
        %3435 = vmatpush1.msra.mxu0 0.0
        %3436 = vmatprep.subr.mxu0 0.0
        %3437 = vmatpush1.msra.mxu0 0.0
        %3438 = vmatprep.subr.mxu0 0.0
        %3439 = vmatpush1.msra.mxu0 0.0
        %3440 = vmatprep.subr.mxu0 0.0
        %3441 = vmatpush1.msra.mxu0 0.0
        %3442 = vmatprep.subr.mxu0 0.0
        %3443 = vmatpush1.msra.mxu0 0.0
        %3444 = vmatprep.subr.mxu0 0.0
        %3445 = vmatpush1.msra.mxu0 0.0
        %3446 = vmatprep.subr.mxu0 0.0
        %3447 = vmatpush1.msra.mxu0 0.0
        %3448 = vmatprep.subr.mxu0 0.0
        %3449 = vmatpush1.msra.mxu0 0.0
        %3450 = vmatprep.subr.mxu0 0.0
        %3451 = vmatpush1.msra.mxu0 0.0
        %3452 = vmatprep.subr.mxu0 0.0
        %3453 = vmatpush1.msra.mxu0 %v3405
        %3454 = vmatprep.subr.mxu0 0.0
        %3455 = vmatpush1.msra.mxu0 %v3404
        %3456 = vmatprep.subr.mxu0 0.0
        %3457 = vmatpush1.msra.mxu0 %v3403
        %3458 = vmatprep.subr.mxu0 0.0
        %3459 = vmatpush1.msra.mxu0 %v3402
        %3460 = vmatprep.subr.mxu0 0.0
        %3461 = vmatpush2.msra.mxu0 0.0
        %3462 = vmatprep.subr.mxu0 0.0
        %3463 = vmatpush2.msra.mxu0 0.0
        %3464 = vmatprep.subr.mxu0 0.0
        %3465 = vmatpush2.msra.mxu0 0.0
        %3466 = vmatprep.subr.mxu0 0.0
        %3467 = vmatpush2.msra.mxu0 0.0
        %3468 = vmatprep.subr.mxu0 0.0
        %3469 = vmatpush2.msra.mxu0 0.0
        %3470 = vmatprep.subr.mxu0 0.0
        %3471 = vmatpush2.msra.mxu0 0.0
        %3472 = vmatprep.subr.mxu0 0.0
        %3473 = vmatpush2.msra.mxu0 0.0
        %3474 = vmatprep.subr.mxu0 0.0
        %3475 = vmatpush2.msra.mxu0 0.0
        %3476 = vmatprep.subr.mxu0 0.0
        %3477 = vmatpush2.msra.mxu0 0.0
        %3478 = vmatprep.subr.mxu0 0.0
        %3479 = vmatpush2.msra.mxu0 0.0
        %3480 = vmatprep.subr.mxu0 0.0
        %3481 = vmatpush2.msra.mxu0 0.0
        %3482 = vmatprep.subr.mxu0 0.0
        %3483 = vmatpush2.msra.mxu0 0.0
        %3484 = vmatprep.subr.mxu0 0.0
        %3485 = vmatpush2.msra.mxu0 0.0
        %3486 = vmatprep.subr.mxu0 0.0
        %3487 = vmatpush2.msra.mxu0 0.0
        %3488 = vmatprep.subr.mxu0 0.0
        %3489 = vmatpush2.msra.mxu0 0.0
        %3490 = vmatprep.subr.mxu0 0.0
        %3491 = vmatpush2.msra.mxu0 0.0
        %3492 = vmatprep.mubr.f32.mxu0 0.0
        %3493 = vmatmul.mubr.f32.gmra.mxu0 %v302
        %v3494 = vpop.f32.mrf.mxu0
        %v3495 = vadd.f32 %v3426, %v3494
        %v3496 = vpop.f32.mrf.mxu0
        %3497 = vmatprep.mubr.f32.mxu0 0.0
        %3498 = vmatmul.mubr.f32.gmra.mxu0 %v305
        %v3499 = vpop.f32.mrf.mxu0
        %v3500 = vadd.f32 %v3426, %v3499
        %v3501 = vpop.f32.mrf.mxu0
        %3502 = vmatprep.mubr.f32.mxu0 0.0
        %3503 = vmatmul.mubr.f32.gmra.mxu0 %v308
        %v3504 = vpop.f32.mrf.mxu0
        %v3505 = vadd.f32 %v3426, %v3504
        %v3506 = vpop.f32.mrf.mxu0
        %3507 = vmatprep.mubr.f32.mxu0 0.0
        %3508 = vmatmul.mubr.f32.gmra.mxu0 %v311
        %v3509 = vpop.f32.mrf.mxu0
        %v3510 = vadd.f32 %v3426, %v3509
        %v3511 = vpop.f32.mrf.mxu0
        %3512 = vdwg.mxu0
        %v3514 = vlaneseq
        %v3515 = vshrl.u32 %v3514, 7
        %v3516 = vsub.s32 0, %v3515
        %v3517 = vrot.slane %v3419, %v3516
        %3519 = vmatprep.subr.mxu0 0.0
        %3520 = vmatpush1.msra.mxu0 0.0
        %3521 = vmatprep.subr.mxu0 0.0
        %3522 = vmatpush1.msra.mxu0 0.0
        %3523 = vmatprep.subr.mxu0 0.0
        %3524 = vmatpush1.msra.mxu0 0.0
        %3525 = vmatprep.subr.mxu0 0.0
        %3526 = vmatpush1.msra.mxu0 0.0
        %3527 = vmatprep.subr.mxu0 0.0
        %3528 = vmatpush1.msra.mxu0 0.0
        %3529 = vmatprep.subr.mxu0 0.0
        %3530 = vmatpush1.msra.mxu0 0.0
        %3531 = vmatprep.subr.mxu0 0.0
        %3532 = vmatpush1.msra.mxu0 0.0
        %3533 = vmatprep.subr.mxu0 0.0
        %3534 = vmatpush1.msra.mxu0 0.0
        %3535 = vmatprep.subr.mxu0 0.0
        %3536 = vmatpush1.msra.mxu0 0.0
        %3537 = vmatprep.subr.mxu0 0.0
        %3538 = vmatpush1.msra.mxu0 0.0
        %3539 = vmatprep.subr.mxu0 0.0
        %3540 = vmatpush1.msra.mxu0 0.0
        %3541 = vmatprep.subr.mxu0 0.0
        %3542 = vmatpush1.msra.mxu0 0.0
        %3543 = vmatprep.subr.mxu0 0.0
        %3544 = vmatpush1.msra.mxu0 %v3410
        %3545 = vmatprep.subr.mxu0 0.0
        %3546 = vmatpush1.msra.mxu0 %v3409
        %3547 = vmatprep.subr.mxu0 0.0
        %3548 = vmatpush1.msra.mxu0 %v3408
        %3549 = vmatprep.subr.mxu0 0.0
        %3550 = vmatpush1.msra.mxu0 %v3407
        %3551 = vmatprep.subr.mxu0 0.0
        %3552 = vmatpush2.msra.mxu0 0.0
        %3553 = vmatprep.subr.mxu0 0.0
        %3554 = vmatpush2.msra.mxu0 0.0
        %3555 = vmatprep.subr.mxu0 0.0
        %3556 = vmatpush2.msra.mxu0 0.0
        %3557 = vmatprep.subr.mxu0 0.0
        %3558 = vmatpush2.msra.mxu0 0.0
        %3559 = vmatprep.subr.mxu0 0.0
        %3560 = vmatpush2.msra.mxu0 0.0
        %3561 = vmatprep.subr.mxu0 0.0
        %3562 = vmatpush2.msra.mxu0 0.0
        %3563 = vmatprep.subr.mxu0 0.0
        %3564 = vmatpush2.msra.mxu0 0.0
        %3565 = vmatprep.subr.mxu0 0.0
        %3566 = vmatpush2.msra.mxu0 0.0
        %3567 = vmatprep.subr.mxu0 0.0
        %3568 = vmatpush2.msra.mxu0 0.0
        %3569 = vmatprep.subr.mxu0 0.0
        %3570 = vmatpush2.msra.mxu0 0.0
        %3571 = vmatprep.subr.mxu0 0.0
        %3572 = vmatpush2.msra.mxu0 0.0
        %3573 = vmatprep.subr.mxu0 0.0
        %3574 = vmatpush2.msra.mxu0 0.0
        %3575 = vmatprep.subr.mxu0 0.0
        %3576 = vmatpush2.msra.mxu0 0.0
        %3577 = vmatprep.subr.mxu0 0.0
        %3578 = vmatpush2.msra.mxu0 0.0
        %3579 = vmatprep.subr.mxu0 0.0
        %3580 = vmatpush2.msra.mxu0 0.0
        %3581 = vmatprep.subr.mxu0 0.0
        %3582 = vmatpush2.msra.mxu0 0.0
        %3583 = vmatprep.mubr.f32.mxu0 0.0
        %3584 = vmatmul.mubr.f32.gmra.mxu0 %v302
        %v3585 = vpop.f32.mrf.mxu0
        %v3586 = vadd.f32 %v3517, %v3585
        %v3587 = vpop.f32.mrf.mxu0
        %3588 = vmatprep.mubr.f32.mxu0 0.0
        %3589 = vmatmul.mubr.f32.gmra.mxu0 %v305
        %v3590 = vpop.f32.mrf.mxu0
        %v3591 = vadd.f32 %v3517, %v3590
        %v3592 = vpop.f32.mrf.mxu0
        %3593 = vmatprep.mubr.f32.mxu0 0.0
        %3594 = vmatmul.mubr.f32.gmra.mxu0 %v308
        %v3595 = vpop.f32.mrf.mxu0
        %v3596 = vadd.f32 %v3517, %v3595
        %v3597 = vpop.f32.mrf.mxu0
        %3598 = vmatprep.mubr.f32.mxu0 0.0
        %3599 = vmatmul.mubr.f32.gmra.mxu0 %v311
        %v3600 = vpop.f32.mrf.mxu0
        %v3601 = vadd.f32 %v3517, %v3600
        %v3602 = vpop.f32.mrf.mxu0
        %3603 = vdwg.mxu0
        %v3605 = vlaneseq
        %v3606 = vshrl.u32 %v3605, 7
        %v3607 = vsub.s32 0, %v3606
        %v3608 = vrot.slane %v3421, %v3607
        %3610 = vmatprep.subr.mxu0 0.0
        %3611 = vmatpush1.msra.mxu0 0.0
        %3612 = vmatprep.subr.mxu0 0.0
        %3613 = vmatpush1.msra.mxu0 0.0
        %3614 = vmatprep.subr.mxu0 0.0
        %3615 = vmatpush1.msra.mxu0 0.0
        %3616 = vmatprep.subr.mxu0 0.0
        %3617 = vmatpush1.msra.mxu0 0.0
        %3618 = vmatprep.subr.mxu0 0.0
        %3619 = vmatpush1.msra.mxu0 0.0
        %3620 = vmatprep.subr.mxu0 0.0
        %3621 = vmatpush1.msra.mxu0 0.0
        %3622 = vmatprep.subr.mxu0 0.0
        %3623 = vmatpush1.msra.mxu0 0.0
        %3624 = vmatprep.subr.mxu0 0.0
        %3625 = vmatpush1.msra.mxu0 0.0
        %3626 = vmatprep.subr.mxu0 0.0
        %3627 = vmatpush1.msra.mxu0 0.0
        %3628 = vmatprep.subr.mxu0 0.0
        %3629 = vmatpush1.msra.mxu0 0.0
        %3630 = vmatprep.subr.mxu0 0.0
        %3631 = vmatpush1.msra.mxu0 0.0
        %3632 = vmatprep.subr.mxu0 0.0
        %3633 = vmatpush1.msra.mxu0 0.0
        %3634 = vmatprep.subr.mxu0 0.0
        %3635 = vmatpush1.msra.mxu0 %v3415
        %3636 = vmatprep.subr.mxu0 0.0
        %3637 = vmatpush1.msra.mxu0 %v3414
        %3638 = vmatprep.subr.mxu0 0.0
        %3639 = vmatpush1.msra.mxu0 %v3413
        %3640 = vmatprep.subr.mxu0 0.0
        %3641 = vmatpush1.msra.mxu0 %v3412
        %3642 = vmatprep.subr.mxu0 0.0
        %3643 = vmatpush2.msra.mxu0 0.0
        %3644 = vmatprep.subr.mxu0 0.0
        %3645 = vmatpush2.msra.mxu0 0.0
        %3646 = vmatprep.subr.mxu0 0.0
        %3647 = vmatpush2.msra.mxu0 0.0
        %3648 = vmatprep.subr.mxu0 0.0
        %3649 = vmatpush2.msra.mxu0 0.0
        %3650 = vmatprep.subr.mxu0 0.0
        %3651 = vmatpush2.msra.mxu0 0.0
        %3652 = vmatprep.subr.mxu0 0.0
        %3653 = vmatpush2.msra.mxu0 0.0
        %3654 = vmatprep.subr.mxu0 0.0
        %3655 = vmatpush2.msra.mxu0 0.0
        %3656 = vmatprep.subr.mxu0 0.0
        %3657 = vmatpush2.msra.mxu0 0.0
        %3658 = vmatprep.subr.mxu0 0.0
        %3659 = vmatpush2.msra.mxu0 0.0
        %3660 = vmatprep.subr.mxu0 0.0
        %3661 = vmatpush2.msra.mxu0 0.0
        %3662 = vmatprep.subr.mxu0 0.0
        %3663 = vmatpush2.msra.mxu0 0.0
        %3664 = vmatprep.subr.mxu0 0.0
        %3665 = vmatpush2.msra.mxu0 0.0
        %3666 = vmatprep.subr.mxu0 0.0
        %3667 = vmatpush2.msra.mxu0 0.0
        %3668 = vmatprep.subr.mxu0 0.0
        %3669 = vmatpush2.msra.mxu0 0.0
        %3670 = vmatprep.subr.mxu0 0.0
        %3671 = vmatpush2.msra.mxu0 0.0
        %3672 = vmatprep.subr.mxu0 0.0
        %3673 = vmatpush2.msra.mxu0 0.0
        %3674 = vmatprep.mubr.f32.mxu0 0.0
        %3675 = vmatmul.mubr.f32.gmra.mxu0 %v302
        %v3676 = vpop.f32.mrf.mxu0
        %v3677 = vadd.f32 %v3608, %v3676
        %v3678 = vpop.f32.mrf.mxu0
        %3679 = vmatprep.mubr.f32.mxu0 0.0
        %3680 = vmatmul.mubr.f32.gmra.mxu0 %v305
        %v3681 = vpop.f32.mrf.mxu0
        %v3682 = vadd.f32 %v3608, %v3681
        %v3683 = vpop.f32.mrf.mxu0
        %3684 = vmatprep.mubr.f32.mxu0 0.0
        %3685 = vmatmul.mubr.f32.gmra.mxu0 %v308
        %v3686 = vpop.f32.mrf.mxu0
        %v3687 = vadd.f32 %v3608, %v3686
        %v3688 = vpop.f32.mrf.mxu0
        %3689 = vmatprep.mubr.f32.mxu0 0.0
        %3690 = vmatmul.mubr.f32.gmra.mxu0 %v311
        %v3691 = vpop.f32.mrf.mxu0
        %v3692 = vadd.f32 %v3608, %v3691
        %v3693 = vpop.f32.mrf.mxu0
        %3694 = vdwg.mxu0
        %v3696 = vsel %vm580, %v3495, 0
        %v3699 = vsel %vm580, %v3586, 0
        %3701 = vmatprep.subr.mxu0 0.0
        %3702 = vmatpush1.xpose.msra.mxu0 0.0
        %3703 = vmatprep.subr.mxu0 0.0
        %3704 = vmatpush1.xpose.msra.mxu0 0.0
        %3705 = vmatprep.subr.mxu0 0.0
        %3706 = vmatpush1.xpose.msra.mxu0 0.0
        %3707 = vmatprep.subr.mxu0 0.0
        %3708 = vmatpush1.xpose.msra.mxu0 0.0
        %3709 = vmatprep.subr.mxu0 0.0
        %3710 = vmatpush1.xpose.msra.mxu0 0.0
        %3711 = vmatprep.subr.mxu0 0.0
        %3712 = vmatpush1.xpose.msra.mxu0 0.0
        %3713 = vmatprep.subr.mxu0 0.0
        %3714 = vmatpush1.xpose.msra.mxu0 0.0
        %3715 = vmatprep.subr.mxu0 0.0
        %3716 = vmatpush1.xpose.msra.mxu0 0.0
        %3717 = vmatprep.subr.mxu0 0.0
        %3718 = vmatpush1.xpose.msra.mxu0 0.0
        %3719 = vmatprep.subr.mxu0 0.0
        %3720 = vmatpush1.xpose.msra.mxu0 0.0
        %3721 = vmatprep.subr.mxu0 0.0
        %3722 = vmatpush1.xpose.msra.mxu0 0.0
        %3723 = vmatprep.subr.mxu0 0.0
        %3724 = vmatpush1.xpose.msra.mxu0 0.0
        %3725 = vmatprep.subr.mxu0 0.0
        %3726 = vmatpush1.xpose.msra.mxu0 0.0
        %3727 = vmatprep.subr.mxu0 0.0
        %3728 = vmatpush1.xpose.msra.mxu0 0.0
        %3729 = vmatprep.subr.mxu0 0.0
        %3730 = vmatpush1.xpose.msra.mxu0 0.0
        %3731 = vmatprep.subr.mxu0 0.0
        %3732 = vmatpush1.xpose.msra.mxu0 %v3699
        %3733 = vmatprep.subr.mxu0 0.0
        %3734 = vmatpush2.xpose.msra.mxu0 0.0
        %3735 = vmatprep.subr.mxu0 0.0
        %3736 = vmatpush2.xpose.msra.mxu0 0.0
        %3737 = vmatprep.subr.mxu0 0.0
        %3738 = vmatpush2.xpose.msra.mxu0 0.0
        %3739 = vmatprep.subr.mxu0 0.0
        %3740 = vmatpush2.xpose.msra.mxu0 0.0
        %3741 = vmatprep.subr.mxu0 0.0
        %3742 = vmatpush2.xpose.msra.mxu0 0.0
        %3743 = vmatprep.subr.mxu0 0.0
        %3744 = vmatpush2.xpose.msra.mxu0 0.0
        %3745 = vmatprep.subr.mxu0 0.0
        %3746 = vmatpush2.xpose.msra.mxu0 0.0
        %3747 = vmatprep.subr.mxu0 0.0
        %3748 = vmatpush2.xpose.msra.mxu0 0.0
        %3749 = vmatprep.subr.mxu0 0.0
        %3750 = vmatpush2.xpose.msra.mxu0 0.0
        %3751 = vmatprep.subr.mxu0 0.0
        %3752 = vmatpush2.xpose.msra.mxu0 0.0
        %3753 = vmatprep.subr.mxu0 0.0
        %3754 = vmatpush2.xpose.msra.mxu0 0.0
        %3755 = vmatprep.subr.mxu0 0.0
        %3756 = vmatpush2.xpose.msra.mxu0 0.0
        %3757 = vmatprep.subr.mxu0 0.0
        %3758 = vmatpush2.xpose.msra.mxu0 0.0
        %3759 = vmatprep.subr.mxu0 0.0
        %3760 = vmatpush2.xpose.msra.mxu0 0.0
        %3761 = vmatprep.subr.mxu0 0.0
        %3762 = vmatpush2.xpose.msra.mxu0 0.0
        %3763 = vmatprep.subr.mxu0 0.0
        %3764 = vmatpush2.xpose.msra.mxu0 0.0
        %3765 = vmatprep.mubr.f32.mxu0 0.0
        %3766 = vmatmul.mubr.f32.gmra.mxu0 %v3696
        %v3767 = vpop.f32.mrf.mxu0
        %v3768 = vadd.f32 %v274, %v3767
        %v3769 = vpop.f32.mrf.mxu0
        %3770 = vdwg.mxu0
        %v3772 = vsel %vm580, %v3500, 0
        %v3775 = vsel %vm580, %v3591, 0
        %3777 = vmatprep.subr.mxu0 0.0
        %3778 = vmatpush1.xpose.msra.mxu0 0.0
        %3779 = vmatprep.subr.mxu0 0.0
        %3780 = vmatpush1.xpose.msra.mxu0 0.0
        %3781 = vmatprep.subr.mxu0 0.0
        %3782 = vmatpush1.xpose.msra.mxu0 0.0
        %3783 = vmatprep.subr.mxu0 0.0
        %3784 = vmatpush1.xpose.msra.mxu0 0.0
        %3785 = vmatprep.subr.mxu0 0.0
        %3786 = vmatpush1.xpose.msra.mxu0 0.0
        %3787 = vmatprep.subr.mxu0 0.0
        %3788 = vmatpush1.xpose.msra.mxu0 0.0
        %3789 = vmatprep.subr.mxu0 0.0
        %3790 = vmatpush1.xpose.msra.mxu0 0.0
        %3791 = vmatprep.subr.mxu0 0.0
        %3792 = vmatpush1.xpose.msra.mxu0 0.0
        %3793 = vmatprep.subr.mxu0 0.0
        %3794 = vmatpush1.xpose.msra.mxu0 0.0
        %3795 = vmatprep.subr.mxu0 0.0
        %3796 = vmatpush1.xpose.msra.mxu0 0.0
        %3797 = vmatprep.subr.mxu0 0.0
        %3798 = vmatpush1.xpose.msra.mxu0 0.0
        %3799 = vmatprep.subr.mxu0 0.0
        %3800 = vmatpush1.xpose.msra.mxu0 0.0
        %3801 = vmatprep.subr.mxu0 0.0
        %3802 = vmatpush1.xpose.msra.mxu0 0.0
        %3803 = vmatprep.subr.mxu0 0.0
        %3804 = vmatpush1.xpose.msra.mxu0 0.0
        %3805 = vmatprep.subr.mxu0 0.0
        %3806 = vmatpush1.xpose.msra.mxu0 0.0
        %3807 = vmatprep.subr.mxu0 0.0
        %3808 = vmatpush1.xpose.msra.mxu0 %v3775
        %3809 = vmatprep.subr.mxu0 0.0
        %3810 = vmatpush2.xpose.msra.mxu0 0.0
        %3811 = vmatprep.subr.mxu0 0.0
        %3812 = vmatpush2.xpose.msra.mxu0 0.0
        %3813 = vmatprep.subr.mxu0 0.0
        %3814 = vmatpush2.xpose.msra.mxu0 0.0
        %3815 = vmatprep.subr.mxu0 0.0
        %3816 = vmatpush2.xpose.msra.mxu0 0.0
        %3817 = vmatprep.subr.mxu0 0.0
        %3818 = vmatpush2.xpose.msra.mxu0 0.0
        %3819 = vmatprep.subr.mxu0 0.0
        %3820 = vmatpush2.xpose.msra.mxu0 0.0
        %3821 = vmatprep.subr.mxu0 0.0
        %3822 = vmatpush2.xpose.msra.mxu0 0.0
        %3823 = vmatprep.subr.mxu0 0.0
        %3824 = vmatpush2.xpose.msra.mxu0 0.0
        %3825 = vmatprep.subr.mxu0 0.0
        %3826 = vmatpush2.xpose.msra.mxu0 0.0
        %3827 = vmatprep.subr.mxu0 0.0
        %3828 = vmatpush2.xpose.msra.mxu0 0.0
        %3829 = vmatprep.subr.mxu0 0.0
        %3830 = vmatpush2.xpose.msra.mxu0 0.0
        %3831 = vmatprep.subr.mxu0 0.0
        %3832 = vmatpush2.xpose.msra.mxu0 0.0
        %3833 = vmatprep.subr.mxu0 0.0
        %3834 = vmatpush2.xpose.msra.mxu0 0.0
        %3835 = vmatprep.subr.mxu0 0.0
        %3836 = vmatpush2.xpose.msra.mxu0 0.0
        %3837 = vmatprep.subr.mxu0 0.0
        %3838 = vmatpush2.xpose.msra.mxu0 0.0
        %3839 = vmatprep.subr.mxu0 0.0
        %3840 = vmatpush2.xpose.msra.mxu0 0.0
        %3841 = vmatprep.mubr.f32.mxu0 0.0
        %3842 = vmatmul.mubr.f32.gmra.mxu0 %v3772
        %v3843 = vpop.f32.mrf.mxu0
        %v3844 = vadd.f32 %v274, %v3843
        %v3845 = vpop.f32.mrf.mxu0
        %3846 = vdwg.mxu0
        %v3848 = vsel %vm580, %v3505, 0
        %v3851 = vsel %vm580, %v3596, 0
        %3853 = vmatprep.subr.mxu0 0.0
        %3854 = vmatpush1.xpose.msra.mxu0 0.0
        %3855 = vmatprep.subr.mxu0 0.0
        %3856 = vmatpush1.xpose.msra.mxu0 0.0
        %3857 = vmatprep.subr.mxu0 0.0
        %3858 = vmatpush1.xpose.msra.mxu0 0.0
        %3859 = vmatprep.subr.mxu0 0.0
        %3860 = vmatpush1.xpose.msra.mxu0 0.0
        %3861 = vmatprep.subr.mxu0 0.0
        %3862 = vmatpush1.xpose.msra.mxu0 0.0
        %3863 = vmatprep.subr.mxu0 0.0
        %3864 = vmatpush1.xpose.msra.mxu0 0.0
        %3865 = vmatprep.subr.mxu0 0.0
        %3866 = vmatpush1.xpose.msra.mxu0 0.0
        %3867 = vmatprep.subr.mxu0 0.0
        %3868 = vmatpush1.xpose.msra.mxu0 0.0
        %3869 = vmatprep.subr.mxu0 0.0
        %3870 = vmatpush1.xpose.msra.mxu0 0.0
        %3871 = vmatprep.subr.mxu0 0.0
        %3872 = vmatpush1.xpose.msra.mxu0 0.0
        %3873 = vmatprep.subr.mxu0 0.0
        %3874 = vmatpush1.xpose.msra.mxu0 0.0
        %3875 = vmatprep.subr.mxu0 0.0
        %3876 = vmatpush1.xpose.msra.mxu0 0.0
        %3877 = vmatprep.subr.mxu0 0.0
        %3878 = vmatpush1.xpose.msra.mxu0 0.0
        %3879 = vmatprep.subr.mxu0 0.0
        %3880 = vmatpush1.xpose.msra.mxu0 0.0
        %3881 = vmatprep.subr.mxu0 0.0
        %3882 = vmatpush1.xpose.msra.mxu0 0.0
        %3883 = vmatprep.subr.mxu0 0.0
        %3884 = vmatpush1.xpose.msra.mxu0 %v3851
        %3885 = vmatprep.subr.mxu0 0.0
        %3886 = vmatpush2.xpose.msra.mxu0 0.0
        %3887 = vmatprep.subr.mxu0 0.0
        %3888 = vmatpush2.xpose.msra.mxu0 0.0
        %3889 = vmatprep.subr.mxu0 0.0
        %3890 = vmatpush2.xpose.msra.mxu0 0.0
        %3891 = vmatprep.subr.mxu0 0.0
        %3892 = vmatpush2.xpose.msra.mxu0 0.0
        %3893 = vmatprep.subr.mxu0 0.0
        %3894 = vmatpush2.xpose.msra.mxu0 0.0
        %3895 = vmatprep.subr.mxu0 0.0
        %3896 = vmatpush2.xpose.msra.mxu0 0.0
        %3897 = vmatprep.subr.mxu0 0.0
        %3898 = vmatpush2.xpose.msra.mxu0 0.0
        %3899 = vmatprep.subr.mxu0 0.0
        %3900 = vmatpush2.xpose.msra.mxu0 0.0
        %3901 = vmatprep.subr.mxu0 0.0
        %3902 = vmatpush2.xpose.msra.mxu0 0.0
        %3903 = vmatprep.subr.mxu0 0.0
        %3904 = vmatpush2.xpose.msra.mxu0 0.0
        %3905 = vmatprep.subr.mxu0 0.0
        %3906 = vmatpush2.xpose.msra.mxu0 0.0
        %3907 = vmatprep.subr.mxu0 0.0
        %3908 = vmatpush2.xpose.msra.mxu0 0.0
        %3909 = vmatprep.subr.mxu0 0.0
        %3910 = vmatpush2.xpose.msra.mxu0 0.0
        %3911 = vmatprep.subr.mxu0 0.0
        %3912 = vmatpush2.xpose.msra.mxu0 0.0
        %3913 = vmatprep.subr.mxu0 0.0
        %3914 = vmatpush2.xpose.msra.mxu0 0.0
        %3915 = vmatprep.subr.mxu0 0.0
        %3916 = vmatpush2.xpose.msra.mxu0 0.0
        %3917 = vmatprep.mubr.f32.mxu0 0.0
        %3918 = vmatmul.mubr.f32.gmra.mxu0 %v3848
        %v3919 = vpop.f32.mrf.mxu0
        %v3920 = vadd.f32 %v274, %v3919
        %v3921 = vpop.f32.mrf.mxu0
        %3922 = vdwg.mxu0
        %v3924 = vsel %vm580, %v3510, 0
        %v3927 = vsel %vm580, %v3601, 0
        %3929 = vmatprep.subr.mxu0 0.0
        %3930 = vmatpush1.xpose.msra.mxu0 0.0
        %3931 = vmatprep.subr.mxu0 0.0
        %3932 = vmatpush1.xpose.msra.mxu0 0.0
        %3933 = vmatprep.subr.mxu0 0.0
        %3934 = vmatpush1.xpose.msra.mxu0 0.0
        %3935 = vmatprep.subr.mxu0 0.0
        %3936 = vmatpush1.xpose.msra.mxu0 0.0
        %3937 = vmatprep.subr.mxu0 0.0
        %3938 = vmatpush1.xpose.msra.mxu0 0.0
        %3939 = vmatprep.subr.mxu0 0.0
        %3940 = vmatpush1.xpose.msra.mxu0 0.0
        %3941 = vmatprep.subr.mxu0 0.0
        %3942 = vmatpush1.xpose.msra.mxu0 0.0
        %3943 = vmatprep.subr.mxu0 0.0
        %3944 = vmatpush1.xpose.msra.mxu0 0.0
        %3945 = vmatprep.subr.mxu0 0.0
        %3946 = vmatpush1.xpose.msra.mxu0 0.0
        %3947 = vmatprep.subr.mxu0 0.0
        %3948 = vmatpush1.xpose.msra.mxu0 0.0
        %3949 = vmatprep.subr.mxu0 0.0
        %3950 = vmatpush1.xpose.msra.mxu0 0.0
        %3951 = vmatprep.subr.mxu0 0.0
        %3952 = vmatpush1.xpose.msra.mxu0 0.0
        %3953 = vmatprep.subr.mxu0 0.0
        %3954 = vmatpush1.xpose.msra.mxu0 0.0
        %3955 = vmatprep.subr.mxu0 0.0
        %3956 = vmatpush1.xpose.msra.mxu0 0.0
        %3957 = vmatprep.subr.mxu0 0.0
        %3958 = vmatpush1.xpose.msra.mxu0 0.0
        %3959 = vmatprep.subr.mxu0 0.0
        %3960 = vmatpush1.xpose.msra.mxu0 %v3927
        %3961 = vmatprep.subr.mxu0 0.0
        %3962 = vmatpush2.xpose.msra.mxu0 0.0
        %3963 = vmatprep.subr.mxu0 0.0
        %3964 = vmatpush2.xpose.msra.mxu0 0.0
        %3965 = vmatprep.subr.mxu0 0.0
        %3966 = vmatpush2.xpose.msra.mxu0 0.0
        %3967 = vmatprep.subr.mxu0 0.0
        %3968 = vmatpush2.xpose.msra.mxu0 0.0
        %3969 = vmatprep.subr.mxu0 0.0
        %3970 = vmatpush2.xpose.msra.mxu0 0.0
        %3971 = vmatprep.subr.mxu0 0.0
        %3972 = vmatpush2.xpose.msra.mxu0 0.0
        %3973 = vmatprep.subr.mxu0 0.0
        %3974 = vmatpush2.xpose.msra.mxu0 0.0
        %3975 = vmatprep.subr.mxu0 0.0
        %3976 = vmatpush2.xpose.msra.mxu0 0.0
        %3977 = vmatprep.subr.mxu0 0.0
        %3978 = vmatpush2.xpose.msra.mxu0 0.0
        %3979 = vmatprep.subr.mxu0 0.0
        %3980 = vmatpush2.xpose.msra.mxu0 0.0
        %3981 = vmatprep.subr.mxu0 0.0
        %3982 = vmatpush2.xpose.msra.mxu0 0.0
        %3983 = vmatprep.subr.mxu0 0.0
        %3984 = vmatpush2.xpose.msra.mxu0 0.0
        %3985 = vmatprep.subr.mxu0 0.0
        %3986 = vmatpush2.xpose.msra.mxu0 0.0
        %3987 = vmatprep.subr.mxu0 0.0
        %3988 = vmatpush2.xpose.msra.mxu0 0.0
        %3989 = vmatprep.subr.mxu0 0.0
        %3990 = vmatpush2.xpose.msra.mxu0 0.0
        %3991 = vmatprep.subr.mxu0 0.0
        %3992 = vmatpush2.xpose.msra.mxu0 0.0
        %3993 = vmatprep.mubr.f32.mxu0 0.0
        %3994 = vmatmul.mubr.f32.gmra.mxu0 %v3924
        %v3995 = vpop.f32.mrf.mxu0
        %v3996 = vadd.f32 %v274, %v3995
        %v3997 = vpop.f32.mrf.mxu0
        %3998 = vdwg.mxu0
        %v3999 = vsel %vm580, %v3768, -inf
        %4000 = vmax.xlane.f32.xlu0 %v3999
        %v4001 = vpop.xlane.xlu0 %4000
        %v4002 = vsel %vm580, %v3844, -inf
        %4003 = vmax.xlane.f32.xlu0 %v4002
        %v4004 = vpop.xlane.xlu0 %4003
        %v4005 = vsel %vm580, %v3920, -inf
        %4006 = vmax.xlane.f32.xlu0 %v4005
        %v4007 = vpop.xlane.xlu0 %4006
        %v4008 = vsel %vm580, %v3996, -inf
        %4009 = vmax.xlane.f32.xlu0 %v4008
        %v4010 = vpop.xlane.xlu0 %4009
        %v4011 = vsub.f32 %v3768, %v4001
        %v4012 = vsub.f32 %v3844, %v4004
        %v4013 = vsub.f32 %v3920, %v4007
        %v4014 = vsub.f32 %v3996, %v4010
        %v4015 = vmul.f32 %v4011, 1.442695
        %v4016 = vpow.pop %v4015
        %v4017 = vmul.f32 %v4012, 1.442695
        %v4018 = vpow.pop %v4017
        %v4019 = vmul.f32 %v4013, 1.442695
        %v4020 = vpow.pop %v4019
        %v4021 = vmul.f32 %v4014, 1.442695
        %v4022 = vpow.pop %v4021
        %v4023 = vsel %vm580, %v4016, 0.0
        %4024 = vadd.xlane.f32.xlu0 %v4023
        %v4025 = vpop.xlane.xlu0 %4024
        %v4026 = vsel %vm580, %v4018, 0.0
        %4027 = vadd.xlane.f32.xlu0 %v4026
        %v4028 = vpop.xlane.xlu0 %4027
        %v4029 = vsel %vm580, %v4020, 0.0
        %4030 = vadd.xlane.f32.xlu0 %v4029
        %v4031 = vpop.xlane.xlu0 %4030
        %v4032 = vsel %vm580, %v4022, 0.0
        %4033 = vadd.xlane.f32.xlu0 %v4032
        %v4034 = vpop.xlane.xlu0 %4033
        %v4035 = vrcp.pop %v4025
        %v4036 = vrcp.pop %v4028
        %v4037 = vrcp.pop %v4031
        %v4038 = vrcp.pop %v4034
        %v4039 = vmul.f32 %v4016, %v4035
        %v4040 = vmul.f32 %v4018, %v4036
        %v4041 = vmul.f32 %v4020, %v4037
        %v4042 = vmul.f32 %v4022, %v4038
        %v4043 = vadd.f32 %v3002, %v4039
        %v4044 = vadd.f32 %v3003, %v4040
        %v4045 = vadd.f32 %v3004, %v4041
        %v4046 = vadd.f32 %v3005, %v4042
        %v4048 = vsel %vm580, %v4039, 0
        %4050 = vmatprep.subr.mxu0 0.0
        %4051 = vmatpush1.msra.mxu0 0.0
        %4052 = vmatprep.subr.mxu0 0.0
        %4053 = vmatpush1.msra.mxu0 0.0
        %4054 = vmatprep.subr.mxu0 0.0
        %4055 = vmatpush1.msra.mxu0 0.0
        %4056 = vmatprep.subr.mxu0 0.0
        %4057 = vmatpush1.msra.mxu0 0.0
        %4058 = vmatprep.subr.mxu0 0.0
        %4059 = vmatpush1.msra.mxu0 0.0
        %4060 = vmatprep.subr.mxu0 0.0
        %4061 = vmatpush1.msra.mxu0 0.0
        %4062 = vmatprep.subr.mxu0 0.0
        %4063 = vmatpush1.msra.mxu0 0.0
        %4064 = vmatprep.subr.mxu0 0.0
        %4065 = vmatpush1.msra.mxu0 0.0
        %4066 = vmatprep.subr.mxu0 0.0
        %4067 = vmatpush1.msra.mxu0 0.0
        %4068 = vmatprep.subr.mxu0 0.0
        %4069 = vmatpush1.msra.mxu0 0.0
        %4070 = vmatprep.subr.mxu0 0.0
        %4071 = vmatpush1.msra.mxu0 0.0
        %4072 = vmatprep.subr.mxu0 0.0
        %4073 = vmatpush1.msra.mxu0 0.0
        %4074 = vmatprep.subr.mxu0 0.0
        %4075 = vmatpush1.msra.mxu0 0.0
        %4076 = vmatprep.subr.mxu0 0.0
        %4077 = vmatpush1.msra.mxu0 0.0
        %4078 = vmatprep.subr.mxu0 0.0
        %4079 = vmatpush1.msra.mxu0 0.0
        %4080 = vmatprep.subr.mxu0 0.0
        %4081 = vmatpush1.msra.mxu0 %v3677
        %4082 = vmatprep.subr.mxu0 0.0
        %4083 = vmatpush2.msra.mxu0 0.0
        %4084 = vmatprep.subr.mxu0 0.0
        %4085 = vmatpush2.msra.mxu0 0.0
        %4086 = vmatprep.subr.mxu0 0.0
        %4087 = vmatpush2.msra.mxu0 0.0
        %4088 = vmatprep.subr.mxu0 0.0
        %4089 = vmatpush2.msra.mxu0 0.0
        %4090 = vmatprep.subr.mxu0 0.0
        %4091 = vmatpush2.msra.mxu0 0.0
        %4092 = vmatprep.subr.mxu0 0.0
        %4093 = vmatpush2.msra.mxu0 0.0
        %4094 = vmatprep.subr.mxu0 0.0
        %4095 = vmatpush2.msra.mxu0 0.0
        %4096 = vmatprep.subr.mxu0 0.0
        %4097 = vmatpush2.msra.mxu0 0.0
        %4098 = vmatprep.subr.mxu0 0.0
        %4099 = vmatpush2.msra.mxu0 0.0
        %4100 = vmatprep.subr.mxu0 0.0
        %4101 = vmatpush2.msra.mxu0 0.0
        %4102 = vmatprep.subr.mxu0 0.0
        %4103 = vmatpush2.msra.mxu0 0.0
        %4104 = vmatprep.subr.mxu0 0.0
        %4105 = vmatpush2.msra.mxu0 0.0
        %4106 = vmatprep.subr.mxu0 0.0
        %4107 = vmatpush2.msra.mxu0 0.0
        %4108 = vmatprep.subr.mxu0 0.0
        %4109 = vmatpush2.msra.mxu0 0.0
        %4110 = vmatprep.subr.mxu0 0.0
        %4111 = vmatpush2.msra.mxu0 0.0
        %4112 = vmatprep.subr.mxu0 0.0
        %4113 = vmatpush2.msra.mxu0 0.0
        %4114 = vmatprep.mubr.f32.mxu0 0.0
        %4115 = vmatmul.mubr.f32.gmra.mxu0 %v4048
        %v4116 = vpop.f32.mrf.mxu0
        %v4117 = vadd.f32 0.0, %v4116
        %v4118 = vpop.f32.mrf.mxu0
        %4119 = vdwg.mxu0
        %v4121 = vsel %vm580, %v4040, 0
        %4123 = vmatprep.subr.mxu0 0.0
        %4124 = vmatpush1.msra.mxu0 0.0
        %4125 = vmatprep.subr.mxu0 0.0
        %4126 = vmatpush1.msra.mxu0 0.0
        %4127 = vmatprep.subr.mxu0 0.0
        %4128 = vmatpush1.msra.mxu0 0.0
        %4129 = vmatprep.subr.mxu0 0.0
        %4130 = vmatpush1.msra.mxu0 0.0
        %4131 = vmatprep.subr.mxu0 0.0
        %4132 = vmatpush1.msra.mxu0 0.0
        %4133 = vmatprep.subr.mxu0 0.0
        %4134 = vmatpush1.msra.mxu0 0.0
        %4135 = vmatprep.subr.mxu0 0.0
        %4136 = vmatpush1.msra.mxu0 0.0
        %4137 = vmatprep.subr.mxu0 0.0
        %4138 = vmatpush1.msra.mxu0 0.0
        %4139 = vmatprep.subr.mxu0 0.0
        %4140 = vmatpush1.msra.mxu0 0.0
        %4141 = vmatprep.subr.mxu0 0.0
        %4142 = vmatpush1.msra.mxu0 0.0
        %4143 = vmatprep.subr.mxu0 0.0
        %4144 = vmatpush1.msra.mxu0 0.0
        %4145 = vmatprep.subr.mxu0 0.0
        %4146 = vmatpush1.msra.mxu0 0.0
        %4147 = vmatprep.subr.mxu0 0.0
        %4148 = vmatpush1.msra.mxu0 0.0
        %4149 = vmatprep.subr.mxu0 0.0
        %4150 = vmatpush1.msra.mxu0 0.0
        %4151 = vmatprep.subr.mxu0 0.0
        %4152 = vmatpush1.msra.mxu0 0.0
        %4153 = vmatprep.subr.mxu0 0.0
        %4154 = vmatpush1.msra.mxu0 %v3682
        %4155 = vmatprep.subr.mxu0 0.0
        %4156 = vmatpush2.msra.mxu0 0.0
        %4157 = vmatprep.subr.mxu0 0.0
        %4158 = vmatpush2.msra.mxu0 0.0
        %4159 = vmatprep.subr.mxu0 0.0
        %4160 = vmatpush2.msra.mxu0 0.0
        %4161 = vmatprep.subr.mxu0 0.0
        %4162 = vmatpush2.msra.mxu0 0.0
        %4163 = vmatprep.subr.mxu0 0.0
        %4164 = vmatpush2.msra.mxu0 0.0
        %4165 = vmatprep.subr.mxu0 0.0
        %4166 = vmatpush2.msra.mxu0 0.0
        %4167 = vmatprep.subr.mxu0 0.0
        %4168 = vmatpush2.msra.mxu0 0.0
        %4169 = vmatprep.subr.mxu0 0.0
        %4170 = vmatpush2.msra.mxu0 0.0
        %4171 = vmatprep.subr.mxu0 0.0
        %4172 = vmatpush2.msra.mxu0 0.0
        %4173 = vmatprep.subr.mxu0 0.0
        %4174 = vmatpush2.msra.mxu0 0.0
        %4175 = vmatprep.subr.mxu0 0.0
        %4176 = vmatpush2.msra.mxu0 0.0
        %4177 = vmatprep.subr.mxu0 0.0
        %4178 = vmatpush2.msra.mxu0 0.0
        %4179 = vmatprep.subr.mxu0 0.0
        %4180 = vmatpush2.msra.mxu0 0.0
        %4181 = vmatprep.subr.mxu0 0.0
        %4182 = vmatpush2.msra.mxu0 0.0
        %4183 = vmatprep.subr.mxu0 0.0
        %4184 = vmatpush2.msra.mxu0 0.0
        %4185 = vmatprep.subr.mxu0 0.0
        %4186 = vmatpush2.msra.mxu0 0.0
        %4187 = vmatprep.mubr.f32.mxu0 0.0
        %4188 = vmatmul.mubr.f32.gmra.mxu0 %v4121
        %v4189 = vpop.f32.mrf.mxu0
        %v4190 = vadd.f32 0.0, %v4189
        %v4191 = vpop.f32.mrf.mxu0
        %4192 = vdwg.mxu0
        %v4194 = vsel %vm580, %v4041, 0
        %4196 = vmatprep.subr.mxu0 0.0
        %4197 = vmatpush1.msra.mxu0 0.0
        %4198 = vmatprep.subr.mxu0 0.0
        %4199 = vmatpush1.msra.mxu0 0.0
        %4200 = vmatprep.subr.mxu0 0.0
        %4201 = vmatpush1.msra.mxu0 0.0
        %4202 = vmatprep.subr.mxu0 0.0
        %4203 = vmatpush1.msra.mxu0 0.0
        %4204 = vmatprep.subr.mxu0 0.0
        %4205 = vmatpush1.msra.mxu0 0.0
        %4206 = vmatprep.subr.mxu0 0.0
        %4207 = vmatpush1.msra.mxu0 0.0
        %4208 = vmatprep.subr.mxu0 0.0
        %4209 = vmatpush1.msra.mxu0 0.0
        %4210 = vmatprep.subr.mxu0 0.0
        %4211 = vmatpush1.msra.mxu0 0.0
        %4212 = vmatprep.subr.mxu0 0.0
        %4213 = vmatpush1.msra.mxu0 0.0
        %4214 = vmatprep.subr.mxu0 0.0
        %4215 = vmatpush1.msra.mxu0 0.0
        %4216 = vmatprep.subr.mxu0 0.0
        %4217 = vmatpush1.msra.mxu0 0.0
        %4218 = vmatprep.subr.mxu0 0.0
        %4219 = vmatpush1.msra.mxu0 0.0
        %4220 = vmatprep.subr.mxu0 0.0
        %4221 = vmatpush1.msra.mxu0 0.0
        %4222 = vmatprep.subr.mxu0 0.0
        %4223 = vmatpush1.msra.mxu0 0.0
        %4224 = vmatprep.subr.mxu0 0.0
        %4225 = vmatpush1.msra.mxu0 0.0
        %4226 = vmatprep.subr.mxu0 0.0
        %4227 = vmatpush1.msra.mxu0 %v3687
        %4228 = vmatprep.subr.mxu0 0.0
        %4229 = vmatpush2.msra.mxu0 0.0
        %4230 = vmatprep.subr.mxu0 0.0
        %4231 = vmatpush2.msra.mxu0 0.0
        %4232 = vmatprep.subr.mxu0 0.0
        %4233 = vmatpush2.msra.mxu0 0.0
        %4234 = vmatprep.subr.mxu0 0.0
        %4235 = vmatpush2.msra.mxu0 0.0
        %4236 = vmatprep.subr.mxu0 0.0
        %4237 = vmatpush2.msra.mxu0 0.0
        %4238 = vmatprep.subr.mxu0 0.0
        %4239 = vmatpush2.msra.mxu0 0.0
        %4240 = vmatprep.subr.mxu0 0.0
        %4241 = vmatpush2.msra.mxu0 0.0
        %4242 = vmatprep.subr.mxu0 0.0
        %4243 = vmatpush2.msra.mxu0 0.0
        %4244 = vmatprep.subr.mxu0 0.0
        %4245 = vmatpush2.msra.mxu0 0.0
        %4246 = vmatprep.subr.mxu0 0.0
        %4247 = vmatpush2.msra.mxu0 0.0
        %4248 = vmatprep.subr.mxu0 0.0
        %4249 = vmatpush2.msra.mxu0 0.0
        %4250 = vmatprep.subr.mxu0 0.0
        %4251 = vmatpush2.msra.mxu0 0.0
        %4252 = vmatprep.subr.mxu0 0.0
        %4253 = vmatpush2.msra.mxu0 0.0
        %4254 = vmatprep.subr.mxu0 0.0
        %4255 = vmatpush2.msra.mxu0 0.0
        %4256 = vmatprep.subr.mxu0 0.0
        %4257 = vmatpush2.msra.mxu0 0.0
        %4258 = vmatprep.subr.mxu0 0.0
        %4259 = vmatpush2.msra.mxu0 0.0
        %4260 = vmatprep.mubr.f32.mxu0 0.0
        %4261 = vmatmul.mubr.f32.gmra.mxu0 %v4194
        %v4262 = vpop.f32.mrf.mxu0
        %v4263 = vadd.f32 0.0, %v4262
        %v4264 = vpop.f32.mrf.mxu0
        %4265 = vdwg.mxu0
        %v4267 = vsel %vm580, %v4042, 0
        %4269 = vmatprep.subr.mxu0 0.0
        %4270 = vmatpush1.msra.mxu0 0.0
        %4271 = vmatprep.subr.mxu0 0.0
        %4272 = vmatpush1.msra.mxu0 0.0
        %4273 = vmatprep.subr.mxu0 0.0
        %4274 = vmatpush1.msra.mxu0 0.0
        %4275 = vmatprep.subr.mxu0 0.0
        %4276 = vmatpush1.msra.mxu0 0.0
        %4277 = vmatprep.subr.mxu0 0.0
        %4278 = vmatpush1.msra.mxu0 0.0
        %4279 = vmatprep.subr.mxu0 0.0
        %4280 = vmatpush1.msra.mxu0 0.0
        %4281 = vmatprep.subr.mxu0 0.0
        %4282 = vmatpush1.msra.mxu0 0.0
        %4283 = vmatprep.subr.mxu0 0.0
        %4284 = vmatpush1.msra.mxu0 0.0
        %4285 = vmatprep.subr.mxu0 0.0
        %4286 = vmatpush1.msra.mxu0 0.0
        %4287 = vmatprep.subr.mxu0 0.0
        %4288 = vmatpush1.msra.mxu0 0.0
        %4289 = vmatprep.subr.mxu0 0.0
        %4290 = vmatpush1.msra.mxu0 0.0
        %4291 = vmatprep.subr.mxu0 0.0
        %4292 = vmatpush1.msra.mxu0 0.0
        %4293 = vmatprep.subr.mxu0 0.0
        %4294 = vmatpush1.msra.mxu0 0.0
        %4295 = vmatprep.subr.mxu0 0.0
        %4296 = vmatpush1.msra.mxu0 0.0
        %4297 = vmatprep.subr.mxu0 0.0
        %4298 = vmatpush1.msra.mxu0 0.0
        %4299 = vmatprep.subr.mxu0 0.0
        %4300 = vmatpush1.msra.mxu0 %v3692
        %4301 = vmatprep.subr.mxu0 0.0
        %4302 = vmatpush2.msra.mxu0 0.0
        %4303 = vmatprep.subr.mxu0 0.0
        %4304 = vmatpush2.msra.mxu0 0.0
        %4305 = vmatprep.subr.mxu0 0.0
        %4306 = vmatpush2.msra.mxu0 0.0
        %4307 = vmatprep.subr.mxu0 0.0
        %4308 = vmatpush2.msra.mxu0 0.0
        %4309 = vmatprep.subr.mxu0 0.0
        %4310 = vmatpush2.msra.mxu0 0.0
        %4311 = vmatprep.subr.mxu0 0.0
        %4312 = vmatpush2.msra.mxu0 0.0
        %4313 = vmatprep.subr.mxu0 0.0
        %4314 = vmatpush2.msra.mxu0 0.0
        %4315 = vmatprep.subr.mxu0 0.0
        %4316 = vmatpush2.msra.mxu0 0.0
        %4317 = vmatprep.subr.mxu0 0.0
        %4318 = vmatpush2.msra.mxu0 0.0
        %4319 = vmatprep.subr.mxu0 0.0
        %4320 = vmatpush2.msra.mxu0 0.0
        %4321 = vmatprep.subr.mxu0 0.0
        %4322 = vmatpush2.msra.mxu0 0.0
        %4323 = vmatprep.subr.mxu0 0.0
        %4324 = vmatpush2.msra.mxu0 0.0
        %4325 = vmatprep.subr.mxu0 0.0
        %4326 = vmatpush2.msra.mxu0 0.0
        %4327 = vmatprep.subr.mxu0 0.0
        %4328 = vmatpush2.msra.mxu0 0.0
        %4329 = vmatprep.subr.mxu0 0.0
        %4330 = vmatpush2.msra.mxu0 0.0
        %4331 = vmatprep.subr.mxu0 0.0
        %4332 = vmatpush2.msra.mxu0 0.0
        %4333 = vmatprep.mubr.f32.mxu0 0.0
        %4334 = vmatmul.mubr.f32.gmra.mxu0 %v4267
        %v4335 = vpop.f32.mrf.mxu0
        %v4336 = vadd.f32 0.0, %v4335
        %v4337 = vpop.f32.mrf.mxu0
        %4338 = vdwg.mxu0
        %s4339 = scalar_lea.vmem %s3, 24
        %v4340 = vld [vmem:[%s4339] sm:$0xff]
        %v4342 = vsel %vm580, %v4117, 0
        %v4345 = vsel %vm580, %v4190, 0
        %v4348 = vsel %vm580, %v4263, 0
        %v4351 = vsel %vm580, %v4336, 0
        %4353 = vmatprep.subr.mxu0 0.0
        %4354 = vmatpush1.msra.mxu0 0.0
        %4355 = vmatprep.subr.mxu0 0.0
        %4356 = vmatpush1.msra.mxu0 0.0
        %4357 = vmatprep.subr.mxu0 0.0
        %4358 = vmatpush1.msra.mxu0 0.0
        %4359 = vmatprep.subr.mxu0 0.0
        %4360 = vmatpush1.msra.mxu0 0.0
        %4361 = vmatprep.subr.mxu0 0.0
        %4362 = vmatpush1.msra.mxu0 0.0
        %4363 = vmatprep.subr.mxu0 0.0
        %4364 = vmatpush1.msra.mxu0 0.0
        %4365 = vmatprep.subr.mxu0 0.0
        %4366 = vmatpush1.msra.mxu0 0.0
        %4367 = vmatprep.subr.mxu0 0.0
        %4368 = vmatpush1.msra.mxu0 0.0
        %4369 = vmatprep.subr.mxu0 0.0
        %4370 = vmatpush1.msra.mxu0 0.0
        %4371 = vmatprep.subr.mxu0 0.0
        %4372 = vmatpush1.msra.mxu0 0.0
        %4373 = vmatprep.subr.mxu0 0.0
        %4374 = vmatpush1.msra.mxu0 0.0
        %4375 = vmatprep.subr.mxu0 0.0
        %4376 = vmatpush1.msra.mxu0 0.0
        %4377 = vmatprep.subr.mxu0 0.0
        %4378 = vmatpush1.msra.mxu0 0.0
        %4379 = vmatprep.subr.mxu0 0.0
        %4380 = vmatpush1.msra.mxu0 0.0
        %4381 = vmatprep.subr.mxu0 0.0
        %4382 = vmatpush1.msra.mxu0 0.0
        %4383 = vmatprep.subr.mxu0 0.0
        %4384 = vmatpush1.msra.mxu0 %v4340
        %4385 = vmatprep.subr.mxu0 0.0
        %4386 = vmatpush2.msra.mxu0 0.0
        %4387 = vmatprep.subr.mxu0 0.0
        %4388 = vmatpush2.msra.mxu0 0.0
        %4389 = vmatprep.subr.mxu0 0.0
        %4390 = vmatpush2.msra.mxu0 0.0
        %4391 = vmatprep.subr.mxu0 0.0
        %4392 = vmatpush2.msra.mxu0 0.0
        %4393 = vmatprep.subr.mxu0 0.0
        %4394 = vmatpush2.msra.mxu0 0.0
        %4395 = vmatprep.subr.mxu0 0.0
        %4396 = vmatpush2.msra.mxu0 0.0
        %4397 = vmatprep.subr.mxu0 0.0
        %4398 = vmatpush2.msra.mxu0 0.0
        %4399 = vmatprep.subr.mxu0 0.0
        %4400 = vmatpush2.msra.mxu0 0.0
        %4401 = vmatprep.subr.mxu0 0.0
        %4402 = vmatpush2.msra.mxu0 0.0
        %4403 = vmatprep.subr.mxu0 0.0
        %4404 = vmatpush2.msra.mxu0 0.0
        %4405 = vmatprep.subr.mxu0 0.0
        %4406 = vmatpush2.msra.mxu0 0.0
        %4407 = vmatprep.subr.mxu0 0.0
        %4408 = vmatpush2.msra.mxu0 0.0
        %4409 = vmatprep.subr.mxu0 0.0
        %4410 = vmatpush2.msra.mxu0 0.0
        %4411 = vmatprep.subr.mxu0 0.0
        %4412 = vmatpush2.msra.mxu0 0.0
        %4413 = vmatprep.subr.mxu0 0.0
        %4414 = vmatpush2.msra.mxu0 0.0
        %4415 = vmatprep.subr.mxu0 0.0
        %4416 = vmatpush2.msra.mxu0 0.0
        %4417 = vmatprep.mubr.f32.mxu0 0.0
        %4418 = vmatmul.mubr.f32.gmra.mxu0 %v4342
        %v4419 = vpop.f32.mrf.mxu0
        %v4420 = vadd.f32 0.0, %v4419
        %v4421 = vpop.f32.mrf.mxu0
        %4422 = vmatprep.mubr.f32.mxu0 0.0
        %4423 = vmatmul.mubr.f32.gmra.mxu0 %v4345
        %v4424 = vpop.f32.mrf.mxu0
        %v4425 = vadd.f32 0.0, %v4424
        %v4426 = vpop.f32.mrf.mxu0
        %4427 = vmatprep.mubr.f32.mxu0 0.0
        %4428 = vmatmul.mubr.f32.gmra.mxu0 %v4348
        %v4429 = vpop.f32.mrf.mxu0
        %v4430 = vadd.f32 0.0, %v4429
        %v4431 = vpop.f32.mrf.mxu0
        %4432 = vmatprep.mubr.f32.mxu0 0.0
        %4433 = vmatmul.mubr.f32.gmra.mxu0 %v4351
        %v4434 = vpop.f32.mrf.mxu0
        %v4435 = vadd.f32 0.0, %v4434
        %v4436 = vpop.f32.mrf.mxu0
        %4437 = vdwg.mxu0
        %v4438 = vadd.f32 %v3397, %v4420
        %v4439 = vadd.f32 %v3398, %v4425
        %v4440 = vadd.f32 %v3399, %v4430
        %v4441 = vadd.f32 %v3400, %v4435
        %v4442 = vld [vmem:[%s4] sm:$0x1]
        %v4444 = vlaneseq
        %v4445 = vshrl.u32 %v4444, 7
        %v4446 = vsub.s32 0, %v4445
        %v4447 = vrot.slane %v4442, %v4446
        %v4449 = vadd.f32 %v4438, %v4447
        %v4450 = vadd.f32 %v4439, %v4447
        %v4451 = vadd.f32 %v4440, %v4447
        %v4452 = vadd.f32 %v4441, %v4447
        %v4453 = vadd.f32 %v4449, %v265
        %v4454 = vadd.f32 %v4450, %v266
        %v4455 = vadd.f32 %v4451, %v267
        %v4456 = vadd.f32 %v4452, %v268
        %4457 = vst.msk [vmem:[%s249] sm:$0xff] %vm300, %v4453
        %4458 = vst.msk [vmem:[%s249 + $0x8] sm:$0xff] %vm300, %v4454
        %4459 = vst.msk [vmem:[%s249 + $0x10] sm:$0xff] %vm300, %v4455
        %4460 = vst.msk [vmem:[%s249 + $0x18] sm:$0xff] %vm300, %v4456
        %v4461 = vmul.f32 %v4043, 0.25
        %v4462 = vmul.f32 %v4044, 0.25
        %v4463 = vmul.f32 %v4045, 0.25
        %v4464 = vmul.f32 %v4046, 0.25
        %4465 = vst.msk [vmem:[%s256] sm:$0xff] %vm580, %v4461
        %4466 = vst.msk [vmem:[%s256 + $0x8] sm:$0xff] %vm580, %v4462
        %4467 = vst.msk [vmem:[%s256 + $0x10] sm:$0xff] %vm580, %v4463
        %4468 = vst.msk [vmem:[%s256 + $0x18] sm:$0xff] %vm580, %v4464
        %s4469 = sand.u32 %s142, 1
        %s4470 = scalar_lea.sflag [#allocation3], %s4469
        %s4471 = sand.u32 %s142, 1
        %s4472 = smul.addr %s4471, 32
        %s4473 = scalar_lea.vmem [#allocation2], %s4472
        %s4474 = sand.u32 %s168, 1
        %s4475 = scalar_lea.sflag [#allocation5], %s4474
        %s4476 = sand.u32 %s168, 1
        %s4477 = smul.addr %s4476, 32
        %s4478 = scalar_lea.vmem [#allocation4], %s4477
        // Predicated region
        $region41: #{tpu_custom_call.1} parent=39 // pred_check
          %p4479 = pneg %p152
        $region42: #{tpu_custom_call.1} parent=39 // pred_check_branch
          %4481 = sbr.rel (%p4479) target = $region44
        $region43: #{tpu_custom_call.1} parent=39 // pred_region
          %s4482 = smul.u32 4, %s24
          %s4484 = ssub.s32 512, 512
          %4485 = vsyncadd %s4470, %s4484
          %s4486 = smul.addr %s4482, 128
          %s4487 = scalar_lea.hbm %s5, %s4486
          %s4488 = sshll.u32 %s4473, 4
          %s4489 = int_to_ptr.vmem [resolvable:$true] %s4488
          %4494 = dma.vmem_to_hbm [thread:$0]  %s4489, 512, %s4487, %s4470, 128, 128, 8
        $region44: #{tpu_custom_call.1} parent=39 // pred_fallthru
          _
        // Predicated region
        $region45: #{tpu_custom_call.1} parent=39 // pred_check
          %p4495 = pneg %p178
        $region46: #{tpu_custom_call.1} parent=39 // pred_check_branch
          %4497 = sbr.rel (%p4495) target = $region48
        $region47: #{tpu_custom_call.1} parent=39 // pred_region
          %s4498 = smul.u32 4, %s24
          %s4500 = ssub.s32 512, 512
          %4501 = vsyncadd %s4475, %s4500
          %s4502 = smul.addr %s4498, 128
          %s4503 = scalar_lea.hbm %s6, %s4502
          %s4504 = sshll.u32 %s4478, 4
          %s4505 = int_to_ptr.vmem [resolvable:$true] %s4504
          %4510 = dma.vmem_to_hbm [thread:$0]  %s4505, 512, %s4503, %s4475, 128, 128, 8
        $region48: #{tpu_custom_call.1} parent=39 // pred_fallthru
          _
      $region40: #{tpu_custom_call.1} parent=5 // pred_fallthru
        _
      %p4511 = scmp.le.s32.totalorder 2, %s19
      // Predicated region
      $region49: #{tpu_custom_call.1} parent=5 // pred_check
        %p4512 = pneg %p4511
      $region50: #{tpu_custom_call.1} parent=5 // pred_check_branch
        %4514 = sbr.rel (%p4512) target = $region52
      $region51: #{tpu_custom_call.1} parent=5 // pred_region
        %s4515 = ssub.s32 %s19, 2
        // Predicated region
        $region53: #{tpu_custom_call.1} parent=51 // pred_check
          %p4516 = pneg %p158
        $region54: #{tpu_custom_call.1} parent=51 // pred_check_branch
          %4518 = sbr.rel (%p4516) target = $region56
        $region55: #{tpu_custom_call.1} parent=51 // pred_region
          %s4519 = sand.u32 %s143, 1
          %s4520 = scalar_lea.sflag [#allocation3], %s4519
          %s4521 = sand.u32 %s143, 1
          %s4522 = smul.addr %s4521, 32
          %s4523 = scalar_lea.vmem [#allocation2], %s4522
          %4524 = dma.done %s4520, 512
        $region56: #{tpu_custom_call.1} parent=51 // pred_fallthru
          _
        // Predicated region
        $region57: #{tpu_custom_call.1} parent=51 // pred_check
          %p4525 = pneg %p184
        $region58: #{tpu_custom_call.1} parent=51 // pred_check_branch
          %4527 = sbr.rel (%p4525) target = $region60
        $region59: #{tpu_custom_call.1} parent=51 // pred_region
          %s4528 = sand.u32 %s169, 1
          %s4529 = scalar_lea.sflag [#allocation5], %s4528
          %s4530 = sand.u32 %s169, 1
          %s4531 = smul.addr %s4530, 32
          %s4532 = scalar_lea.vmem [#allocation4], %s4531
          %4533 = dma.done %s4529, 512
        $region60: #{tpu_custom_call.1} parent=51 // pred_fallthru
          _
      $region52: #{tpu_custom_call.1} parent=5 // pred_fallthru
        _
    $region6: #{tpu_custom_call.1} parent=1 // loop_footer
      %s23 = sadd.s32 1, %s19
    $region7: #{tpu_custom_call.1} parent=1 // loop_footer_branch
      %18 = sbr.rel target = $region3
    $region8: #{tpu_custom_call.1} parent=1 // loop_exit
      _
    %4534 = vsyncpa [#allocation3], 1
    %s4535 = scalar_lea.sflag [#allocation3], 1
    %4536 = vsyncpa %s4535, 1
    %4537 = vsyncpa [#allocation5], 1
    %s4538 = scalar_lea.sflag [#allocation5], 1
    %4539 = vsyncpa %s4538, 1

</llo_original>
